<compile_context>
chip_gen: v6e
topology: v6e:2x2x1
jax: 0.10.0
libtpu: 0.0.40
codegen_flags: <defaults>
</compile_context>

<pallas_src>
import functools

import jax
import jax.numpy as jnp
from jax import lax
from jax.experimental import pallas as pl
from jax.experimental.pallas import tpu as pltpu


def _encoder_rvq_kernel(frames_ref, w1_ref, b1_ref, w2_ref, b2_ref,
                        cb_ref, cbt_ref, c2_ref, codes_ref):
    """One row tile (R rows of flattened B*T frames) per grid step.

    frames_ref : [R, F]     bf16
    w1_ref     : [F, H]     bf16
    b1_ref     : [1, H]     f32
    w2_ref     : [H, D]     bf16
    b2_ref     : [1, D]     f32
    cb_ref     : [NQ, K, D] f32   codebooks (row layout, one-hot gather)
    cbt_ref    : [NQ, D, K] f32   codebooks transposed (distance matmul)
    c2_ref     : [NQ, K]    f32   precomputed ||codeword||^2
    codes_ref  : [NQ, R]    i32   output codes (lane-dense last dim)
    """
    # --- strided-conv-equivalent projection (bf16 MXU, f32 accumulate) ---
    x = frames_ref[...]                                              # [R, F]
    h = jnp.dot(x, w1_ref[...], preferred_element_type=jnp.float32) + b1_ref[...]
    h = jnp.maximum(h, 0.0)                                          # [R, H]
    z = jnp.dot(h.astype(jnp.bfloat16), w2_ref[...],
                preferred_element_type=jnp.float32) + b2_ref[...]    # [R, D]

    nq, K, _ = cb_ref.shape
    R = z.shape[0]
    c2_all = c2_ref[...]                                             # [NQ, K]

    residual = z                                                     # f32 RVQ path
    col_iota = lax.broadcasted_iota(jnp.int32, (R, nq), 1)           # [R, NQ]
    codes_acc = jnp.zeros((R, nq), jnp.int32)

    for q in range(nq):                                              # small, unrolled
        # distance (up to a per-row constant): d = ||c||^2 - 2 x.c
        xc = jnp.dot(residual, cbt_ref[q],
                     preferred_element_type=jnp.float32)             # [R, K]
        d = c2_all[q:q + 1, :] - 2.0 * xc                            # [R, K]

        # argmin over K (first index on ties).  NOTE: an all-NaN row would
        # map to K (out of range); harmless for finite inputs.
        iota = lax.broadcasted_iota(jnp.int32, d.shape, 1)           # [R, K]
        dmin = jnp.min(d, axis=-1, keepdims=True)                    # [R, 1]
        code2d = jnp.min(jnp.where(d <= dmin, iota, K),
                         axis=-1, keepdims=True)                     # [R, 1]

        # gather quantized vectors via one-hot matmul (no dynamic gather).
        onehot = (iota == code2d).astype(jnp.float32)                # [R, K]
        quantized = jnp.dot(onehot, cb_ref[q],
                            preferred_element_type=jnp.float32)      # [R, D]
        residual = residual - quantized

        codes_acc = jnp.where(col_iota == q, code2d, codes_acc)      # [R, NQ]

    # single lane-dense store: [R, NQ] -> [NQ, R]
    codes_ref[...] = codes_acc.T


@functools.partial(jax.jit, static_argnames=("hop_length", "row_tile"))
def vampnet_encode(audio, w1, b1, w2, b2, codebooks, *, hop_length,
                   row_tile=256):
    """audio: [B, C, L] float32 -> codes: [B, NQ, T] int32.

    row_tile: rows of flattened B*T per grid step.  256 suits v6e/v7x
    (256-wide MXU); use 128 on v5e.
    """
    B, C, L = audio.shape

    # Pad tail to a multiple of hop_length (same semantics as F.pad).
    rem = L % hop_length
    if rem > 0:
        audio = jnp.pad(audio, ((0, 0), (0, 0), (0, hop_length - rem)))
    L_pad = audio.shape[-1]
    T = L_pad // hop_length
    F = C * hop_length

    # Frame: [B, C, L_pad] -> flattened rows [B*T, F] (features on lanes).
    frames = audio.reshape(B, C, T, hop_length).transpose(0, 2, 1, 3)
    frames = frames.reshape(B * T, F).astype(jnp.bfloat16)

    BT = B * T
    n_tiles = pl.cdiv(BT, row_tile)
    BT_pad = n_tiles * row_tile
    if BT_pad > BT:
        frames = jnp.pad(frames, ((0, BT_pad - BT), (0, 0)))

    NQ, K, D = codebooks.shape
    H = w1.shape[1]

    # Weight-only precomputation (hoisted out of the kernel).
    cb = codebooks.astype(jnp.float32)                 # [NQ, K, D]
    cb_t = jnp.transpose(cb, (0, 2, 1))                # [NQ, D, K]
    c2 = jnp.sum(cb * cb, axis=-1)                     # [NQ, K]

    w1b = w1.astype(jnp.bfloat16)
    w2b = w2.astype(jnp.bfloat16)
    b1f = b1.astype(jnp.float32)
    b2f = b2.astype(jnp.float32)

    grid_spec = pltpu.PrefetchScalarGridSpec(
        num_scalar_prefetch=0,
        grid=(n_tiles,),
        in_specs=[
            pl.BlockSpec((row_tile, F), lambda i: (i, 0)),   # frames row tile
            pl.BlockSpec((F, H), lambda i: (0, 0)),          # w1
            pl.BlockSpec((1, H), lambda i: (0, 0)),          # b1
            pl.BlockSpec((H, D), lambda i: (0, 0)),          # w2
            pl.BlockSpec((1, D), lambda i: (0, 0)),          # b2
            pl.BlockSpec((NQ, K, D), lambda i: (0, 0, 0)),   # codebooks
            pl.BlockSpec((NQ, D, K), lambda i: (0, 0, 0)),   # codebooks^T
            pl.BlockSpec((NQ, K), lambda i: (0, 0)),         # ||c||^2
        ],
        out_specs=pl.BlockSpec((NQ, row_tile), lambda i: (0, i)),
    )

    codes_flat = pl.pallas_call(
        _encoder_rvq_kernel,
        out_shape=jax.ShapeDtypeStruct((NQ, BT_pad), jnp.int32),
        grid_spec=grid_spec,
        compiler_params=pltpu.CompilerParams(
            dimension_semantics=("parallel",)),
    )(frames, w1b, b1f, w2b, b2f, cb, cb_t, c2)

    # [NQ, BT_pad] -> [B, NQ, T] (drop padded rows outside the kernel).
    codes = codes_flat[:, :BT].reshape(NQ, B, T).transpose(1, 0, 2)
    return codes


def _reference_encode(audio, w1, b1, w2, b2, codebooks, hop_length):
    """Pure-JAX reference with identical numerics (bf16 MLP, f32 RVQ)."""
    B, C, L = audio.shape
    rem = L % hop_length
    if rem > 0:
        audio = jnp.pad(audio, ((0, 0), (0, 0), (0, hop_length - rem)))
    T = audio.shape[-1] // hop_length
    F = C * hop_length
    frames = audio.reshape(B, C, T, hop_length).transpose(0, 2, 1, 3)
    frames = frames.reshape(B * T, F).astype(jnp.bfloat16)

    h = jnp.maximum(
        jnp.dot(frames, w1.astype(jnp.bfloat16),
                preferred_element_type=jnp.float32) + b1, 0.0)
    z = jnp.dot(h.astype(jnp.bfloat16), w2.astype(jnp.bfloat16),
                preferred_element_type=jnp.float32) + b2

    residual = z
    codes = []
    for q in range(codebooks.shape[0]):
        cb = codebooks[q].astype(jnp.float32)
        d = jnp.sum(cb * cb, -1)[None, :] - 2.0 * jnp.dot(
            residual, cb.T, preferred_element_type=jnp.float32)
        idx = jnp.argmin(d, axis=-1)
        codes.append(idx.astype(jnp.int32))
        residual = residual - cb[idx]
    codes = jnp.stack(codes, axis=0)                   # [NQ, B*T]
    return codes.reshape(codebooks.shape[0], B, T).transpose(1, 0, 2)


if __name__ == "__main__":
    # Small, deterministic config (synthetic codec; no checkpoint load).
    HOP = 64             # codec.hop_length
    SAMPLE_RATE = 44100  # unused by compute, kept for parity with the module
    B, C, L = 2, 1, 500  # 500 % 64 != 0 -> exercises the padding branch
    F = C * HOP
    H = 64               # hidden width of the projection
    D = 32               # latent dim
    NQ = 4               # n_codebooks
    K = 128              # codebook size

    key = jax.random.PRNGKey(0)
    k_audio, k_w1, k_b1, k_w2, k_b2, k_cb = jax.random.split(key, 6)

    audio = jax.random.normal(k_audio, (B, C, L), dtype=jnp.float32)
    w1 = 0.1 * jax.random.normal(k_w1, (F, H), dtype=jnp.float32)
    b1 = 0.1 * jax.random.normal(k_b1, (1, H), dtype=jnp.float32)
    w2 = 0.1 * jax.random.normal(k_w2, (H, D), dtype=jnp.float32)
    b2 = 0.1 * jax.random.normal(k_b2, (1, D), dtype=jnp.float32)
    codebooks = jax.random.normal(k_cb, (NQ, K, D), dtype=jnp.float32)

    codes = vampnet_encode(audio, w1, b1, w2, b2, codebooks,
                           hop_length=HOP, row_tile=256)
    codes = jax.block_until_ready(codes)

    expected_T = (L + (HOP - L % HOP) % HOP) // HOP
    assert codes.shape == (B, NQ, expected_T), codes.shape
    assert codes.dtype == jnp.int32
    assert int(codes.min()) >= 0 and int(codes.max()) < K

    ref = jax.block_until_ready(
        _reference_encode(audio, w1, b1, w2, b2, codebooks, HOP))
    match = float(jnp.mean((codes == ref).astype(jnp.float32)))
    # allow rare tie/rounding flips between MXU and reference matmuls
    assert match >= 0.98, f"code match fraction too low: {match}"

    # TODO(synk): the real DAC codec uses a deep strided-conv stack + learned
    # RVQ; this synthetic single-frame projection reproduces the wrapper's
    # pad/encode/codes contract, not the pretrained weights.
    print("KERNEL_OK")
</pallas_src>

<mosaic_0001>
module attributes {stable_mosaic.version = 11 : i64} {
  func.func @_encoder_rvq_kernel(%arg0: i32, %arg1: memref<256x64xbf16, #tpu.memory_space<vmem>>, %arg2: memref<64x64xbf16, #tpu.memory_space<vmem>>, %arg3: memref<1x64xf32, #tpu.memory_space<vmem>>, %arg4: memref<64x32xbf16, #tpu.memory_space<vmem>>, %arg5: memref<1x32xf32, #tpu.memory_space<vmem>>, %arg6: memref<4x128x32xf32, #tpu.memory_space<vmem>>, %arg7: memref<4x32x128xf32, #tpu.memory_space<vmem>>, %arg8: memref<4x128xf32, #tpu.memory_space<vmem>>, %arg9: memref<4x256xi32, #tpu.memory_space<vmem>>) attributes {dimension_semantics = [#tpu.dimension_semantics<parallel>], iteration_bounds = array<i64: 1>, scalar_prefetch = 0 : i64, scratch_operands = 0 : i64, tpu.core_type = #tpu.core_type<tc>, window_params = [{transform_indices = @transform_0, window_bounds = array<i64: 256, 64>}, {pipeline_mode = #tpu.pipeline_mode<synchronous>, transform_indices = @transform_1, window_bounds = array<i64: 64, 64>}, {pipeline_mode = #tpu.pipeline_mode<synchronous>, transform_indices = @transform_2, window_bounds = array<i64: 1, 64>}, {pipeline_mode = #tpu.pipeline_mode<synchronous>, transform_indices = @transform_3, window_bounds = array<i64: 64, 32>}, {pipeline_mode = #tpu.pipeline_mode<synchronous>, transform_indices = @transform_4, window_bounds = array<i64: 1, 32>}, {pipeline_mode = #tpu.pipeline_mode<synchronous>, transform_indices = @transform_5, window_bounds = array<i64: 4, 128, 32>}, {pipeline_mode = #tpu.pipeline_mode<synchronous>, transform_indices = @transform_6, window_bounds = array<i64: 4, 32, 128>}, {pipeline_mode = #tpu.pipeline_mode<synchronous>, transform_indices = @transform_7, window_bounds = array<i64: 4, 128>}, {transform_indices = @transform_8, window_bounds = array<i64: 4, 256>}]} {
    %c0 = arith.constant 0 : index
    %c0_0 = arith.constant 0 : index
    %0 = vector.load %arg1[%c0, %c0_0] : memref<256x64xbf16, #tpu.memory_space<vmem>>, vector<256x64xbf16>
    %c0_1 = arith.constant 0 : index
    %c0_2 = arith.constant 0 : index
    %1 = vector.load %arg2[%c0_1, %c0_2] : memref<64x64xbf16, #tpu.memory_space<vmem>>, vector<64x64xbf16>
    %cst = arith.constant dense<0.000000e+00> : vector<256x64xf32>
    %2 = tpu.matmul %0, %1, %cst {dimension_numbers = #tpu.dot_dimension_numbers<[1], [0], [0], [1], [0, 0, 1, 1], [], []>} : vector<256x64xbf16>, vector<64x64xbf16>, vector<256x64xf32> -> vector<256x64xf32>
    %c0_3 = arith.constant 0 : index
    %c0_4 = arith.constant 0 : index
    %3 = vector.load %arg3[%c0_3, %c0_4] : memref<1x64xf32, #tpu.memory_space<vmem>>, vector<1x64xf32>
    %4 = vector.broadcast %3 : vector<1x64xf32> to vector<256x64xf32>
    %5 = arith.addf %2, %4 : vector<256x64xf32>
    %cst_5 = arith.constant 0.000000e+00 : f32
    %6 = vector.broadcast %cst_5 : f32 to vector<256x64xf32>
    %7 = arith.maximumf %5, %6 : vector<256x64xf32>
    %8 = arith.truncf %7 : vector<256x64xf32> to vector<256x64xbf16>
    %c0_6 = arith.constant 0 : index
    %c0_7 = arith.constant 0 : index
    %9 = vector.load %arg4[%c0_6, %c0_7] : memref<64x32xbf16, #tpu.memory_space<vmem>>, vector<64x32xbf16>
    %cst_8 = arith.constant dense<0.000000e+00> : vector<256x32xf32>
    %10 = tpu.matmul %8, %9, %cst_8 {dimension_numbers = #tpu.dot_dimension_numbers<[1], [0], [0], [1], [0, 0, 1, 1], [], []>} : vector<256x64xbf16>, vector<64x32xbf16>, vector<256x32xf32> -> vector<256x32xf32>
    %c0_9 = arith.constant 0 : index
    %c0_10 = arith.constant 0 : index
    %11 = vector.load %arg5[%c0_9, %c0_10] : memref<1x32xf32, #tpu.memory_space<vmem>>, vector<1x32xf32>
    %12 = vector.broadcast %11 : vector<1x32xf32> to vector<256x32xf32>
    %13 = arith.addf %10, %12 : vector<256x32xf32>
    %c0_11 = arith.constant 0 : index
    %c0_12 = arith.constant 0 : index
    %14 = vector.load %arg8[%c0_11, %c0_12] : memref<4x128xf32, #tpu.memory_space<vmem>>, vector<4x128xf32>
    %15 = tpu.iota {dimensions = array<i32: 1>} : vector<256x4xi32>
    %c0_i32 = arith.constant 0 : i32
    %16 = vector.broadcast %c0_i32 : i32 to vector<256x4xi32>
    %c0_13 = arith.constant 0 : index
    %c0_14 = arith.constant 0 : index
    %c0_15 = arith.constant 0 : index
    %17 = vector.load %arg7[%c0_13, %c0_14, %c0_15] : memref<4x32x128xf32, #tpu.memory_space<vmem>>, vector<1x32x128xf32>
    %18 = vector.shape_cast %17 : vector<1x32x128xf32> to vector<32x128xf32>
    %cst_16 = arith.constant dense<0.000000e+00> : vector<256x128xf32>
    %19 = tpu.matmul %13, %18, %cst_16 {dimension_numbers = #tpu.dot_dimension_numbers<[1], [0], [0], [1], [0, 0, 1, 1], [], []>} : vector<256x32xf32>, vector<32x128xf32>, vector<256x128xf32> -> vector<256x128xf32>
    %20 = vector.extract_strided_slice %14 {offsets = [0, 0], sizes = [1, 128], strides = [1, 1]} : vector<4x128xf32> to vector<1x128xf32>
    %cst_17 = arith.constant 2.000000e+00 : f32
    %21 = vector.broadcast %cst_17 : f32 to vector<256x128xf32>
    %22 = arith.mulf %21, %19 : vector<256x128xf32>
    %23 = vector.broadcast %20 : vector<1x128xf32> to vector<256x128xf32>
    %24 = arith.subf %23, %22 : vector<256x128xf32>
    %25 = tpu.iota {dimensions = array<i32: 1>} : vector<256x128xi32>
    %cst_18 = arith.constant dense<0x7F800000> : vector<256xf32>
    %26 = vector.multi_reduction <minimumf>, %24, %cst_18 [1] : vector<256x128xf32> to vector<256xf32>
    %27 = vector.shape_cast %26 : vector<256xf32> to vector<256x1xf32>
    %28 = vector.broadcast %27 : vector<256x1xf32> to vector<256x128xf32>
    %29 = arith.cmpf ole, %24, %28 : vector<256x128xf32>
    %c128_i32 = arith.constant 128 : i32
    %30 = vector.broadcast %c128_i32 : i32 to vector<256x128xi32>
    %31 = arith.select %29, %25, %30 : vector<256x128xi1>, vector<256x128xi32>
    %cst_19 = arith.constant dense<2147483647> : vector<256xi32>
    %32 = vector.multi_reduction <minsi>, %31, %cst_19 [1] : vector<256x128xi32> to vector<256xi32>
    %33 = vector.shape_cast %32 : vector<256xi32> to vector<256x1xi32>
    %34 = vector.broadcast %33 : vector<256x1xi32> to vector<256x128xi32>
    %35 = arith.cmpi eq, %25, %34 : vector<256x128xi32>
    %36 = arith.extui %35 : vector<256x128xi1> to vector<256x128xi32>
    %37 = arith.sitofp %36 : vector<256x128xi32> to vector<256x128xf32>
    %c0_20 = arith.constant 0 : index
    %c0_21 = arith.constant 0 : index
    %c0_22 = arith.constant 0 : index
    %38 = vector.load %arg6[%c0_20, %c0_21, %c0_22] : memref<4x128x32xf32, #tpu.memory_space<vmem>>, vector<1x128x32xf32>
    %39 = vector.shape_cast %38 : vector<1x128x32xf32> to vector<128x32xf32>
    %cst_23 = arith.constant dense<0.000000e+00> : vector<256x32xf32>
    %40 = tpu.matmul %37, %39, %cst_23 {dimension_numbers = #tpu.dot_dimension_numbers<[1], [0], [0], [1], [0, 0, 1, 1], [], []>} : vector<256x128xf32>, vector<128x32xf32>, vector<256x32xf32> -> vector<256x32xf32>
    %41 = arith.subf %13, %40 : vector<256x32xf32>
    %c0_i32_24 = arith.constant 0 : i32
    %42 = vector.broadcast %c0_i32_24 : i32 to vector<256x4xi32>
    %43 = arith.cmpi eq, %15, %42 : vector<256x4xi32>
    %44 = vector.shape_cast %33 : vector<256x1xi32> to vector<256x1xi32>
    %45 = vector.broadcast %44 : vector<256x1xi32> to vector<256x4xi32>
    %46 = arith.select %43, %45, %16 : vector<256x4xi1>, vector<256x4xi32>
    %c1 = arith.constant 1 : index
    %c0_25 = arith.constant 0 : index
    %c0_26 = arith.constant 0 : index
    %47 = vector.load %arg7[%c1, %c0_25, %c0_26] : memref<4x32x128xf32, #tpu.memory_space<vmem>>, vector<1x32x128xf32>
    %48 = vector.shape_cast %47 : vector<1x32x128xf32> to vector<32x128xf32>
    %cst_27 = arith.constant dense<0.000000e+00> : vector<256x128xf32>
    %49 = tpu.matmul %41, %48, %cst_27 {dimension_numbers = #tpu.dot_dimension_numbers<[1], [0], [0], [1], [0, 0, 1, 1], [], []>} : vector<256x32xf32>, vector<32x128xf32>, vector<256x128xf32> -> vector<256x128xf32>
    %50 = vector.extract_strided_slice %14 {offsets = [1, 0], sizes = [1, 128], strides = [1, 1]} : vector<4x128xf32> to vector<1x128xf32>
    %cst_28 = arith.constant 2.000000e+00 : f32
    %51 = vector.broadcast %cst_28 : f32 to vector<256x128xf32>
    %52 = arith.mulf %51, %49 : vector<256x128xf32>
    %53 = vector.broadcast %50 : vector<1x128xf32> to vector<256x128xf32>
    %54 = arith.subf %53, %52 : vector<256x128xf32>
    %55 = tpu.iota {dimensions = array<i32: 1>} : vector<256x128xi32>
    %cst_29 = arith.constant dense<0x7F800000> : vector<256xf32>
    %56 = vector.multi_reduction <minimumf>, %54, %cst_29 [1] : vector<256x128xf32> to vector<256xf32>
    %57 = vector.shape_cast %56 : vector<256xf32> to vector<256x1xf32>
    %58 = vector.broadcast %57 : vector<256x1xf32> to vector<256x128xf32>
    %59 = arith.cmpf ole, %54, %58 : vector<256x128xf32>
    %c128_i32_30 = arith.constant 128 : i32
    %60 = vector.broadcast %c128_i32_30 : i32 to vector<256x128xi32>
    %61 = arith.select %59, %55, %60 : vector<256x128xi1>, vector<256x128xi32>
    %cst_31 = arith.constant dense<2147483647> : vector<256xi32>
    %62 = vector.multi_reduction <minsi>, %61, %cst_31 [1] : vector<256x128xi32> to vector<256xi32>
    %63 = vector.shape_cast %62 : vector<256xi32> to vector<256x1xi32>
    %64 = vector.broadcast %63 : vector<256x1xi32> to vector<256x128xi32>
    %65 = arith.cmpi eq, %55, %64 : vector<256x128xi32>
    %66 = arith.extui %65 : vector<256x128xi1> to vector<256x128xi32>
    %67 = arith.sitofp %66 : vector<256x128xi32> to vector<256x128xf32>
    %c1_32 = arith.constant 1 : index
    %c0_33 = arith.constant 0 : index
    %c0_34 = arith.constant 0 : index
    %68 = vector.load %arg6[%c1_32, %c0_33, %c0_34] : memref<4x128x32xf32, #tpu.memory_space<vmem>>, vector<1x128x32xf32>
    %69 = vector.shape_cast %68 : vector<1x128x32xf32> to vector<128x32xf32>
    %cst_35 = arith.constant dense<0.000000e+00> : vector<256x32xf32>
    %70 = tpu.matmul %67, %69, %cst_35 {dimension_numbers = #tpu.dot_dimension_numbers<[1], [0], [0], [1], [0, 0, 1, 1], [], []>} : vector<256x128xf32>, vector<128x32xf32>, vector<256x32xf32> -> vector<256x32xf32>
    %71 = arith.subf %41, %70 : vector<256x32xf32>
    %c1_i32 = arith.constant 1 : i32
    %72 = vector.broadcast %c1_i32 : i32 to vector<256x4xi32>
    %73 = arith.cmpi eq, %15, %72 : vector<256x4xi32>
    %74 = vector.shape_cast %63 : vector<256x1xi32> to vector<256x1xi32>
    %75 = vector.broadcast %74 : vector<256x1xi32> to vector<256x4xi32>
    %76 = arith.select %73, %75, %46 : vector<256x4xi1>, vector<256x4xi32>
    %c2 = arith.constant 2 : index
    %c0_36 = arith.constant 0 : index
    %c0_37 = arith.constant 0 : index
    %77 = vector.load %arg7[%c2, %c0_36, %c0_37] : memref<4x32x128xf32, #tpu.memory_space<vmem>>, vector<1x32x128xf32>
    %78 = vector.shape_cast %77 : vector<1x32x128xf32> to vector<32x128xf32>
    %cst_38 = arith.constant dense<0.000000e+00> : vector<256x128xf32>
    %79 = tpu.matmul %71, %78, %cst_38 {dimension_numbers = #tpu.dot_dimension_numbers<[1], [0], [0], [1], [0, 0, 1, 1], [], []>} : vector<256x32xf32>, vector<32x128xf32>, vector<256x128xf32> -> vector<256x128xf32>
    %80 = vector.extract_strided_slice %14 {offsets = [2, 0], sizes = [1, 128], strides = [1, 1]} : vector<4x128xf32> to vector<1x128xf32>
    %cst_39 = arith.constant 2.000000e+00 : f32
    %81 = vector.broadcast %cst_39 : f32 to vector<256x128xf32>
    %82 = arith.mulf %81, %79 : vector<256x128xf32>
    %83 = vector.broadcast %80 : vector<1x128xf32> to vector<256x128xf32>
    %84 = arith.subf %83, %82 : vector<256x128xf32>
    %85 = tpu.iota {dimensions = array<i32: 1>} : vector<256x128xi32>
    %cst_40 = arith.constant dense<0x7F800000> : vector<256xf32>
    %86 = vector.multi_reduction <minimumf>, %84, %cst_40 [1] : vector<256x128xf32> to vector<256xf32>
    %87 = vector.shape_cast %86 : vector<256xf32> to vector<256x1xf32>
    %88 = vector.broadcast %87 : vector<256x1xf32> to vector<256x128xf32>
    %89 = arith.cmpf ole, %84, %88 : vector<256x128xf32>
    %c128_i32_41 = arith.constant 128 : i32
    %90 = vector.broadcast %c128_i32_41 : i32 to vector<256x128xi32>
    %91 = arith.select %89, %85, %90 : vector<256x128xi1>, vector<256x128xi32>
    %cst_42 = arith.constant dense<2147483647> : vector<256xi32>
    %92 = vector.multi_reduction <minsi>, %91, %cst_42 [1] : vector<256x128xi32> to vector<256xi32>
    %93 = vector.shape_cast %92 : vector<256xi32> to vector<256x1xi32>
    %94 = vector.broadcast %93 : vector<256x1xi32> to vector<256x128xi32>
    %95 = arith.cmpi eq, %85, %94 : vector<256x128xi32>
    %96 = arith.extui %95 : vector<256x128xi1> to vector<256x128xi32>
    %97 = arith.sitofp %96 : vector<256x128xi32> to vector<256x128xf32>
    %c2_43 = arith.constant 2 : index
    %c0_44 = arith.constant 0 : index
    %c0_45 = arith.constant 0 : index
    %98 = vector.load %arg6[%c2_43, %c0_44, %c0_45] : memref<4x128x32xf32, #tpu.memory_space<vmem>>, vector<1x128x32xf32>
    %99 = vector.shape_cast %98 : vector<1x128x32xf32> to vector<128x32xf32>
    %cst_46 = arith.constant dense<0.000000e+00> : vector<256x32xf32>
    %100 = tpu.matmul %97, %99, %cst_46 {dimension_numbers = #tpu.dot_dimension_numbers<[1], [0], [0], [1], [0, 0, 1, 1], [], []>} : vector<256x128xf32>, vector<128x32xf32>, vector<256x32xf32> -> vector<256x32xf32>
    %101 = arith.subf %71, %100 : vector<256x32xf32>
    %c2_i32 = arith.constant 2 : i32
    %102 = vector.broadcast %c2_i32 : i32 to vector<256x4xi32>
    %103 = arith.cmpi eq, %15, %102 : vector<256x4xi32>
    %104 = vector.shape_cast %93 : vector<256x1xi32> to vector<256x1xi32>
    %105 = vector.broadcast %104 : vector<256x1xi32> to vector<256x4xi32>
    %106 = arith.select %103, %105, %76 : vector<256x4xi1>, vector<256x4xi32>
    %c3 = arith.constant 3 : index
    %c0_47 = arith.constant 0 : index
    %c0_48 = arith.constant 0 : index
    %107 = vector.load %arg7[%c3, %c0_47, %c0_48] : memref<4x32x128xf32, #tpu.memory_space<vmem>>, vector<1x32x128xf32>
    %108 = vector.shape_cast %107 : vector<1x32x128xf32> to vector<32x128xf32>
    %cst_49 = arith.constant dense<0.000000e+00> : vector<256x128xf32>
    %109 = tpu.matmul %101, %108, %cst_49 {dimension_numbers = #tpu.dot_dimension_numbers<[1], [0], [0], [1], [0, 0, 1, 1], [], []>} : vector<256x32xf32>, vector<32x128xf32>, vector<256x128xf32> -> vector<256x128xf32>
    %110 = vector.extract_strided_slice %14 {offsets = [3, 0], sizes = [1, 128], strides = [1, 1]} : vector<4x128xf32> to vector<1x128xf32>
    %cst_50 = arith.constant 2.000000e+00 : f32
    %111 = vector.broadcast %cst_50 : f32 to vector<256x128xf32>
    %112 = arith.mulf %111, %109 : vector<256x128xf32>
    %113 = vector.broadcast %110 : vector<1x128xf32> to vector<256x128xf32>
    %114 = arith.subf %113, %112 : vector<256x128xf32>
    %115 = tpu.iota {dimensions = array<i32: 1>} : vector<256x128xi32>
    %cst_51 = arith.constant dense<0x7F800000> : vector<256xf32>
    %116 = vector.multi_reduction <minimumf>, %114, %cst_51 [1] : vector<256x128xf32> to vector<256xf32>
    %117 = vector.shape_cast %116 : vector<256xf32> to vector<256x1xf32>
    %118 = vector.broadcast %117 : vector<256x1xf32> to vector<256x128xf32>
    %119 = arith.cmpf ole, %114, %118 : vector<256x128xf32>
    %c128_i32_52 = arith.constant 128 : i32
    %120 = vector.broadcast %c128_i32_52 : i32 to vector<256x128xi32>
    %121 = arith.select %119, %115, %120 : vector<256x128xi1>, vector<256x128xi32>
    %cst_53 = arith.constant dense<2147483647> : vector<256xi32>
    %122 = vector.multi_reduction <minsi>, %121, %cst_53 [1] : vector<256x128xi32> to vector<256xi32>
    %123 = vector.shape_cast %122 : vector<256xi32> to vector<256x1xi32>
    %c3_i32 = arith.constant 3 : i32
    %124 = vector.broadcast %c3_i32 : i32 to vector<256x4xi32>
    %125 = arith.cmpi eq, %15, %124 : vector<256x4xi32>
    %126 = vector.shape_cast %123 : vector<256x1xi32> to vector<256x1xi32>
    %127 = vector.broadcast %126 : vector<256x1xi32> to vector<256x4xi32>
    %128 = arith.select %125, %127, %106 : vector<256x4xi1>, vector<256x4xi32>
    %129 = tpu.transpose %128, [1, 0] : vector<256x4xi32> -> vector<4x256xi32>
    %c0_54 = arith.constant 0 : index
    %c0_55 = arith.constant 0 : index
    %130 = vector.load %arg9[%c0_54, %c0_55] : memref<4x256xi32, #tpu.memory_space<vmem>>, vector<4x256xi32>
    tpu.vector_store %arg9[%c0_54, %c0_55], %129 {strides = array<i32>} : memref<4x256xi32, #tpu.memory_space<vmem>>, vector<4x256xi32>,
    return
  }
  func.func @transform_0(%arg0: i32) -> (i32, i32) {
    %c0_i32 = arith.constant 0 : i32
    %c0_i32_0 = arith.constant 0 : i32
    return %arg0, %c0_i32 : i32, i32
  }
  func.func @transform_1(%arg0: i32) -> (i32, i32) {
    %c0_i32 = arith.constant 0 : i32
    %c0_i32_0 = arith.constant 0 : i32
    %c0_i32_1 = arith.constant 0 : i32
    return %c0_i32, %c0_i32_0 : i32, i32
  }
  func.func @transform_2(%arg0: i32) -> (i32, i32) {
    %c0_i32 = arith.constant 0 : i32
    %c0_i32_0 = arith.constant 0 : i32
    %c0_i32_1 = arith.constant 0 : i32
    return %c0_i32, %c0_i32_0 : i32, i32
  }
  func.func @transform_3(%arg0: i32) -> (i32, i32) {
    %c0_i32 = arith.constant 0 : i32
    %c0_i32_0 = arith.constant 0 : i32
    %c0_i32_1 = arith.constant 0 : i32
    return %c0_i32, %c0_i32_0 : i32, i32
  }
  func.func @transform_4(%arg0: i32) -> (i32, i32) {
    %c0_i32 = arith.constant 0 : i32
    %c0_i32_0 = arith.constant 0 : i32
    %c0_i32_1 = arith.constant 0 : i32
    return %c0_i32, %c0_i32_0 : i32, i32
  }
  func.func @transform_5(%arg0: i32) -> (i32, i32, i32) {
    %c0_i32 = arith.constant 0 : i32
    %c0_i32_0 = arith.constant 0 : i32
    %c0_i32_1 = arith.constant 0 : i32
    %c0_i32_2 = arith.constant 0 : i32
    return %c0_i32, %c0_i32_0, %c0_i32_1 : i32, i32, i32
  }
  func.func @transform_6(%arg0: i32) -> (i32, i32, i32) {
    %c0_i32 = arith.constant 0 : i32
    %c0_i32_0 = arith.constant 0 : i32
    %c0_i32_1 = arith.constant 0 : i32
    %c0_i32_2 = arith.constant 0 : i32
    return %c0_i32, %c0_i32_0, %c0_i32_1 : i32, i32, i32
  }
  func.func @transform_7(%arg0: i32) -> (i32, i32) {
    %c0_i32 = arith.constant 0 : i32
    %c0_i32_0 = arith.constant 0 : i32
    %c0_i32_1 = arith.constant 0 : i32
    return %c0_i32, %c0_i32_0 : i32, i32
  }
  func.func @transform_8(%arg0: i32) -> (i32, i32) {
    %c0_i32 = arith.constant 0 : i32
    %c0_i32_0 = arith.constant 0 : i32
    return %c0_i32, %arg0 : i32, i32
  }
}

</mosaic_0001>

<llo_original>
// kernel: vampnet_encode.1
$region0: #{vampnet_encode.1}
  #allocation0 [shape = 'u32[]', space=smem, size = 0x4, offset = 0x4, fixed_abs, tag = 'smem constant byte address 0x4 - core index']
  #allocation1 [shape = 'u32[144,128]{1,0:T(1,128)}', space=vmem, size = 0x12000, scoped, tag = 'internal scratch']
  %s0 = inlined_call_operand.vmem [shape: bf16[256,64], index: 0, kind: input, shape index: {}]
  %s1 = inlined_call_operand.vmem [shape: bf16[64,64], index: 1, kind: input, shape index: {}]
  %s2 = inlined_call_operand.vmem [shape: f32[1,64], index: 2, kind: input, shape index: {}]
  %s3 = inlined_call_operand.vmem [shape: bf16[64,32], index: 3, kind: input, shape index: {}]
  %s4 = inlined_call_operand.vmem [shape: f32[1,32], index: 4, kind: input, shape index: {}]
  %s5 = inlined_call_operand.vmem [shape: f32[4,128,32], index: 5, kind: input, shape index: {}]
  %s6 = inlined_call_operand.vmem [shape: f32[4,32,128], index: 6, kind: input, shape index: {}]
  %s7 = inlined_call_operand.vmem [shape: f32[4,128], index: 7, kind: input, shape index: {}]
  %s8 = inlined_call_operand.vmem [shape: s32[4,256], index: 8, kind: output, shape index: {}]
  %s9 = sld [smem:[#allocation0]]
  $region42: #{vampnet_encode.1} parent=0
    _
  %s11 = ssub.s32 1, %s9
  %s12 = scalar_select 0, %s11, %s9
  // Predicated region
  $region2: #{vampnet_encode.1} parent=0 // pred_check
    _
  $region3: #{vampnet_encode.1} parent=0 // pred_check_branch
    %14 = sbr.rel (0) target = $region5
  $region4: #{vampnet_encode.1} parent=0 // pred_region
    _
  $region5: #{vampnet_encode.1} parent=0 // pred_fallthru
    _
  // Predicated region
  $region6: #{vampnet_encode.1} parent=0 // pred_check
    _
  $region7: #{vampnet_encode.1} parent=0 // pred_check_branch
    %16 = sbr.rel (0) target = $region9
  $region8: #{vampnet_encode.1} parent=0 // pred_region
    _
  $region9: #{vampnet_encode.1} parent=0 // pred_fallthru
    _
  // Predicated region
  $region10: #{vampnet_encode.1} parent=0 // pred_check
    _
  $region11: #{vampnet_encode.1} parent=0 // pred_check_branch
    %18 = sbr.rel (0) target = $region13
  $region12: #{vampnet_encode.1} parent=0 // pred_region
    _
  $region13: #{vampnet_encode.1} parent=0 // pred_fallthru
    _
  // Predicated region
  $region14: #{vampnet_encode.1} parent=0 // pred_check
    _
  $region15: #{vampnet_encode.1} parent=0 // pred_check_branch
    %20 = sbr.rel (0) target = $region17
  $region16: #{vampnet_encode.1} parent=0 // pred_region
    _
  $region17: #{vampnet_encode.1} parent=0 // pred_fallthru
    _
  // Predicated region
  $region18: #{vampnet_encode.1} parent=0 // pred_check
    _
  $region19: #{vampnet_encode.1} parent=0 // pred_check_branch
    %22 = sbr.rel (0) target = $region21
  $region20: #{vampnet_encode.1} parent=0 // pred_region
    _
  $region21: #{vampnet_encode.1} parent=0 // pred_fallthru
    _
  // Predicated region
  $region22: #{vampnet_encode.1} parent=0 // pred_check
    _
  $region23: #{vampnet_encode.1} parent=0 // pred_check_branch
    %24 = sbr.rel (0) target = $region25
  $region24: #{vampnet_encode.1} parent=0 // pred_region
    _
  $region25: #{vampnet_encode.1} parent=0 // pred_fallthru
    _
  // Predicated region
  $region26: #{vampnet_encode.1} parent=0 // pred_check
    _
  $region27: #{vampnet_encode.1} parent=0 // pred_check_branch
    %26 = sbr.rel (0) target = $region29
  $region28: #{vampnet_encode.1} parent=0 // pred_region
    _
  $region29: #{vampnet_encode.1} parent=0 // pred_fallthru
    _
  // Predicated region
  $region30: #{vampnet_encode.1} parent=0 // pred_check
    _
  $region31: #{vampnet_encode.1} parent=0 // pred_check_branch
    %28 = sbr.rel (0) target = $region33
  $region32: #{vampnet_encode.1} parent=0 // pred_region
    _
  $region33: #{vampnet_encode.1} parent=0 // pred_fallthru
    _
  %v30 = vld [vmem:[%s0] sm:$0xf]
  %v31 = vld [vmem:[%s0 + $0x4] sm:$0xf]
  %v32 = vld [vmem:[%s0 + $0x8] sm:$0xf]
  %v33 = vld [vmem:[%s0 + $0xc] sm:$0xf]
  %v34 = vld [vmem:[%s0 + $0x10] sm:$0xf]
  %v35 = vld [vmem:[%s0 + $0x14] sm:$0xf]
  %v36 = vld [vmem:[%s0 + $0x18] sm:$0xf]
  %v37 = vld [vmem:[%s0 + $0x1c] sm:$0xf]
  %v38 = vld [vmem:[%s0 + $0x20] sm:$0xf]
  %v39 = vld [vmem:[%s0 + $0x24] sm:$0xf]
  %v40 = vld [vmem:[%s0 + $0x28] sm:$0xf]
  %v41 = vld [vmem:[%s0 + $0x2c] sm:$0xf]
  %v42 = vld [vmem:[%s0 + $0x30] sm:$0xf]
  %v43 = vld [vmem:[%s0 + $0x34] sm:$0xf]
  %v44 = vld [vmem:[%s0 + $0x38] sm:$0xf]
  %v45 = vld [vmem:[%s0 + $0x3c] sm:$0xf]
  %v46 = vld [vmem:[%s0 + $0x40] sm:$0xf]
  %v47 = vld [vmem:[%s0 + $0x44] sm:$0xf]
  %v48 = vld [vmem:[%s0 + $0x48] sm:$0xf]
  %v49 = vld [vmem:[%s0 + $0x4c] sm:$0xf]
  %v50 = vld [vmem:[%s0 + $0x50] sm:$0xf]
  %v51 = vld [vmem:[%s0 + $0x54] sm:$0xf]
  %v52 = vld [vmem:[%s0 + $0x58] sm:$0xf]
  %v53 = vld [vmem:[%s0 + $0x5c] sm:$0xf]
  %v54 = vld [vmem:[%s0 + $0x60] sm:$0xf]
  %v55 = vld [vmem:[%s0 + $0x64] sm:$0xf]
  %v56 = vld [vmem:[%s0 + $0x68] sm:$0xf]
  %v57 = vld [vmem:[%s0 + $0x6c] sm:$0xf]
  %v58 = vld [vmem:[%s0 + $0x70] sm:$0xf]
  %v59 = vld [vmem:[%s0 + $0x74] sm:$0xf]
  %v60 = vld [vmem:[%s0 + $0x78] sm:$0xf]
  %v61 = vld [vmem:[%s0 + $0x7c] sm:$0xf]
  %v62 = vld [vmem:[%s1] sm:$0xf]
  %v63 = vld [vmem:[%s1 + $0x4] sm:$0xf]
  %v64 = vld [vmem:[%s1 + $0x8] sm:$0xf]
  %v65 = vld [vmem:[%s1 + $0xc] sm:$0xf]
  %v66 = vld [vmem:[%s1 + $0x10] sm:$0xf]
  %v67 = vld [vmem:[%s1 + $0x14] sm:$0xf]
  %v68 = vld [vmem:[%s1 + $0x18] sm:$0xf]
  %v69 = vld [vmem:[%s1 + $0x1c] sm:$0xf]
  %v70 = vld [vmem:[%s2] sm:$0x1]
  %v72 = vlaneseq
  %v73 = vshrl.u32 %v72, 7
  %v74 = vsub.s32 0, %v73
  %v75 = vrot.slane %v70, %v74
  %v109 = vunpack.c.l.b16 %v30
  %v110 = vunpack.c.l.b16 %v31
  %v111 = vunpack.c.l.b16 %v32
  %v112 = vunpack.c.l.b16 %v33
  %v113 = vunpack.c.l.b16 %v34
  %v114 = vunpack.c.l.b16 %v35
  %v115 = vunpack.c.l.b16 %v36
  %v116 = vunpack.c.l.b16 %v37
  %v117 = vunpack.c.l.b16 %v38
  %v118 = vunpack.c.l.b16 %v39
  %v119 = vunpack.c.l.b16 %v40
  %v120 = vunpack.c.l.b16 %v41
  %v121 = vunpack.c.l.b16 %v42
  %v122 = vunpack.c.l.b16 %v43
  %v123 = vunpack.c.l.b16 %v44
  %v124 = vunpack.c.l.b16 %v45
  %v125 = vunpack.c.l.b16 %v46
  %v126 = vunpack.c.l.b16 %v47
  %v127 = vunpack.c.l.b16 %v48
  %v128 = vunpack.c.l.b16 %v49
  %v129 = vunpack.c.l.b16 %v50
  %v130 = vunpack.c.l.b16 %v51
  %v131 = vunpack.c.l.b16 %v52
  %v132 = vunpack.c.l.b16 %v53
  %v133 = vunpack.c.l.b16 %v54
  %v134 = vunpack.c.l.b16 %v55
  %v135 = vunpack.c.l.b16 %v56
  %v136 = vunpack.c.l.b16 %v57
  %v137 = vunpack.c.l.b16 %v58
  %v138 = vunpack.c.l.b16 %v59
  %v139 = vunpack.c.l.b16 %v60
  %v140 = vunpack.c.l.b16 %v61
  %v141 = vpack.c.b16 %v110, %v109
  %v142 = vpack.c.b16 %v112, %v111
  %v143 = vpack.c.b16 %v114, %v113
  %v144 = vpack.c.b16 %v116, %v115
  %v145 = vpack.c.b16 %v118, %v117
  %v146 = vpack.c.b16 %v120, %v119
  %v147 = vpack.c.b16 %v122, %v121
  %v148 = vpack.c.b16 %v124, %v123
  %v149 = vpack.c.b16 %v126, %v125
  %v150 = vpack.c.b16 %v128, %v127
  %v151 = vpack.c.b16 %v130, %v129
  %v152 = vpack.c.b16 %v132, %v131
  %v153 = vpack.c.b16 %v134, %v133
  %v154 = vpack.c.b16 %v136, %v135
  %v155 = vpack.c.b16 %v138, %v137
  %v156 = vpack.c.b16 %v140, %v139
  %v165 = vunpack.c.l.b16 %v62
  %v166 = vunpack.c.l.b16 %v63
  %v167 = vunpack.c.l.b16 %v64
  %v168 = vunpack.c.l.b16 %v65
  %v169 = vunpack.c.l.b16 %v66
  %v170 = vunpack.c.l.b16 %v67
  %v171 = vunpack.c.l.b16 %v68
  %v172 = vunpack.c.l.b16 %v69
  %v173 = vpack.c.b16 %v166, %v165
  %v174 = vpack.c.b16 %v168, %v167
  %v175 = vpack.c.b16 %v170, %v169
  %v176 = vpack.c.b16 %v172, %v171
  %vm181 = vcmask 523264
  %v183 = vsel %vm181, %v141, 0
  %v186 = vsel %vm181, %v142, 0
  %v189 = vsel %vm181, %v143, 0
  %v192 = vsel %vm181, %v144, 0
  %v195 = vsel %vm181, %v145, 0
  %v198 = vsel %vm181, %v146, 0
  %v201 = vsel %vm181, %v147, 0
  %v204 = vsel %vm181, %v148, 0
  %v207 = vsel %vm181, %v149, 0
  %v210 = vsel %vm181, %v150, 0
  %v213 = vsel %vm181, %v151, 0
  %v216 = vsel %vm181, %v152, 0
  %v219 = vsel %vm181, %v153, 0
  %v222 = vsel %vm181, %v154, 0
  %v225 = vsel %vm181, %v155, 0
  %v228 = vsel %vm181, %v156, 0
  %230 = vmatprep.subr.bf16.mxu0 0
  %231 = vmatpush1.bf16.msra.mxu0 0
  %232 = vmatprep.subr.bf16.mxu0 0
  %233 = vmatpush1.bf16.msra.mxu0 0
  %234 = vmatprep.subr.bf16.mxu0 0
  %235 = vmatpush1.bf16.msra.mxu0 0
  %236 = vmatprep.subr.bf16.mxu0 0
  %237 = vmatpush1.bf16.msra.mxu0 0
  %238 = vmatprep.subr.bf16.mxu0 0
  %239 = vmatpush1.bf16.msra.mxu0 %v176
  %240 = vmatprep.subr.bf16.mxu0 0
  %241 = vmatpush1.bf16.msra.mxu0 %v175
  %242 = vmatprep.subr.bf16.mxu0 0
  %243 = vmatpush1.bf16.msra.mxu0 %v174
  %244 = vmatprep.subr.bf16.mxu0 0
  %245 = vmatpush1.bf16.msra.mxu0 %v173
  %246 = vmatprep.subr.bf16.mxu0 0
  %247 = vmatpush2.bf16.msra.mxu0 0
  %248 = vmatprep.subr.bf16.mxu0 0
  %249 = vmatpush2.bf16.msra.mxu0 0
  %250 = vmatprep.subr.bf16.mxu0 0
  %251 = vmatpush2.bf16.msra.mxu0 0
  %252 = vmatprep.subr.bf16.mxu0 0
  %253 = vmatpush2.bf16.msra.mxu0 0
  %254 = vmatprep.subr.bf16.mxu0 0
  %255 = vmatpush2.bf16.msra.mxu0 0
  %256 = vmatprep.subr.bf16.mxu0 0
  %257 = vmatpush2.bf16.msra.mxu0 0
  %258 = vmatprep.subr.bf16.mxu0 0
  %259 = vmatpush2.bf16.msra.mxu0 0
  %260 = vmatprep.subr.bf16.mxu0 0
  %261 = vmatpush2.bf16.msra.mxu0 0
  %262 = vmatprep.mubr.bf16.mxu0 0
  %263 = vmatmul.mubr.bf16.gmra.mxu0 %v183
  %v264 = vpop.f32.mrf.mxu0
  %v265 = vadd.f32 %v75, %v264
  %v266 = vpop.f32.mrf.mxu0
  %v267 = vpop.f32.mrf.mxu0
  %v268 = vadd.f32 %v75, %v267
  %v269 = vpop.f32.mrf.mxu0
  %270 = vmatprep.mubr.bf16.mxu0 0
  %271 = vmatmul.mubr.bf16.gmra.mxu0 %v186
  %v272 = vpop.f32.mrf.mxu0
  %v273 = vadd.f32 %v75, %v272
  %v274 = vpop.f32.mrf.mxu0
  %v275 = vpop.f32.mrf.mxu0
  %v276 = vadd.f32 %v75, %v275
  %v277 = vpop.f32.mrf.mxu0
  %278 = vmatprep.mubr.bf16.mxu0 0
  %279 = vmatmul.mubr.bf16.gmra.mxu0 %v189
  %v280 = vpop.f32.mrf.mxu0
  %v281 = vadd.f32 %v75, %v280
  %v282 = vpop.f32.mrf.mxu0
  %v283 = vpop.f32.mrf.mxu0
  %v284 = vadd.f32 %v75, %v283
  %v285 = vpop.f32.mrf.mxu0
  %286 = vmatprep.mubr.bf16.mxu0 0
  %287 = vmatmul.mubr.bf16.gmra.mxu0 %v192
  %v288 = vpop.f32.mrf.mxu0
  %v289 = vadd.f32 %v75, %v288
  %v290 = vpop.f32.mrf.mxu0
  %v291 = vpop.f32.mrf.mxu0
  %v292 = vadd.f32 %v75, %v291
  %v293 = vpop.f32.mrf.mxu0
  %294 = vmatprep.mubr.bf16.mxu0 0
  %295 = vmatmul.mubr.bf16.gmra.mxu0 %v195
  %v296 = vpop.f32.mrf.mxu0
  %v297 = vadd.f32 %v75, %v296
  %v298 = vpop.f32.mrf.mxu0
  %v299 = vpop.f32.mrf.mxu0
  %v300 = vadd.f32 %v75, %v299
  %v301 = vpop.f32.mrf.mxu0
  %302 = vmatprep.mubr.bf16.mxu0 0
  %303 = vmatmul.mubr.bf16.gmra.mxu0 %v198
  %v304 = vpop.f32.mrf.mxu0
  %v305 = vadd.f32 %v75, %v304
  %v306 = vpop.f32.mrf.mxu0
  %v307 = vpop.f32.mrf.mxu0
  %v308 = vadd.f32 %v75, %v307
  %v309 = vpop.f32.mrf.mxu0
  %310 = vmatprep.mubr.bf16.mxu0 0
  %311 = vmatmul.mubr.bf16.gmra.mxu0 %v201
  %v312 = vpop.f32.mrf.mxu0
  %v313 = vadd.f32 %v75, %v312
  %v314 = vpop.f32.mrf.mxu0
  %v315 = vpop.f32.mrf.mxu0
  %v316 = vadd.f32 %v75, %v315
  %v317 = vpop.f32.mrf.mxu0
  %318 = vmatprep.mubr.bf16.mxu0 0
  %319 = vmatmul.mubr.bf16.gmra.mxu0 %v204
  %v320 = vpop.f32.mrf.mxu0
  %v321 = vadd.f32 %v75, %v320
  %v322 = vpop.f32.mrf.mxu0
  %v323 = vpop.f32.mrf.mxu0
  %v324 = vadd.f32 %v75, %v323
  %v325 = vpop.f32.mrf.mxu0
  %326 = vmatprep.mubr.bf16.mxu0 0
  %327 = vmatmul.mubr.bf16.gmra.mxu0 %v207
  %v328 = vpop.f32.mrf.mxu0
  %v329 = vadd.f32 %v75, %v328
  %v330 = vpop.f32.mrf.mxu0
  %v331 = vpop.f32.mrf.mxu0
  %v332 = vadd.f32 %v75, %v331
  %v333 = vpop.f32.mrf.mxu0
  %334 = vmatprep.mubr.bf16.mxu0 0
  %335 = vmatmul.mubr.bf16.gmra.mxu0 %v210
  %v336 = vpop.f32.mrf.mxu0
  %v337 = vadd.f32 %v75, %v336
  %v338 = vpop.f32.mrf.mxu0
  %v339 = vpop.f32.mrf.mxu0
  %v340 = vadd.f32 %v75, %v339
  %v341 = vpop.f32.mrf.mxu0
  %342 = vmatprep.mubr.bf16.mxu0 0
  %343 = vmatmul.mubr.bf16.gmra.mxu0 %v213
  %v344 = vpop.f32.mrf.mxu0
  %v345 = vadd.f32 %v75, %v344
  %v346 = vpop.f32.mrf.mxu0
  %v347 = vpop.f32.mrf.mxu0
  %v348 = vadd.f32 %v75, %v347
  %v349 = vpop.f32.mrf.mxu0
  %350 = vmatprep.mubr.bf16.mxu0 0
  %351 = vmatmul.mubr.bf16.gmra.mxu0 %v216
  %v352 = vpop.f32.mrf.mxu0
  %v353 = vadd.f32 %v75, %v352
  %v354 = vpop.f32.mrf.mxu0
  %v355 = vpop.f32.mrf.mxu0
  %v356 = vadd.f32 %v75, %v355
  %v357 = vpop.f32.mrf.mxu0
  %358 = vmatprep.mubr.bf16.mxu0 0
  %359 = vmatmul.mubr.bf16.gmra.mxu0 %v219
  %v360 = vpop.f32.mrf.mxu0
  %v361 = vadd.f32 %v75, %v360
  %v362 = vpop.f32.mrf.mxu0
  %v363 = vpop.f32.mrf.mxu0
  %v364 = vadd.f32 %v75, %v363
  %v365 = vpop.f32.mrf.mxu0
  %366 = vmatprep.mubr.bf16.mxu0 0
  %367 = vmatmul.mubr.bf16.gmra.mxu0 %v222
  %v368 = vpop.f32.mrf.mxu0
  %v369 = vadd.f32 %v75, %v368
  %v370 = vpop.f32.mrf.mxu0
  %v371 = vpop.f32.mrf.mxu0
  %v372 = vadd.f32 %v75, %v371
  %v373 = vpop.f32.mrf.mxu0
  %374 = vmatprep.mubr.bf16.mxu0 0
  %375 = vmatmul.mubr.bf16.gmra.mxu0 %v225
  %v376 = vpop.f32.mrf.mxu0
  %v377 = vadd.f32 %v75, %v376
  %v378 = vpop.f32.mrf.mxu0
  %v379 = vpop.f32.mrf.mxu0
  %v380 = vadd.f32 %v75, %v379
  %v381 = vpop.f32.mrf.mxu0
  %382 = vmatprep.mubr.bf16.mxu0 0
  %383 = vmatmul.mubr.bf16.gmra.mxu0 %v228
  %v384 = vpop.f32.mrf.mxu0
  %v385 = vadd.f32 %v75, %v384
  %v386 = vpop.f32.mrf.mxu0
  %v387 = vpop.f32.mrf.mxu0
  %v388 = vadd.f32 %v75, %v387
  %v389 = vpop.f32.mrf.mxu0
  %390 = vdwg.mxu0
  %v391 = vmax.f32 %v265, 0.0
  %v392 = vmax.f32 %v268, 0.0
  %v393 = vmax.f32 %v273, 0.0
  %v394 = vmax.f32 %v276, 0.0
  %v395 = vmax.f32 %v281, 0.0
  %v396 = vmax.f32 %v284, 0.0
  %v397 = vmax.f32 %v289, 0.0
  %v398 = vmax.f32 %v292, 0.0
  %v399 = vmax.f32 %v297, 0.0
  %v400 = vmax.f32 %v300, 0.0
  %v401 = vmax.f32 %v305, 0.0
  %v402 = vmax.f32 %v308, 0.0
  %v403 = vmax.f32 %v313, 0.0
  %v404 = vmax.f32 %v316, 0.0
  %v405 = vmax.f32 %v321, 0.0
  %v406 = vmax.f32 %v324, 0.0
  %v407 = vmax.f32 %v329, 0.0
  %v408 = vmax.f32 %v332, 0.0
  %v409 = vmax.f32 %v337, 0.0
  %v410 = vmax.f32 %v340, 0.0
  %v411 = vmax.f32 %v345, 0.0
  %v412 = vmax.f32 %v348, 0.0
  %v413 = vmax.f32 %v353, 0.0
  %v414 = vmax.f32 %v356, 0.0
  %v415 = vmax.f32 %v361, 0.0
  %v416 = vmax.f32 %v364, 0.0
  %v417 = vmax.f32 %v369, 0.0
  %v418 = vmax.f32 %v372, 0.0
  %v419 = vmax.f32 %v377, 0.0
  %v420 = vmax.f32 %v380, 0.0
  %v421 = vmax.f32 %v385, 0.0
  %v422 = vmax.f32 %v388, 0.0
  %v423 = vpack.c.bf16 %v392, %v391
  %v424 = vpack.c.bf16 %v394, %v393
  %v425 = vpack.c.bf16 %v396, %v395
  %v426 = vpack.c.bf16 %v398, %v397
  %v427 = vpack.c.bf16 %v400, %v399
  %v428 = vpack.c.bf16 %v402, %v401
  %v429 = vpack.c.bf16 %v404, %v403
  %v430 = vpack.c.bf16 %v406, %v405
  %v431 = vpack.c.bf16 %v408, %v407
  %v432 = vpack.c.bf16 %v410, %v409
  %v433 = vpack.c.bf16 %v412, %v411
  %v434 = vpack.c.bf16 %v414, %v413
  %v435 = vpack.c.bf16 %v416, %v415
  %v436 = vpack.c.bf16 %v418, %v417
  %v437 = vpack.c.bf16 %v420, %v419
  %v438 = vpack.c.bf16 %v422, %v421
  %v439 = vld [vmem:[%s3] sm:$0xf]
  %v440 = vld [vmem:[%s3 + $0x4] sm:$0xf]
  %v441 = vld [vmem:[%s3 + $0x8] sm:$0xf]
  %v442 = vld [vmem:[%s3 + $0xc] sm:$0xf]
  %v443 = vld [vmem:[%s3 + $0x10] sm:$0xf]
  %v444 = vld [vmem:[%s3 + $0x14] sm:$0xf]
  %v445 = vld [vmem:[%s3 + $0x18] sm:$0xf]
  %v446 = vld [vmem:[%s3 + $0x1c] sm:$0xf]
  %v447 = vld [vmem:[%s4] sm:$0x1]
  %v449 = vlaneseq
  %v450 = vshrl.u32 %v449, 7
  %v451 = vsub.s32 0, %v450
  %v452 = vrot.slane %v447, %v451
  %v462 = vunpack.c.l.b16 %v439
  %v463 = vunpack.c.l.b16 %v440
  %v464 = vunpack.c.l.b16 %v441
  %v465 = vunpack.c.l.b16 %v442
  %v466 = vunpack.c.l.b16 %v443
  %v467 = vunpack.c.l.b16 %v444
  %v468 = vunpack.c.l.b16 %v445
  %v469 = vunpack.c.l.b16 %v446
  %v470 = vpack.c.b16 %v463, %v462
  %v471 = vpack.c.b16 %v465, %v464
  %v472 = vpack.c.b16 %v467, %v466
  %v473 = vpack.c.b16 %v469, %v468
  %v479 = vsel %vm181, %v423, 0
  %v482 = vsel %vm181, %v424, 0
  %v485 = vsel %vm181, %v425, 0
  %v488 = vsel %vm181, %v426, 0
  %v491 = vsel %vm181, %v427, 0
  %v494 = vsel %vm181, %v428, 0
  %v497 = vsel %vm181, %v429, 0
  %v500 = vsel %vm181, %v430, 0
  %v503 = vsel %vm181, %v431, 0
  %v506 = vsel %vm181, %v432, 0
  %v509 = vsel %vm181, %v433, 0
  %v512 = vsel %vm181, %v434, 0
  %v515 = vsel %vm181, %v435, 0
  %v518 = vsel %vm181, %v436, 0
  %v521 = vsel %vm181, %v437, 0
  %v524 = vsel %vm181, %v438, 0
  %526 = vmatprep.subr.bf16.mxu0 0
  %527 = vmatpush1.bf16.msra.mxu0 0
  %528 = vmatprep.subr.bf16.mxu0 0
  %529 = vmatpush1.bf16.msra.mxu0 0
  %530 = vmatprep.subr.bf16.mxu0 0
  %531 = vmatpush1.bf16.msra.mxu0 0
  %532 = vmatprep.subr.bf16.mxu0 0
  %533 = vmatpush1.bf16.msra.mxu0 0
  %534 = vmatprep.subr.bf16.mxu0 0
  %535 = vmatpush1.bf16.msra.mxu0 %v473
  %536 = vmatprep.subr.bf16.mxu0 0
  %537 = vmatpush1.bf16.msra.mxu0 %v472
  %538 = vmatprep.subr.bf16.mxu0 0
  %539 = vmatpush1.bf16.msra.mxu0 %v471
  %540 = vmatprep.subr.bf16.mxu0 0
  %541 = vmatpush1.bf16.msra.mxu0 %v470
  %542 = vmatprep.subr.bf16.mxu0 0
  %543 = vmatpush2.bf16.msra.mxu0 0
  %544 = vmatprep.subr.bf16.mxu0 0
  %545 = vmatpush2.bf16.msra.mxu0 0
  %546 = vmatprep.subr.bf16.mxu0 0
  %547 = vmatpush2.bf16.msra.mxu0 0
  %548 = vmatprep.subr.bf16.mxu0 0
  %549 = vmatpush2.bf16.msra.mxu0 0
  %550 = vmatprep.subr.bf16.mxu0 0
  %551 = vmatpush2.bf16.msra.mxu0 0
  %552 = vmatprep.subr.bf16.mxu0 0
  %553 = vmatpush2.bf16.msra.mxu0 0
  %554 = vmatprep.subr.bf16.mxu0 0
  %555 = vmatpush2.bf16.msra.mxu0 0
  %556 = vmatprep.subr.bf16.mxu0 0
  %557 = vmatpush2.bf16.msra.mxu0 0
  %558 = vmatprep.mubr.bf16.mxu0 0
  %559 = vmatmul.mubr.bf16.gmra.mxu0 %v479
  %v560 = vpop.f32.mrf.mxu0
  %v561 = vadd.f32 %v452, %v560
  %v562 = vpop.f32.mrf.mxu0
  %v563 = vpop.f32.mrf.mxu0
  %v564 = vadd.f32 %v452, %v563
  %v565 = vpop.f32.mrf.mxu0
  %566 = vmatprep.mubr.bf16.mxu0 0
  %567 = vmatmul.mubr.bf16.gmra.mxu0 %v482
  %v568 = vpop.f32.mrf.mxu0
  %v569 = vadd.f32 %v452, %v568
  %v570 = vpop.f32.mrf.mxu0
  %v571 = vpop.f32.mrf.mxu0
  %v572 = vadd.f32 %v452, %v571
  %v573 = vpop.f32.mrf.mxu0
  %574 = vmatprep.mubr.bf16.mxu0 0
  %575 = vmatmul.mubr.bf16.gmra.mxu0 %v485
  %v576 = vpop.f32.mrf.mxu0
  %v577 = vadd.f32 %v452, %v576
  %v578 = vpop.f32.mrf.mxu0
  %v579 = vpop.f32.mrf.mxu0
  %v580 = vadd.f32 %v452, %v579
  %v581 = vpop.f32.mrf.mxu0
  %582 = vmatprep.mubr.bf16.mxu0 0
  %583 = vmatmul.mubr.bf16.gmra.mxu0 %v488
  %v584 = vpop.f32.mrf.mxu0
  %v585 = vadd.f32 %v452, %v584
  %v586 = vpop.f32.mrf.mxu0
  %v587 = vpop.f32.mrf.mxu0
  %v588 = vadd.f32 %v452, %v587
  %v589 = vpop.f32.mrf.mxu0
  %590 = vmatprep.mubr.bf16.mxu0 0
  %591 = vmatmul.mubr.bf16.gmra.mxu0 %v491
  %v592 = vpop.f32.mrf.mxu0
  %v593 = vadd.f32 %v452, %v592
  %v594 = vpop.f32.mrf.mxu0
  %v595 = vpop.f32.mrf.mxu0
  %v596 = vadd.f32 %v452, %v595
  %v597 = vpop.f32.mrf.mxu0
  %598 = vmatprep.mubr.bf16.mxu0 0
  %599 = vmatmul.mubr.bf16.gmra.mxu0 %v494
  %v600 = vpop.f32.mrf.mxu0
  %v601 = vadd.f32 %v452, %v600
  %v602 = vpop.f32.mrf.mxu0
  %v603 = vpop.f32.mrf.mxu0
  %v604 = vadd.f32 %v452, %v603
  %v605 = vpop.f32.mrf.mxu0
  %606 = vmatprep.mubr.bf16.mxu0 0
  %607 = vmatmul.mubr.bf16.gmra.mxu0 %v497
  %v608 = vpop.f32.mrf.mxu0
  %v609 = vadd.f32 %v452, %v608
  %v610 = vpop.f32.mrf.mxu0
  %v611 = vpop.f32.mrf.mxu0
  %v612 = vadd.f32 %v452, %v611
  %v613 = vpop.f32.mrf.mxu0
  %614 = vmatprep.mubr.bf16.mxu0 0
  %615 = vmatmul.mubr.bf16.gmra.mxu0 %v500
  %v616 = vpop.f32.mrf.mxu0
  %v617 = vadd.f32 %v452, %v616
  %v618 = vpop.f32.mrf.mxu0
  %v619 = vpop.f32.mrf.mxu0
  %v620 = vadd.f32 %v452, %v619
  %v621 = vpop.f32.mrf.mxu0
  %622 = vmatprep.mubr.bf16.mxu0 0
  %623 = vmatmul.mubr.bf16.gmra.mxu0 %v503
  %v624 = vpop.f32.mrf.mxu0
  %v625 = vadd.f32 %v452, %v624
  %v626 = vpop.f32.mrf.mxu0
  %v627 = vpop.f32.mrf.mxu0
  %v628 = vadd.f32 %v452, %v627
  %v629 = vpop.f32.mrf.mxu0
  %630 = vmatprep.mubr.bf16.mxu0 0
  %631 = vmatmul.mubr.bf16.gmra.mxu0 %v506
  %v632 = vpop.f32.mrf.mxu0
  %v633 = vadd.f32 %v452, %v632
  %v634 = vpop.f32.mrf.mxu0
  %v635 = vpop.f32.mrf.mxu0
  %v636 = vadd.f32 %v452, %v635
  %v637 = vpop.f32.mrf.mxu0
  %638 = vmatprep.mubr.bf16.mxu0 0
  %639 = vmatmul.mubr.bf16.gmra.mxu0 %v509
  %v640 = vpop.f32.mrf.mxu0
  %v641 = vadd.f32 %v452, %v640
  %v642 = vpop.f32.mrf.mxu0
  %v643 = vpop.f32.mrf.mxu0
  %v644 = vadd.f32 %v452, %v643
  %v645 = vpop.f32.mrf.mxu0
  %646 = vmatprep.mubr.bf16.mxu0 0
  %647 = vmatmul.mubr.bf16.gmra.mxu0 %v512
  %v648 = vpop.f32.mrf.mxu0
  %v649 = vadd.f32 %v452, %v648
  %v650 = vpop.f32.mrf.mxu0
  %v651 = vpop.f32.mrf.mxu0
  %v652 = vadd.f32 %v452, %v651
  %v653 = vpop.f32.mrf.mxu0
  %654 = vmatprep.mubr.bf16.mxu0 0
  %655 = vmatmul.mubr.bf16.gmra.mxu0 %v515
  %v656 = vpop.f32.mrf.mxu0
  %v657 = vadd.f32 %v452, %v656
  %v658 = vpop.f32.mrf.mxu0
  %v659 = vpop.f32.mrf.mxu0
  %v660 = vadd.f32 %v452, %v659
  %v661 = vpop.f32.mrf.mxu0
  %662 = vmatprep.mubr.bf16.mxu0 0
  %663 = vmatmul.mubr.bf16.gmra.mxu0 %v518
  %v664 = vpop.f32.mrf.mxu0
  %v665 = vadd.f32 %v452, %v664
  %v666 = vpop.f32.mrf.mxu0
  %v667 = vpop.f32.mrf.mxu0
  %v668 = vadd.f32 %v452, %v667
  %v669 = vpop.f32.mrf.mxu0
  %670 = vmatprep.mubr.bf16.mxu0 0
  %671 = vmatmul.mubr.bf16.gmra.mxu0 %v521
  %v672 = vpop.f32.mrf.mxu0
  %v673 = vadd.f32 %v452, %v672
  %v674 = vpop.f32.mrf.mxu0
  %v675 = vpop.f32.mrf.mxu0
  %v676 = vadd.f32 %v452, %v675
  %v677 = vpop.f32.mrf.mxu0
  %678 = vmatprep.mubr.bf16.mxu0 0
  %679 = vmatmul.mubr.bf16.gmra.mxu0 %v524
  %v680 = vpop.f32.mrf.mxu0
  %v681 = vadd.f32 %v452, %v680
  %v682 = vpop.f32.mrf.mxu0
  %v683 = vpop.f32.mrf.mxu0
  %v684 = vadd.f32 %v452, %v683
  %v685 = vpop.f32.mrf.mxu0
  %686 = vdwg.mxu0
  %v687 = vld [vmem:[%s7] sm:$0xf]
  %v688 = vlaneseq
  %v689 = vand.u32 %v688, 127
  %v690 = vld [vmem:[%s6] sm:$0xff]
  %v691 = vld [vmem:[%s6 + $0x8] sm:$0xff]
  %v692 = vld [vmem:[%s6 + $0x10] sm:$0xff]
  %v693 = vld [vmem:[%s6 + $0x18] sm:$0xff]
  %vm694 = vcmask 261120
  %v696 = vsel %vm694, %v561, 0
  %v699 = vsel %vm694, %v564, 0
  %v702 = vsel %vm694, %v569, 0
  %v705 = vsel %vm694, %v572, 0
  %v708 = vsel %vm694, %v577, 0
  %v711 = vsel %vm694, %v580, 0
  %v714 = vsel %vm694, %v585, 0
  %v717 = vsel %vm694, %v588, 0
  %v720 = vsel %vm694, %v593, 0
  %v723 = vsel %vm694, %v596, 0
  %v726 = vsel %vm694, %v601, 0
  %v729 = vsel %vm694, %v604, 0
  %v732 = vsel %vm694, %v609, 0
  %v735 = vsel %vm694, %v612, 0
  %v738 = vsel %vm694, %v617, 0
  %v741 = vsel %vm694, %v620, 0
  %v744 = vsel %vm694, %v625, 0
  %v747 = vsel %vm694, %v628, 0
  %v750 = vsel %vm694, %v633, 0
  %v753 = vsel %vm694, %v636, 0
  %v756 = vsel %vm694, %v641, 0
  %v759 = vsel %vm694, %v644, 0
  %v762 = vsel %vm694, %v649, 0
  %v765 = vsel %vm694, %v652, 0
  %v768 = vsel %vm694, %v657, 0
  %v771 = vsel %vm694, %v660, 0
  %v774 = vsel %vm694, %v665, 0
  %v777 = vsel %vm694, %v668, 0
  %v780 = vsel %vm694, %v673, 0
  %v783 = vsel %vm694, %v676, 0
  %v786 = vsel %vm694, %v681, 0
  %v789 = vsel %vm694, %v684, 0
  %791 = vmatprep.subr.mxu0 0.0
  %792 = vmatpush1.msra.mxu0 0.0
  %793 = vmatprep.subr.mxu0 0.0
  %794 = vmatpush1.msra.mxu0 0.0
  %795 = vmatprep.subr.mxu0 0.0
  %796 = vmatpush1.msra.mxu0 0.0
  %797 = vmatprep.subr.mxu0 0.0
  %798 = vmatpush1.msra.mxu0 0.0
  %799 = vmatprep.subr.mxu0 0.0
  %800 = vmatpush1.msra.mxu0 0.0
  %801 = vmatprep.subr.mxu0 0.0
  %802 = vmatpush1.msra.mxu0 0.0
  %803 = vmatprep.subr.mxu0 0.0
  %804 = vmatpush1.msra.mxu0 0.0
  %805 = vmatprep.subr.mxu0 0.0
  %806 = vmatpush1.msra.mxu0 0.0
  %807 = vmatprep.subr.mxu0 0.0
  %808 = vmatpush1.msra.mxu0 0.0
  %809 = vmatprep.subr.mxu0 0.0
  %810 = vmatpush1.msra.mxu0 0.0
  %811 = vmatprep.subr.mxu0 0.0
  %812 = vmatpush1.msra.mxu0 0.0
  %813 = vmatprep.subr.mxu0 0.0
  %814 = vmatpush1.msra.mxu0 0.0
  %815 = vmatprep.subr.mxu0 0.0
  %816 = vmatpush1.msra.mxu0 %v693
  %817 = vmatprep.subr.mxu0 0.0
  %818 = vmatpush1.msra.mxu0 %v692
  %819 = vmatprep.subr.mxu0 0.0
  %820 = vmatpush1.msra.mxu0 %v691
  %821 = vmatprep.subr.mxu0 0.0
  %822 = vmatpush1.msra.mxu0 %v690
  %823 = vmatprep.subr.mxu0 0.0
  %824 = vmatpush2.msra.mxu0 0.0
  %825 = vmatprep.subr.mxu0 0.0
  %826 = vmatpush2.msra.mxu0 0.0
  %827 = vmatprep.subr.mxu0 0.0
  %828 = vmatpush2.msra.mxu0 0.0
  %829 = vmatprep.subr.mxu0 0.0
  %830 = vmatpush2.msra.mxu0 0.0
  %831 = vmatprep.subr.mxu0 0.0
  %832 = vmatpush2.msra.mxu0 0.0
  %833 = vmatprep.subr.mxu0 0.0
  %834 = vmatpush2.msra.mxu0 0.0
  %835 = vmatprep.subr.mxu0 0.0
  %836 = vmatpush2.msra.mxu0 0.0
  %837 = vmatprep.subr.mxu0 0.0
  %838 = vmatpush2.msra.mxu0 0.0
  %839 = vmatprep.subr.mxu0 0.0
  %840 = vmatpush2.msra.mxu0 0.0
  %841 = vmatprep.subr.mxu0 0.0
  %842 = vmatpush2.msra.mxu0 0.0
  %843 = vmatprep.subr.mxu0 0.0
  %844 = vmatpush2.msra.mxu0 0.0
  %845 = vmatprep.subr.mxu0 0.0
  %846 = vmatpush2.msra.mxu0 0.0
  %847 = vmatprep.subr.mxu0 0.0
  %848 = vmatpush2.msra.mxu0 0.0
  %849 = vmatprep.subr.mxu0 0.0
  %850 = vmatpush2.msra.mxu0 0.0
  %851 = vmatprep.subr.mxu0 0.0
  %852 = vmatpush2.msra.mxu0 0.0
  %853 = vmatprep.subr.mxu0 0.0
  %854 = vmatpush2.msra.mxu0 0.0
  %855 = vmatprep.mubr.f32.mxu0 0.0
  %856 = vmatmul.mubr.f32.gmra.mxu0 %v696
  %v857 = vpop.f32.mrf.mxu0
  %v858 = vadd.f32 0.0, %v857
  %v859 = vpop.f32.mrf.mxu0
  %860 = vmatprep.mubr.f32.mxu0 0.0
  %861 = vmatmul.mubr.f32.gmra.mxu0 %v699
  %v862 = vpop.f32.mrf.mxu0
  %v863 = vadd.f32 0.0, %v862
  %v864 = vpop.f32.mrf.mxu0
  %865 = vmatprep.mubr.f32.mxu0 0.0
  %866 = vmatmul.mubr.f32.gmra.mxu0 %v702
  %v867 = vpop.f32.mrf.mxu0
  %v868 = vadd.f32 0.0, %v867
  %v869 = vpop.f32.mrf.mxu0
  %870 = vmatprep.mubr.f32.mxu0 0.0
  %871 = vmatmul.mubr.f32.gmra.mxu0 %v705
  %v872 = vpop.f32.mrf.mxu0
  %v873 = vadd.f32 0.0, %v872
  %v874 = vpop.f32.mrf.mxu0
  %875 = vmatprep.mubr.f32.mxu0 0.0
  %876 = vmatmul.mubr.f32.gmra.mxu0 %v708
  %v877 = vpop.f32.mrf.mxu0
  %v878 = vadd.f32 0.0, %v877
  %v879 = vpop.f32.mrf.mxu0
  %880 = vmatprep.mubr.f32.mxu0 0.0
  %881 = vmatmul.mubr.f32.gmra.mxu0 %v711
  %v882 = vpop.f32.mrf.mxu0
  %v883 = vadd.f32 0.0, %v882
  %v884 = vpop.f32.mrf.mxu0
  %885 = vmatprep.mubr.f32.mxu0 0.0
  %886 = vmatmul.mubr.f32.gmra.mxu0 %v714
  %v887 = vpop.f32.mrf.mxu0
  %v888 = vadd.f32 0.0, %v887
  %v889 = vpop.f32.mrf.mxu0
  %890 = vmatprep.mubr.f32.mxu0 0.0
  %891 = vmatmul.mubr.f32.gmra.mxu0 %v717
  %v892 = vpop.f32.mrf.mxu0
  %v893 = vadd.f32 0.0, %v892
  %v894 = vpop.f32.mrf.mxu0
  %895 = vmatprep.mubr.f32.mxu0 0.0
  %896 = vmatmul.mubr.f32.gmra.mxu0 %v720
  %v897 = vpop.f32.mrf.mxu0
  %v898 = vadd.f32 0.0, %v897
  %v899 = vpop.f32.mrf.mxu0
  %900 = vmatprep.mubr.f32.mxu0 0.0
  %901 = vmatmul.mubr.f32.gmra.mxu0 %v723
  %v902 = vpop.f32.mrf.mxu0
  %v903 = vadd.f32 0.0, %v902
  %v904 = vpop.f32.mrf.mxu0
  %905 = vmatprep.mubr.f32.mxu0 0.0
  %906 = vmatmul.mubr.f32.gmra.mxu0 %v726
  %v907 = vpop.f32.mrf.mxu0
  %v908 = vadd.f32 0.0, %v907
  %v909 = vpop.f32.mrf.mxu0
  %910 = vmatprep.mubr.f32.mxu0 0.0
  %911 = vmatmul.mubr.f32.gmra.mxu0 %v729
  %v912 = vpop.f32.mrf.mxu0
  %v913 = vadd.f32 0.0, %v912
  %v914 = vpop.f32.mrf.mxu0
  %915 = vmatprep.mubr.f32.mxu0 0.0
  %916 = vmatmul.mubr.f32.gmra.mxu0 %v732
  %v917 = vpop.f32.mrf.mxu0
  %v918 = vadd.f32 0.0, %v917
  %v919 = vpop.f32.mrf.mxu0
  %920 = vmatprep.mubr.f32.mxu0 0.0
  %921 = vmatmul.mubr.f32.gmra.mxu0 %v735
  %v922 = vpop.f32.mrf.mxu0
  %v923 = vadd.f32 0.0, %v922
  %v924 = vpop.f32.mrf.mxu0
  %925 = vmatprep.mubr.f32.mxu0 0.0
  %926 = vmatmul.mubr.f32.gmra.mxu0 %v738
  %v927 = vpop.f32.mrf.mxu0
  %v928 = vadd.f32 0.0, %v927
  %v929 = vpop.f32.mrf.mxu0
  %930 = vmatprep.mubr.f32.mxu0 0.0
  %931 = vmatmul.mubr.f32.gmra.mxu0 %v741
  %v932 = vpop.f32.mrf.mxu0
  %v933 = vadd.f32 0.0, %v932
  %v934 = vpop.f32.mrf.mxu0
  %935 = vmatprep.mubr.f32.mxu0 0.0
  %936 = vmatmul.mubr.f32.gmra.mxu0 %v744
  %v937 = vpop.f32.mrf.mxu0
  %v938 = vadd.f32 0.0, %v937
  %v939 = vpop.f32.mrf.mxu0
  %940 = vmatprep.mubr.f32.mxu0 0.0
  %941 = vmatmul.mubr.f32.gmra.mxu0 %v747
  %v942 = vpop.f32.mrf.mxu0
  %v943 = vadd.f32 0.0, %v942
  %v944 = vpop.f32.mrf.mxu0
  %945 = vmatprep.mubr.f32.mxu0 0.0
  %946 = vmatmul.mubr.f32.gmra.mxu0 %v750
  %v947 = vpop.f32.mrf.mxu0
  %v948 = vadd.f32 0.0, %v947
  %v949 = vpop.f32.mrf.mxu0
  %950 = vmatprep.mubr.f32.mxu0 0.0
  %951 = vmatmul.mubr.f32.gmra.mxu0 %v753
  %v952 = vpop.f32.mrf.mxu0
  %v953 = vadd.f32 0.0, %v952
  %v954 = vpop.f32.mrf.mxu0
  %955 = vmatprep.mubr.f32.mxu0 0.0
  %956 = vmatmul.mubr.f32.gmra.mxu0 %v756
  %v957 = vpop.f32.mrf.mxu0
  %v958 = vadd.f32 0.0, %v957
  %v959 = vpop.f32.mrf.mxu0
  %960 = vmatprep.mubr.f32.mxu0 0.0
  %961 = vmatmul.mubr.f32.gmra.mxu0 %v759
  %v962 = vpop.f32.mrf.mxu0
  %v963 = vadd.f32 0.0, %v962
  %v964 = vpop.f32.mrf.mxu0
  %965 = vmatprep.mubr.f32.mxu0 0.0
  %966 = vmatmul.mubr.f32.gmra.mxu0 %v762
  %v967 = vpop.f32.mrf.mxu0
  %v968 = vadd.f32 0.0, %v967
  %v969 = vpop.f32.mrf.mxu0
  %970 = vmatprep.mubr.f32.mxu0 0.0
  %971 = vmatmul.mubr.f32.gmra.mxu0 %v765
  %v972 = vpop.f32.mrf.mxu0
  %v973 = vadd.f32 0.0, %v972
  %v974 = vpop.f32.mrf.mxu0
  %975 = vmatprep.mubr.f32.mxu0 0.0
  %976 = vmatmul.mubr.f32.gmra.mxu0 %v768
  %v977 = vpop.f32.mrf.mxu0
  %v978 = vadd.f32 0.0, %v977
  %v979 = vpop.f32.mrf.mxu0
  %980 = vmatprep.mubr.f32.mxu0 0.0
  %981 = vmatmul.mubr.f32.gmra.mxu0 %v771
  %v982 = vpop.f32.mrf.mxu0
  %v983 = vadd.f32 0.0, %v982
  %v984 = vpop.f32.mrf.mxu0
  %985 = vmatprep.mubr.f32.mxu0 0.0
  %986 = vmatmul.mubr.f32.gmra.mxu0 %v774
  %v987 = vpop.f32.mrf.mxu0
  %v988 = vadd.f32 0.0, %v987
  %v989 = vpop.f32.mrf.mxu0
  %990 = vmatprep.mubr.f32.mxu0 0.0
  %991 = vmatmul.mubr.f32.gmra.mxu0 %v777
  %v992 = vpop.f32.mrf.mxu0
  %v993 = vadd.f32 0.0, %v992
  %v994 = vpop.f32.mrf.mxu0
  %995 = vmatprep.mubr.f32.mxu0 0.0
  %996 = vmatmul.mubr.f32.gmra.mxu0 %v780
  %v997 = vpop.f32.mrf.mxu0
  %v998 = vadd.f32 0.0, %v997
  %v999 = vpop.f32.mrf.mxu0
  %1000 = vmatprep.mubr.f32.mxu0 0.0
  %1001 = vmatmul.mubr.f32.gmra.mxu0 %v783
  %v1002 = vpop.f32.mrf.mxu0
  %v1003 = vadd.f32 0.0, %v1002
  %v1004 = vpop.f32.mrf.mxu0
  %1005 = vmatprep.mubr.f32.mxu0 0.0
  %1006 = vmatmul.mubr.f32.gmra.mxu0 %v786
  %v1007 = vpop.f32.mrf.mxu0
  %v1008 = vadd.f32 0.0, %v1007
  %v1009 = vpop.f32.mrf.mxu0
  %1010 = vmatprep.mubr.f32.mxu0 0.0
  %1011 = vmatmul.mubr.f32.gmra.mxu0 %v789
  %v1012 = vpop.f32.mrf.mxu0
  %v1013 = vadd.f32 0.0, %v1012
  %v1014 = vpop.f32.mrf.mxu0
  %1015 = vdwg.mxu0
  %v1016 = vmul.f32 %v858, 2.0
  %v1017 = vmul.f32 %v863, 2.0
  %v1018 = vmul.f32 %v868, 2.0
  %v1019 = vmul.f32 %v873, 2.0
  %v1020 = vmul.f32 %v878, 2.0
  %v1021 = vmul.f32 %v883, 2.0
  %v1022 = vmul.f32 %v888, 2.0
  %v1023 = vmul.f32 %v893, 2.0
  %v1024 = vmul.f32 %v898, 2.0
  %v1025 = vmul.f32 %v903, 2.0
  %v1026 = vmul.f32 %v908, 2.0
  %v1027 = vmul.f32 %v913, 2.0
  %v1028 = vmul.f32 %v918, 2.0
  %v1029 = vmul.f32 %v923, 2.0
  %v1030 = vmul.f32 %v928, 2.0
  %v1031 = vmul.f32 %v933, 2.0
  %v1032 = vmul.f32 %v938, 2.0
  %v1033 = vmul.f32 %v943, 2.0
  %v1034 = vmul.f32 %v948, 2.0
  %v1035 = vmul.f32 %v953, 2.0
  %v1036 = vmul.f32 %v958, 2.0
  %v1037 = vmul.f32 %v963, 2.0
  %v1038 = vmul.f32 %v968, 2.0
  %v1039 = vmul.f32 %v973, 2.0
  %v1040 = vmul.f32 %v978, 2.0
  %v1041 = vmul.f32 %v983, 2.0
  %v1042 = vmul.f32 %v988, 2.0
  %v1043 = vmul.f32 %v993, 2.0
  %v1044 = vmul.f32 %v998, 2.0
  %v1045 = vmul.f32 %v1003, 2.0
  %v1046 = vmul.f32 %v1008, 2.0
  %v1047 = vmul.f32 %v1013, 2.0
  %v1048 = vlaneseq
  %v1049 = vshrl.u32 %v1048, 7
  %v1050 = vsub.s32 0, %v1049
  %v1051 = vrot.slane %v687, %v1050
  %v1052 = vsub.f32 %v1051, %v1016
  %v1053 = vsub.f32 %v1051, %v1017
  %v1054 = vsub.f32 %v1051, %v1018
  %v1055 = vsub.f32 %v1051, %v1019
  %v1056 = vsub.f32 %v1051, %v1020
  %v1057 = vsub.f32 %v1051, %v1021
  %v1058 = vsub.f32 %v1051, %v1022
  %v1059 = vsub.f32 %v1051, %v1023
  %v1060 = vsub.f32 %v1051, %v1024
  %v1061 = vsub.f32 %v1051, %v1025
  %v1062 = vsub.f32 %v1051, %v1026
  %v1063 = vsub.f32 %v1051, %v1027
  %v1064 = vsub.f32 %v1051, %v1028
  %v1065 = vsub.f32 %v1051, %v1029
  %v1066 = vsub.f32 %v1051, %v1030
  %v1067 = vsub.f32 %v1051, %v1031
  %v1068 = vsub.f32 %v1051, %v1032
  %v1069 = vsub.f32 %v1051, %v1033
  %v1070 = vsub.f32 %v1051, %v1034
  %v1071 = vsub.f32 %v1051, %v1035
  %v1072 = vsub.f32 %v1051, %v1036
  %v1073 = vsub.f32 %v1051, %v1037
  %v1074 = vsub.f32 %v1051, %v1038
  %v1075 = vsub.f32 %v1051, %v1039
  %v1076 = vsub.f32 %v1051, %v1040
  %v1077 = vsub.f32 %v1051, %v1041
  %v1078 = vsub.f32 %v1051, %v1042
  %v1079 = vsub.f32 %v1051, %v1043
  %v1080 = vsub.f32 %v1051, %v1044
  %v1081 = vsub.f32 %v1051, %v1045
  %v1082 = vsub.f32 %v1051, %v1046
  %v1083 = vsub.f32 %v1051, %v1047
  %1084 = vmin.xlane.f32.xlu0 %v1052
  %v1085 = vpop.xlane.xlu0 %1084
  %1086 = vmin.xlane.f32.xlu0 %v1053
  %v1087 = vpop.xlane.xlu0 %1086
  %1088 = vmin.xlane.f32.xlu0 %v1054
  %v1089 = vpop.xlane.xlu0 %1088
  %1090 = vmin.xlane.f32.xlu0 %v1055
  %v1091 = vpop.xlane.xlu0 %1090
  %1092 = vmin.xlane.f32.xlu0 %v1056
  %v1093 = vpop.xlane.xlu0 %1092
  %1094 = vmin.xlane.f32.xlu0 %v1057
  %v1095 = vpop.xlane.xlu0 %1094
  %1096 = vmin.xlane.f32.xlu0 %v1058
  %v1097 = vpop.xlane.xlu0 %1096
  %1098 = vmin.xlane.f32.xlu0 %v1059
  %v1099 = vpop.xlane.xlu0 %1098
  %1100 = vmin.xlane.f32.xlu0 %v1060
  %v1101 = vpop.xlane.xlu0 %1100
  %1102 = vmin.xlane.f32.xlu0 %v1061
  %v1103 = vpop.xlane.xlu0 %1102
  %1104 = vmin.xlane.f32.xlu0 %v1062
  %v1105 = vpop.xlane.xlu0 %1104
  %1106 = vmin.xlane.f32.xlu0 %v1063
  %v1107 = vpop.xlane.xlu0 %1106
  %1108 = vmin.xlane.f32.xlu0 %v1064
  %v1109 = vpop.xlane.xlu0 %1108
  %1110 = vmin.xlane.f32.xlu0 %v1065
  %v1111 = vpop.xlane.xlu0 %1110
  %1112 = vmin.xlane.f32.xlu0 %v1066
  %v1113 = vpop.xlane.xlu0 %1112
  %1114 = vmin.xlane.f32.xlu0 %v1067
  %v1115 = vpop.xlane.xlu0 %1114
  %1116 = vmin.xlane.f32.xlu0 %v1068
  %v1117 = vpop.xlane.xlu0 %1116
  %1118 = vmin.xlane.f32.xlu0 %v1069
  %v1119 = vpop.xlane.xlu0 %1118
  %1120 = vmin.xlane.f32.xlu0 %v1070
  %v1121 = vpop.xlane.xlu0 %1120
  %1122 = vmin.xlane.f32.xlu0 %v1071
  %v1123 = vpop.xlane.xlu0 %1122
  %1124 = vmin.xlane.f32.xlu0 %v1072
  %v1125 = vpop.xlane.xlu0 %1124
  %1126 = vmin.xlane.f32.xlu0 %v1073
  %v1127 = vpop.xlane.xlu0 %1126
  %1128 = vmin.xlane.f32.xlu0 %v1074
  %v1129 = vpop.xlane.xlu0 %1128
  %1130 = vmin.xlane.f32.xlu0 %v1075
  %v1131 = vpop.xlane.xlu0 %1130
  %1132 = vmin.xlane.f32.xlu0 %v1076
  %v1133 = vpop.xlane.xlu0 %1132
  %1134 = vmin.xlane.f32.xlu0 %v1077
  %v1135 = vpop.xlane.xlu0 %1134
  %1136 = vmin.xlane.f32.xlu0 %v1078
  %v1137 = vpop.xlane.xlu0 %1136
  %1138 = vmin.xlane.f32.xlu0 %v1079
  %v1139 = vpop.xlane.xlu0 %1138
  %1140 = vmin.xlane.f32.xlu0 %v1080
  %v1141 = vpop.xlane.xlu0 %1140
  %1142 = vmin.xlane.f32.xlu0 %v1081
  %v1143 = vpop.xlane.xlu0 %1142
  %1144 = vmin.xlane.f32.xlu0 %v1082
  %v1145 = vpop.xlane.xlu0 %1144
  %1146 = vmin.xlane.f32.xlu0 %v1083
  %v1147 = vpop.xlane.xlu0 %1146
  %vm1148 = vcmp.le.f32.partialorder %v1052, %v1085
  %vm1149 = vcmp.le.f32.partialorder %v1053, %v1087
  %vm1150 = vcmp.le.f32.partialorder %v1054, %v1089
  %vm1151 = vcmp.le.f32.partialorder %v1055, %v1091
  %vm1152 = vcmp.le.f32.partialorder %v1056, %v1093
  %vm1153 = vcmp.le.f32.partialorder %v1057, %v1095
  %vm1154 = vcmp.le.f32.partialorder %v1058, %v1097
  %vm1155 = vcmp.le.f32.partialorder %v1059, %v1099
  %vm1156 = vcmp.le.f32.partialorder %v1060, %v1101
  %vm1157 = vcmp.le.f32.partialorder %v1061, %v1103
  %vm1158 = vcmp.le.f32.partialorder %v1062, %v1105
  %vm1159 = vcmp.le.f32.partialorder %v1063, %v1107
  %vm1160 = vcmp.le.f32.partialorder %v1064, %v1109
  %vm1161 = vcmp.le.f32.partialorder %v1065, %v1111
  %vm1162 = vcmp.le.f32.partialorder %v1066, %v1113
  %vm1163 = vcmp.le.f32.partialorder %v1067, %v1115
  %vm1164 = vcmp.le.f32.partialorder %v1068, %v1117
  %vm1165 = vcmp.le.f32.partialorder %v1069, %v1119
  %vm1166 = vcmp.le.f32.partialorder %v1070, %v1121
  %vm1167 = vcmp.le.f32.partialorder %v1071, %v1123
  %vm1168 = vcmp.le.f32.partialorder %v1072, %v1125
  %vm1169 = vcmp.le.f32.partialorder %v1073, %v1127
  %vm1170 = vcmp.le.f32.partialorder %v1074, %v1129
  %vm1171 = vcmp.le.f32.partialorder %v1075, %v1131
  %vm1172 = vcmp.le.f32.partialorder %v1076, %v1133
  %vm1173 = vcmp.le.f32.partialorder %v1077, %v1135
  %vm1174 = vcmp.le.f32.partialorder %v1078, %v1137
  %vm1175 = vcmp.le.f32.partialorder %v1079, %v1139
  %vm1176 = vcmp.le.f32.partialorder %v1080, %v1141
  %vm1177 = vcmp.le.f32.partialorder %v1081, %v1143
  %vm1178 = vcmp.le.f32.partialorder %v1082, %v1145
  %vm1179 = vcmp.le.f32.partialorder %v1083, %v1147
  %v1180 = vsel %vm1148, %v689, 128
  %v1181 = vsel %vm1149, %v689, 128
  %v1182 = vsel %vm1150, %v689, 128
  %v1183 = vsel %vm1151, %v689, 128
  %v1184 = vsel %vm1152, %v689, 128
  %v1185 = vsel %vm1153, %v689, 128
  %v1186 = vsel %vm1154, %v689, 128
  %v1187 = vsel %vm1155, %v689, 128
  %v1188 = vsel %vm1156, %v689, 128
  %v1189 = vsel %vm1157, %v689, 128
  %v1190 = vsel %vm1158, %v689, 128
  %v1191 = vsel %vm1159, %v689, 128
  %v1192 = vsel %vm1160, %v689, 128
  %v1193 = vsel %vm1161, %v689, 128
  %v1194 = vsel %vm1162, %v689, 128
  %v1195 = vsel %vm1163, %v689, 128
  %v1196 = vsel %vm1164, %v689, 128
  %v1197 = vsel %vm1165, %v689, 128
  %v1198 = vsel %vm1166, %v689, 128
  %v1199 = vsel %vm1167, %v689, 128
  %v1200 = vsel %vm1168, %v689, 128
  %v1201 = vsel %vm1169, %v689, 128
  %v1202 = vsel %vm1170, %v689, 128
  %v1203 = vsel %vm1171, %v689, 128
  %v1204 = vsel %vm1172, %v689, 128
  %v1205 = vsel %vm1173, %v689, 128
  %v1206 = vsel %vm1174, %v689, 128
  %v1207 = vsel %vm1175, %v689, 128
  %v1208 = vsel %vm1176, %v689, 128
  %v1209 = vsel %vm1177, %v689, 128
  %v1210 = vsel %vm1178, %v689, 128
  %v1211 = vsel %vm1179, %v689, 128
  %v1212 = vand.u32 %v1180, 65535
  %v1213 = vshra.s32 %v1180, 16
  %v1214 = vcvt.s32.f32 %v1212
  %v1215 = vcvt.s32.f32 %v1213
  %1216 = vmin.xlane.f32.xlu0 %v1215
  %v1217 = vpop.xlane.xlu0 %1216
  %vm1218 = vcmp.eq.f32.partialorder %v1215, %v1217
  %v1219 = vsel %vm1218, %v1214, inf
  %1220 = vmin.xlane.f32.xlu0 %v1219
  %v1221 = vpop.xlane.xlu0 %1220
  %v1222 = vcvt.f32.s32 %v1221
  %v1223 = vcvt.f32.s32 %v1217
  %v1224 = vshll.u32 %v1223, 16
  %v1225 = vadd.s32 %v1224, %v1222
  %v1226 = vand.u32 %v1181, 65535
  %v1227 = vshra.s32 %v1181, 16
  %v1228 = vcvt.s32.f32 %v1226
  %v1229 = vcvt.s32.f32 %v1227
  %1230 = vmin.xlane.f32.xlu0 %v1229
  %v1231 = vpop.xlane.xlu0 %1230
  %vm1232 = vcmp.eq.f32.partialorder %v1229, %v1231
  %v1233 = vsel %vm1232, %v1228, inf
  %1234 = vmin.xlane.f32.xlu0 %v1233
  %v1235 = vpop.xlane.xlu0 %1234
  %v1236 = vcvt.f32.s32 %v1235
  %v1237 = vcvt.f32.s32 %v1231
  %v1238 = vshll.u32 %v1237, 16
  %v1239 = vadd.s32 %v1238, %v1236
  %v1240 = vand.u32 %v1182, 65535
  %v1241 = vshra.s32 %v1182, 16
  %v1242 = vcvt.s32.f32 %v1240
  %v1243 = vcvt.s32.f32 %v1241
  %1244 = vmin.xlane.f32.xlu0 %v1243
  %v1245 = vpop.xlane.xlu0 %1244
  %vm1246 = vcmp.eq.f32.partialorder %v1243, %v1245
  %v1247 = vsel %vm1246, %v1242, inf
  %1248 = vmin.xlane.f32.xlu0 %v1247
  %v1249 = vpop.xlane.xlu0 %1248
  %v1250 = vcvt.f32.s32 %v1249
  %v1251 = vcvt.f32.s32 %v1245
  %v1252 = vshll.u32 %v1251, 16
  %v1253 = vadd.s32 %v1252, %v1250
  %v1254 = vand.u32 %v1183, 65535
  %v1255 = vshra.s32 %v1183, 16
  %v1256 = vcvt.s32.f32 %v1254
  %v1257 = vcvt.s32.f32 %v1255
  %1258 = vmin.xlane.f32.xlu0 %v1257
  %v1259 = vpop.xlane.xlu0 %1258
  %vm1260 = vcmp.eq.f32.partialorder %v1257, %v1259
  %v1261 = vsel %vm1260, %v1256, inf
  %1262 = vmin.xlane.f32.xlu0 %v1261
  %v1263 = vpop.xlane.xlu0 %1262
  %v1264 = vcvt.f32.s32 %v1263
  %v1265 = vcvt.f32.s32 %v1259
  %v1266 = vshll.u32 %v1265, 16
  %v1267 = vadd.s32 %v1266, %v1264
  %v1268 = vand.u32 %v1184, 65535
  %v1269 = vshra.s32 %v1184, 16
  %v1270 = vcvt.s32.f32 %v1268
  %v1271 = vcvt.s32.f32 %v1269
  %1272 = vmin.xlane.f32.xlu0 %v1271
  %v1273 = vpop.xlane.xlu0 %1272
  %vm1274 = vcmp.eq.f32.partialorder %v1271, %v1273
  %v1275 = vsel %vm1274, %v1270, inf
  %1276 = vmin.xlane.f32.xlu0 %v1275
  %v1277 = vpop.xlane.xlu0 %1276
  %v1278 = vcvt.f32.s32 %v1277
  %v1279 = vcvt.f32.s32 %v1273
  %v1280 = vshll.u32 %v1279, 16
  %v1281 = vadd.s32 %v1280, %v1278
  %v1282 = vand.u32 %v1185, 65535
  %v1283 = vshra.s32 %v1185, 16
  %v1284 = vcvt.s32.f32 %v1282
  %v1285 = vcvt.s32.f32 %v1283
  %1286 = vmin.xlane.f32.xlu0 %v1285
  %v1287 = vpop.xlane.xlu0 %1286
  %vm1288 = vcmp.eq.f32.partialorder %v1285, %v1287
  %v1289 = vsel %vm1288, %v1284, inf
  %1290 = vmin.xlane.f32.xlu0 %v1289
  %v1291 = vpop.xlane.xlu0 %1290
  %v1292 = vcvt.f32.s32 %v1291
  %v1293 = vcvt.f32.s32 %v1287
  %v1294 = vshll.u32 %v1293, 16
  %v1295 = vadd.s32 %v1294, %v1292
  %v1296 = vand.u32 %v1186, 65535
  %v1297 = vshra.s32 %v1186, 16
  %v1298 = vcvt.s32.f32 %v1296
  %v1299 = vcvt.s32.f32 %v1297
  %1300 = vmin.xlane.f32.xlu0 %v1299
  %v1301 = vpop.xlane.xlu0 %1300
  %vm1302 = vcmp.eq.f32.partialorder %v1299, %v1301
  %v1303 = vsel %vm1302, %v1298, inf
  %1304 = vmin.xlane.f32.xlu0 %v1303
  %v1305 = vpop.xlane.xlu0 %1304
  %v1306 = vcvt.f32.s32 %v1305
  %v1307 = vcvt.f32.s32 %v1301
  %v1308 = vshll.u32 %v1307, 16
  %v1309 = vadd.s32 %v1308, %v1306
  %v1310 = vand.u32 %v1187, 65535
  %v1311 = vshra.s32 %v1187, 16
  %v1312 = vcvt.s32.f32 %v1310
  %v1313 = vcvt.s32.f32 %v1311
  %1314 = vmin.xlane.f32.xlu0 %v1313
  %v1315 = vpop.xlane.xlu0 %1314
  %vm1316 = vcmp.eq.f32.partialorder %v1313, %v1315
  %v1317 = vsel %vm1316, %v1312, inf
  %1318 = vmin.xlane.f32.xlu0 %v1317
  %v1319 = vpop.xlane.xlu0 %1318
  %v1320 = vcvt.f32.s32 %v1319
  %v1321 = vcvt.f32.s32 %v1315
  %v1322 = vshll.u32 %v1321, 16
  %v1323 = vadd.s32 %v1322, %v1320
  %v1324 = vand.u32 %v1188, 65535
  %v1325 = vshra.s32 %v1188, 16
  %v1326 = vcvt.s32.f32 %v1324
  %v1327 = vcvt.s32.f32 %v1325
  %1328 = vmin.xlane.f32.xlu0 %v1327
  %v1329 = vpop.xlane.xlu0 %1328
  %vm1330 = vcmp.eq.f32.partialorder %v1327, %v1329
  %v1331 = vsel %vm1330, %v1326, inf
  %1332 = vmin.xlane.f32.xlu0 %v1331
  %v1333 = vpop.xlane.xlu0 %1332
  %v1334 = vcvt.f32.s32 %v1333
  %v1335 = vcvt.f32.s32 %v1329
  %v1336 = vshll.u32 %v1335, 16
  %v1337 = vadd.s32 %v1336, %v1334
  %v1338 = vand.u32 %v1189, 65535
  %v1339 = vshra.s32 %v1189, 16
  %v1340 = vcvt.s32.f32 %v1338
  %v1341 = vcvt.s32.f32 %v1339
  %1342 = vmin.xlane.f32.xlu0 %v1341
  %v1343 = vpop.xlane.xlu0 %1342
  %vm1344 = vcmp.eq.f32.partialorder %v1341, %v1343
  %v1345 = vsel %vm1344, %v1340, inf
  %1346 = vmin.xlane.f32.xlu0 %v1345
  %v1347 = vpop.xlane.xlu0 %1346
  %v1348 = vcvt.f32.s32 %v1347
  %v1349 = vcvt.f32.s32 %v1343
  %v1350 = vshll.u32 %v1349, 16
  %v1351 = vadd.s32 %v1350, %v1348
  %v1352 = vand.u32 %v1190, 65535
  %v1353 = vshra.s32 %v1190, 16
  %v1354 = vcvt.s32.f32 %v1352
  %v1355 = vcvt.s32.f32 %v1353
  %1356 = vmin.xlane.f32.xlu0 %v1355
  %v1357 = vpop.xlane.xlu0 %1356
  %vm1358 = vcmp.eq.f32.partialorder %v1355, %v1357
  %v1359 = vsel %vm1358, %v1354, inf
  %1360 = vmin.xlane.f32.xlu0 %v1359
  %v1361 = vpop.xlane.xlu0 %1360
  %v1362 = vcvt.f32.s32 %v1361
  %v1363 = vcvt.f32.s32 %v1357
  %v1364 = vshll.u32 %v1363, 16
  %v1365 = vadd.s32 %v1364, %v1362
  %v1366 = vand.u32 %v1191, 65535
  %v1367 = vshra.s32 %v1191, 16
  %v1368 = vcvt.s32.f32 %v1366
  %v1369 = vcvt.s32.f32 %v1367
  %1370 = vmin.xlane.f32.xlu0 %v1369
  %v1371 = vpop.xlane.xlu0 %1370
  %vm1372 = vcmp.eq.f32.partialorder %v1369, %v1371
  %v1373 = vsel %vm1372, %v1368, inf
  %1374 = vmin.xlane.f32.xlu0 %v1373
  %v1375 = vpop.xlane.xlu0 %1374
  %v1376 = vcvt.f32.s32 %v1375
  %v1377 = vcvt.f32.s32 %v1371
  %v1378 = vshll.u32 %v1377, 16
  %v1379 = vadd.s32 %v1378, %v1376
  %v1380 = vand.u32 %v1192, 65535
  %v1381 = vshra.s32 %v1192, 16
  %v1382 = vcvt.s32.f32 %v1380
  %v1383 = vcvt.s32.f32 %v1381
  %1384 = vmin.xlane.f32.xlu0 %v1383
  %v1385 = vpop.xlane.xlu0 %1384
  %vm1386 = vcmp.eq.f32.partialorder %v1383, %v1385
  %v1387 = vsel %vm1386, %v1382, inf
  %1388 = vmin.xlane.f32.xlu0 %v1387
  %v1389 = vpop.xlane.xlu0 %1388
  %v1390 = vcvt.f32.s32 %v1389
  %v1391 = vcvt.f32.s32 %v1385
  %v1392 = vshll.u32 %v1391, 16
  %v1393 = vadd.s32 %v1392, %v1390
  %v1394 = vand.u32 %v1193, 65535
  %v1395 = vshra.s32 %v1193, 16
  %v1396 = vcvt.s32.f32 %v1394
  %v1397 = vcvt.s32.f32 %v1395
  %1398 = vmin.xlane.f32.xlu0 %v1397
  %v1399 = vpop.xlane.xlu0 %1398
  %vm1400 = vcmp.eq.f32.partialorder %v1397, %v1399
  %v1401 = vsel %vm1400, %v1396, inf
  %1402 = vmin.xlane.f32.xlu0 %v1401
  %v1403 = vpop.xlane.xlu0 %1402
  %v1404 = vcvt.f32.s32 %v1403
  %v1405 = vcvt.f32.s32 %v1399
  %v1406 = vshll.u32 %v1405, 16
  %v1407 = vadd.s32 %v1406, %v1404
  %v1408 = vand.u32 %v1194, 65535
  %v1409 = vshra.s32 %v1194, 16
  %v1410 = vcvt.s32.f32 %v1408
  %v1411 = vcvt.s32.f32 %v1409
  %1412 = vmin.xlane.f32.xlu0 %v1411
  %v1413 = vpop.xlane.xlu0 %1412
  %vm1414 = vcmp.eq.f32.partialorder %v1411, %v1413
  %v1415 = vsel %vm1414, %v1410, inf
  %1416 = vmin.xlane.f32.xlu0 %v1415
  %v1417 = vpop.xlane.xlu0 %1416
  %v1418 = vcvt.f32.s32 %v1417
  %v1419 = vcvt.f32.s32 %v1413
  %v1420 = vshll.u32 %v1419, 16
  %v1421 = vadd.s32 %v1420, %v1418
  %v1422 = vand.u32 %v1195, 65535
  %v1423 = vshra.s32 %v1195, 16
  %v1424 = vcvt.s32.f32 %v1422
  %v1425 = vcvt.s32.f32 %v1423
  %1426 = vmin.xlane.f32.xlu0 %v1425
  %v1427 = vpop.xlane.xlu0 %1426
  %vm1428 = vcmp.eq.f32.partialorder %v1425, %v1427
  %v1429 = vsel %vm1428, %v1424, inf
  %1430 = vmin.xlane.f32.xlu0 %v1429
  %v1431 = vpop.xlane.xlu0 %1430
  %v1432 = vcvt.f32.s32 %v1431
  %v1433 = vcvt.f32.s32 %v1427
  %v1434 = vshll.u32 %v1433, 16
  %v1435 = vadd.s32 %v1434, %v1432
  %v1436 = vand.u32 %v1196, 65535
  %v1437 = vshra.s32 %v1196, 16
  %v1438 = vcvt.s32.f32 %v1436
  %v1439 = vcvt.s32.f32 %v1437
  %1440 = vmin.xlane.f32.xlu0 %v1439
  %v1441 = vpop.xlane.xlu0 %1440
  %vm1442 = vcmp.eq.f32.partialorder %v1439, %v1441
  %v1443 = vsel %vm1442, %v1438, inf
  %1444 = vmin.xlane.f32.xlu0 %v1443
  %v1445 = vpop.xlane.xlu0 %1444
  %v1446 = vcvt.f32.s32 %v1445
  %v1447 = vcvt.f32.s32 %v1441
  %v1448 = vshll.u32 %v1447, 16
  %v1449 = vadd.s32 %v1448, %v1446
  %v1450 = vand.u32 %v1197, 65535
  %v1451 = vshra.s32 %v1197, 16
  %v1452 = vcvt.s32.f32 %v1450
  %v1453 = vcvt.s32.f32 %v1451
  %1454 = vmin.xlane.f32.xlu0 %v1453
  %v1455 = vpop.xlane.xlu0 %1454
  %vm1456 = vcmp.eq.f32.partialorder %v1453, %v1455
  %v1457 = vsel %vm1456, %v1452, inf
  %1458 = vmin.xlane.f32.xlu0 %v1457
  %v1459 = vpop.xlane.xlu0 %1458
  %v1460 = vcvt.f32.s32 %v1459
  %v1461 = vcvt.f32.s32 %v1455
  %v1462 = vshll.u32 %v1461, 16
  %v1463 = vadd.s32 %v1462, %v1460
  %v1464 = vand.u32 %v1198, 65535
  %v1465 = vshra.s32 %v1198, 16
  %v1466 = vcvt.s32.f32 %v1464
  %v1467 = vcvt.s32.f32 %v1465
  %1468 = vmin.xlane.f32.xlu0 %v1467
  %v1469 = vpop.xlane.xlu0 %1468
  %vm1470 = vcmp.eq.f32.partialorder %v1467, %v1469
  %v1471 = vsel %vm1470, %v1466, inf
  %1472 = vmin.xlane.f32.xlu0 %v1471
  %v1473 = vpop.xlane.xlu0 %1472
  %v1474 = vcvt.f32.s32 %v1473
  %v1475 = vcvt.f32.s32 %v1469
  %v1476 = vshll.u32 %v1475, 16
  %v1477 = vadd.s32 %v1476, %v1474
  %v1478 = vand.u32 %v1199, 65535
  %v1479 = vshra.s32 %v1199, 16
  %v1480 = vcvt.s32.f32 %v1478
  %v1481 = vcvt.s32.f32 %v1479
  %1482 = vmin.xlane.f32.xlu0 %v1481
  %v1483 = vpop.xlane.xlu0 %1482
  %vm1484 = vcmp.eq.f32.partialorder %v1481, %v1483
  %v1485 = vsel %vm1484, %v1480, inf
  %1486 = vmin.xlane.f32.xlu0 %v1485
  %v1487 = vpop.xlane.xlu0 %1486
  %v1488 = vcvt.f32.s32 %v1487
  %v1489 = vcvt.f32.s32 %v1483
  %v1490 = vshll.u32 %v1489, 16
  %v1491 = vadd.s32 %v1490, %v1488
  %v1492 = vand.u32 %v1200, 65535
  %v1493 = vshra.s32 %v1200, 16
  %v1494 = vcvt.s32.f32 %v1492
  %v1495 = vcvt.s32.f32 %v1493
  %1496 = vmin.xlane.f32.xlu0 %v1495
  %v1497 = vpop.xlane.xlu0 %1496
  %vm1498 = vcmp.eq.f32.partialorder %v1495, %v1497
  %v1499 = vsel %vm1498, %v1494, inf
  %1500 = vmin.xlane.f32.xlu0 %v1499
  %v1501 = vpop.xlane.xlu0 %1500
  %v1502 = vcvt.f32.s32 %v1501
  %v1503 = vcvt.f32.s32 %v1497
  %v1504 = vshll.u32 %v1503, 16
  %v1505 = vadd.s32 %v1504, %v1502
  %v1506 = vand.u32 %v1201, 65535
  %v1507 = vshra.s32 %v1201, 16
  %v1508 = vcvt.s32.f32 %v1506
  %v1509 = vcvt.s32.f32 %v1507
  %1510 = vmin.xlane.f32.xlu0 %v1509
  %v1511 = vpop.xlane.xlu0 %1510
  %vm1512 = vcmp.eq.f32.partialorder %v1509, %v1511
  %v1513 = vsel %vm1512, %v1508, inf
  %1514 = vmin.xlane.f32.xlu0 %v1513
  %v1515 = vpop.xlane.xlu0 %1514
  %v1516 = vcvt.f32.s32 %v1515
  %v1517 = vcvt.f32.s32 %v1511
  %v1518 = vshll.u32 %v1517, 16
  %v1519 = vadd.s32 %v1518, %v1516
  %v1520 = vand.u32 %v1202, 65535
  %v1521 = vshra.s32 %v1202, 16
  %v1522 = vcvt.s32.f32 %v1520
  %v1523 = vcvt.s32.f32 %v1521
  %1524 = vmin.xlane.f32.xlu0 %v1523
  %v1525 = vpop.xlane.xlu0 %1524
  %vm1526 = vcmp.eq.f32.partialorder %v1523, %v1525
  %v1527 = vsel %vm1526, %v1522, inf
  %1528 = vmin.xlane.f32.xlu0 %v1527
  %v1529 = vpop.xlane.xlu0 %1528
  %v1530 = vcvt.f32.s32 %v1529
  %v1531 = vcvt.f32.s32 %v1525
  %v1532 = vshll.u32 %v1531, 16
  %v1533 = vadd.s32 %v1532, %v1530
  %v1534 = vand.u32 %v1203, 65535
  %v1535 = vshra.s32 %v1203, 16
  %v1536 = vcvt.s32.f32 %v1534
  %v1537 = vcvt.s32.f32 %v1535
  %1538 = vmin.xlane.f32.xlu0 %v1537
  %v1539 = vpop.xlane.xlu0 %1538
  %vm1540 = vcmp.eq.f32.partialorder %v1537, %v1539
  %v1541 = vsel %vm1540, %v1536, inf
  %1542 = vmin.xlane.f32.xlu0 %v1541
  %v1543 = vpop.xlane.xlu0 %1542
  %v1544 = vcvt.f32.s32 %v1543
  %v1545 = vcvt.f32.s32 %v1539
  %v1546 = vshll.u32 %v1545, 16
  %v1547 = vadd.s32 %v1546, %v1544
  %v1548 = vand.u32 %v1204, 65535
  %v1549 = vshra.s32 %v1204, 16
  %v1550 = vcvt.s32.f32 %v1548
  %v1551 = vcvt.s32.f32 %v1549
  %1552 = vmin.xlane.f32.xlu0 %v1551
  %v1553 = vpop.xlane.xlu0 %1552
  %vm1554 = vcmp.eq.f32.partialorder %v1551, %v1553
  %v1555 = vsel %vm1554, %v1550, inf
  %1556 = vmin.xlane.f32.xlu0 %v1555
  %v1557 = vpop.xlane.xlu0 %1556
  %v1558 = vcvt.f32.s32 %v1557
  %v1559 = vcvt.f32.s32 %v1553
  %v1560 = vshll.u32 %v1559, 16
  %v1561 = vadd.s32 %v1560, %v1558
  %v1562 = vand.u32 %v1205, 65535
  %v1563 = vshra.s32 %v1205, 16
  %v1564 = vcvt.s32.f32 %v1562
  %v1565 = vcvt.s32.f32 %v1563
  %1566 = vmin.xlane.f32.xlu0 %v1565
  %v1567 = vpop.xlane.xlu0 %1566
  %vm1568 = vcmp.eq.f32.partialorder %v1565, %v1567
  %v1569 = vsel %vm1568, %v1564, inf
  %1570 = vmin.xlane.f32.xlu0 %v1569
  %v1571 = vpop.xlane.xlu0 %1570
  %v1572 = vcvt.f32.s32 %v1571
  %v1573 = vcvt.f32.s32 %v1567
  %v1574 = vshll.u32 %v1573, 16
  %v1575 = vadd.s32 %v1574, %v1572
  %v1576 = vand.u32 %v1206, 65535
  %v1577 = vshra.s32 %v1206, 16
  %v1578 = vcvt.s32.f32 %v1576
  %v1579 = vcvt.s32.f32 %v1577
  %1580 = vmin.xlane.f32.xlu0 %v1579
  %v1581 = vpop.xlane.xlu0 %1580
  %vm1582 = vcmp.eq.f32.partialorder %v1579, %v1581
  %v1583 = vsel %vm1582, %v1578, inf
  %1584 = vmin.xlane.f32.xlu0 %v1583
  %v1585 = vpop.xlane.xlu0 %1584
  %v1586 = vcvt.f32.s32 %v1585
  %v1587 = vcvt.f32.s32 %v1581
  %v1588 = vshll.u32 %v1587, 16
  %v1589 = vadd.s32 %v1588, %v1586
  %v1590 = vand.u32 %v1207, 65535
  %v1591 = vshra.s32 %v1207, 16
  %v1592 = vcvt.s32.f32 %v1590
  %v1593 = vcvt.s32.f32 %v1591
  %1594 = vmin.xlane.f32.xlu0 %v1593
  %v1595 = vpop.xlane.xlu0 %1594
  %vm1596 = vcmp.eq.f32.partialorder %v1593, %v1595
  %v1597 = vsel %vm1596, %v1592, inf
  %1598 = vmin.xlane.f32.xlu0 %v1597
  %v1599 = vpop.xlane.xlu0 %1598
  %v1600 = vcvt.f32.s32 %v1599
  %v1601 = vcvt.f32.s32 %v1595
  %v1602 = vshll.u32 %v1601, 16
  %v1603 = vadd.s32 %v1602, %v1600
  %v1604 = vand.u32 %v1208, 65535
  %v1605 = vshra.s32 %v1208, 16
  %v1606 = vcvt.s32.f32 %v1604
  %v1607 = vcvt.s32.f32 %v1605
  %1608 = vmin.xlane.f32.xlu0 %v1607
  %v1609 = vpop.xlane.xlu0 %1608
  %vm1610 = vcmp.eq.f32.partialorder %v1607, %v1609
  %v1611 = vsel %vm1610, %v1606, inf
  %1612 = vmin.xlane.f32.xlu0 %v1611
  %v1613 = vpop.xlane.xlu0 %1612
  %v1614 = vcvt.f32.s32 %v1613
  %v1615 = vcvt.f32.s32 %v1609
  %v1616 = vshll.u32 %v1615, 16
  %v1617 = vadd.s32 %v1616, %v1614
  %v1618 = vand.u32 %v1209, 65535
  %v1619 = vshra.s32 %v1209, 16
  %v1620 = vcvt.s32.f32 %v1618
  %v1621 = vcvt.s32.f32 %v1619
  %1622 = vmin.xlane.f32.xlu0 %v1621
  %v1623 = vpop.xlane.xlu0 %1622
  %vm1624 = vcmp.eq.f32.partialorder %v1621, %v1623
  %v1625 = vsel %vm1624, %v1620, inf
  %1626 = vmin.xlane.f32.xlu0 %v1625
  %v1627 = vpop.xlane.xlu0 %1626
  %v1628 = vcvt.f32.s32 %v1627
  %v1629 = vcvt.f32.s32 %v1623
  %v1630 = vshll.u32 %v1629, 16
  %v1631 = vadd.s32 %v1630, %v1628
  %v1632 = vand.u32 %v1210, 65535
  %v1633 = vshra.s32 %v1210, 16
  %v1634 = vcvt.s32.f32 %v1632
  %v1635 = vcvt.s32.f32 %v1633
  %1636 = vmin.xlane.f32.xlu0 %v1635
  %v1637 = vpop.xlane.xlu0 %1636
  %vm1638 = vcmp.eq.f32.partialorder %v1635, %v1637
  %v1639 = vsel %vm1638, %v1634, inf
  %1640 = vmin.xlane.f32.xlu0 %v1639
  %v1641 = vpop.xlane.xlu0 %1640
  %v1642 = vcvt.f32.s32 %v1641
  %v1643 = vcvt.f32.s32 %v1637
  %v1644 = vshll.u32 %v1643, 16
  %v1645 = vadd.s32 %v1644, %v1642
  %v1646 = vand.u32 %v1211, 65535
  %v1647 = vshra.s32 %v1211, 16
  %v1648 = vcvt.s32.f32 %v1646
  %v1649 = vcvt.s32.f32 %v1647
  %1650 = vmin.xlane.f32.xlu0 %v1649
  %v1651 = vpop.xlane.xlu0 %1650
  %vm1652 = vcmp.eq.f32.partialorder %v1649, %v1651
  %v1653 = vsel %vm1652, %v1648, inf
  %1654 = vmin.xlane.f32.xlu0 %v1653
  %v1655 = vpop.xlane.xlu0 %1654
  %v1656 = vcvt.f32.s32 %v1655
  %v1657 = vcvt.f32.s32 %v1651
  %v1658 = vshll.u32 %v1657, 16
  %v1659 = vadd.s32 %v1658, %v1656
  %vm1660 = vcmp.eq.s32.totalorder %v689, %v1225
  %vm1661 = vcmp.eq.s32.totalorder %v689, %v1239
  %vm1662 = vcmp.eq.s32.totalorder %v689, %v1253
  %vm1663 = vcmp.eq.s32.totalorder %v689, %v1267
  %vm1664 = vcmp.eq.s32.totalorder %v689, %v1281
  %vm1665 = vcmp.eq.s32.totalorder %v689, %v1295
  %vm1666 = vcmp.eq.s32.totalorder %v689, %v1309
  %vm1667 = vcmp.eq.s32.totalorder %v689, %v1323
  %vm1668 = vcmp.eq.s32.totalorder %v689, %v1337
  %vm1669 = vcmp.eq.s32.totalorder %v689, %v1351
  %vm1670 = vcmp.eq.s32.totalorder %v689, %v1365
  %vm1671 = vcmp.eq.s32.totalorder %v689, %v1379
  %vm1672 = vcmp.eq.s32.totalorder %v689, %v1393
  %vm1673 = vcmp.eq.s32.totalorder %v689, %v1407
  %vm1674 = vcmp.eq.s32.totalorder %v689, %v1421
  %vm1675 = vcmp.eq.s32.totalorder %v689, %v1435
  %vm1676 = vcmp.eq.s32.totalorder %v689, %v1449
  %vm1677 = vcmp.eq.s32.totalorder %v689, %v1463
  %vm1678 = vcmp.eq.s32.totalorder %v689, %v1477
  %vm1679 = vcmp.eq.s32.totalorder %v689, %v1491
  %vm1680 = vcmp.eq.s32.totalorder %v689, %v1505
  %vm1681 = vcmp.eq.s32.totalorder %v689, %v1519
  %vm1682 = vcmp.eq.s32.totalorder %v689, %v1533
  %vm1683 = vcmp.eq.s32.totalorder %v689, %v1547
  %vm1684 = vcmp.eq.s32.totalorder %v689, %v1561
  %vm1685 = vcmp.eq.s32.totalorder %v689, %v1575
  %vm1686 = vcmp.eq.s32.totalorder %v689, %v1589
  %vm1687 = vcmp.eq.s32.totalorder %v689, %v1603
  %vm1688 = vcmp.eq.s32.totalorder %v689, %v1617
  %vm1689 = vcmp.eq.s32.totalorder %v689, %v1631
  %vm1690 = vcmp.eq.s32.totalorder %v689, %v1645
  %vm1691 = vcmp.eq.s32.totalorder %v689, %v1659
  %v1692 = vsel %vm1660, 1, 0
  %v1693 = vsel %vm1661, 1, 0
  %v1694 = vsel %vm1662, 1, 0
  %v1695 = vsel %vm1663, 1, 0
  %v1696 = vsel %vm1664, 1, 0
  %v1697 = vsel %vm1665, 1, 0
  %v1698 = vsel %vm1666, 1, 0
  %v1699 = vsel %vm1667, 1, 0
  %v1700 = vsel %vm1668, 1, 0
  %v1701 = vsel %vm1669, 1, 0
  %v1702 = vsel %vm1670, 1, 0
  %v1703 = vsel %vm1671, 1, 0
  %v1704 = vsel %vm1672, 1, 0
  %v1705 = vsel %vm1673, 1, 0
  %v1706 = vsel %vm1674, 1, 0
  %v1707 = vsel %vm1675, 1, 0
  %v1708 = vsel %vm1676, 1, 0
  %v1709 = vsel %vm1677, 1, 0
  %v1710 = vsel %vm1678, 1, 0
  %v1711 = vsel %vm1679, 1, 0
  %v1712 = vsel %vm1680, 1, 0
  %v1713 = vsel %vm1681, 1, 0
  %v1714 = vsel %vm1682, 1, 0
  %v1715 = vsel %vm1683, 1, 0
  %v1716 = vsel %vm1684, 1, 0
  %v1717 = vsel %vm1685, 1, 0
  %v1718 = vsel %vm1686, 1, 0
  %v1719 = vsel %vm1687, 1, 0
  %v1720 = vsel %vm1688, 1, 0
  %v1721 = vsel %vm1689, 1, 0
  %v1722 = vsel %vm1690, 1, 0
  %v1723 = vsel %vm1691, 1, 0
  %v1724 = vcvt.s32.f32 %v1692
  %v1725 = vcvt.s32.f32 %v1693
  %v1726 = vcvt.s32.f32 %v1694
  %v1727 = vcvt.s32.f32 %v1695
  %v1728 = vcvt.s32.f32 %v1696
  %v1729 = vcvt.s32.f32 %v1697
  %v1730 = vcvt.s32.f32 %v1698
  %v1731 = vcvt.s32.f32 %v1699
  %v1732 = vcvt.s32.f32 %v1700
  %v1733 = vcvt.s32.f32 %v1701
  %v1734 = vcvt.s32.f32 %v1702
  %v1735 = vcvt.s32.f32 %v1703
  %v1736 = vcvt.s32.f32 %v1704
  %v1737 = vcvt.s32.f32 %v1705
  %v1738 = vcvt.s32.f32 %v1706
  %v1739 = vcvt.s32.f32 %v1707
  %v1740 = vcvt.s32.f32 %v1708
  %v1741 = vcvt.s32.f32 %v1709
  %v1742 = vcvt.s32.f32 %v1710
  %v1743 = vcvt.s32.f32 %v1711
  %v1744 = vcvt.s32.f32 %v1712
  %v1745 = vcvt.s32.f32 %v1713
  %v1746 = vcvt.s32.f32 %v1714
  %v1747 = vcvt.s32.f32 %v1715
  %v1748 = vcvt.s32.f32 %v1716
  %v1749 = vcvt.s32.f32 %v1717
  %v1750 = vcvt.s32.f32 %v1718
  %v1751 = vcvt.s32.f32 %v1719
  %v1752 = vcvt.s32.f32 %v1720
  %v1753 = vcvt.s32.f32 %v1721
  %v1754 = vcvt.s32.f32 %v1722
  %v1755 = vcvt.s32.f32 %v1723
  %v1756 = vld [vmem:[%s5] sm:$0xff]
  %v1757 = vld [vmem:[%s5 + $0x8] sm:$0xff]
  %v1758 = vld [vmem:[%s5 + $0x10] sm:$0xff]
  %v1759 = vld [vmem:[%s5 + $0x18] sm:$0xff]
  %v1760 = vld [vmem:[%s5 + $0x20] sm:$0xff]
  %v1761 = vld [vmem:[%s5 + $0x28] sm:$0xff]
  %v1762 = vld [vmem:[%s5 + $0x30] sm:$0xff]
  %v1763 = vld [vmem:[%s5 + $0x38] sm:$0xff]
  %v1764 = vld [vmem:[%s5 + $0x40] sm:$0xff]
  %v1765 = vld [vmem:[%s5 + $0x48] sm:$0xff]
  %v1766 = vld [vmem:[%s5 + $0x50] sm:$0xff]
  %v1767 = vld [vmem:[%s5 + $0x58] sm:$0xff]
  %v1768 = vld [vmem:[%s5 + $0x60] sm:$0xff]
  %v1769 = vld [vmem:[%s5 + $0x68] sm:$0xff]
  %v1770 = vld [vmem:[%s5 + $0x70] sm:$0xff]
  %v1771 = vld [vmem:[%s5 + $0x78] sm:$0xff]
  %1772 = vmatprep.subr.mxu0 0.0
  %1773 = vmatpush1.msra.mxu0 %v1771
  %1774 = vmatprep.subr.mxu0 0.0
  %1775 = vmatpush1.msra.mxu0 %v1770
  %1776 = vmatprep.subr.mxu0 0.0
  %1777 = vmatpush1.msra.mxu0 %v1769
  %1778 = vmatprep.subr.mxu0 0.0
  %1779 = vmatpush1.msra.mxu0 %v1768
  %1780 = vmatprep.subr.mxu0 0.0
  %1781 = vmatpush1.msra.mxu0 %v1767
  %1782 = vmatprep.subr.mxu0 0.0
  %1783 = vmatpush1.msra.mxu0 %v1766
  %1784 = vmatprep.subr.mxu0 0.0
  %1785 = vmatpush1.msra.mxu0 %v1765
  %1786 = vmatprep.subr.mxu0 0.0
  %1787 = vmatpush1.msra.mxu0 %v1764
  %1788 = vmatprep.subr.mxu0 0.0
  %1789 = vmatpush1.msra.mxu0 %v1763
  %1790 = vmatprep.subr.mxu0 0.0
  %1791 = vmatpush1.msra.mxu0 %v1762
  %1792 = vmatprep.subr.mxu0 0.0
  %1793 = vmatpush1.msra.mxu0 %v1761
  %1794 = vmatprep.subr.mxu0 0.0
  %1795 = vmatpush1.msra.mxu0 %v1760
  %1796 = vmatprep.subr.mxu0 0.0
  %1797 = vmatpush1.msra.mxu0 %v1759
  %1798 = vmatprep.subr.mxu0 0.0
  %1799 = vmatpush1.msra.mxu0 %v1758
  %1800 = vmatprep.subr.mxu0 0.0
  %1801 = vmatpush1.msra.mxu0 %v1757
  %1802 = vmatprep.subr.mxu0 0.0
  %1803 = vmatpush1.msra.mxu0 %v1756
  %1804 = vmatprep.subr.mxu0 0.0
  %1805 = vmatpush2.msra.mxu0 0.0
  %1806 = vmatprep.subr.mxu0 0.0
  %1807 = vmatpush2.msra.mxu0 0.0
  %1808 = vmatprep.subr.mxu0 0.0
  %1809 = vmatpush2.msra.mxu0 0.0
  %1810 = vmatprep.subr.mxu0 0.0
  %1811 = vmatpush2.msra.mxu0 0.0
  %1812 = vmatprep.subr.mxu0 0.0
  %1813 = vmatpush2.msra.mxu0 0.0
  %1814 = vmatprep.subr.mxu0 0.0
  %1815 = vmatpush2.msra.mxu0 0.0
  %1816 = vmatprep.subr.mxu0 0.0
  %1817 = vmatpush2.msra.mxu0 0.0
  %1818 = vmatprep.subr.mxu0 0.0
  %1819 = vmatpush2.msra.mxu0 0.0
  %1820 = vmatprep.subr.mxu0 0.0
  %1821 = vmatpush2.msra.mxu0 0.0
  %1822 = vmatprep.subr.mxu0 0.0
  %1823 = vmatpush2.msra.mxu0 0.0
  %1824 = vmatprep.subr.mxu0 0.0
  %1825 = vmatpush2.msra.mxu0 0.0
  %1826 = vmatprep.subr.mxu0 0.0
  %1827 = vmatpush2.msra.mxu0 0.0
  %1828 = vmatprep.subr.mxu0 0.0
  %1829 = vmatpush2.msra.mxu0 0.0
  %1830 = vmatprep.subr.mxu0 0.0
  %1831 = vmatpush2.msra.mxu0 0.0
  %1832 = vmatprep.subr.mxu0 0.0
  %1833 = vmatpush2.msra.mxu0 0.0
  %1834 = vmatprep.subr.mxu0 0.0
  %1835 = vmatpush2.msra.mxu0 0.0
  %1836 = vmatprep.mubr.f32.mxu0 0.0
  %1837 = vmatmul.mubr.f32.gmra.mxu0 %v1724
  %v1838 = vpop.f32.mrf.mxu0
  %v1839 = vadd.f32 0.0, %v1838
  %v1840 = vpop.f32.mrf.mxu0
  %1841 = vmatprep.mubr.f32.mxu0 0.0
  %1842 = vmatmul.mubr.f32.gmra.mxu0 %v1725
  %v1843 = vpop.f32.mrf.mxu0
  %v1844 = vadd.f32 0.0, %v1843
  %v1845 = vpop.f32.mrf.mxu0
  %1846 = vmatprep.mubr.f32.mxu0 0.0
  %1847 = vmatmul.mubr.f32.gmra.mxu0 %v1726
  %v1848 = vpop.f32.mrf.mxu0
  %v1849 = vadd.f32 0.0, %v1848
  %v1850 = vpop.f32.mrf.mxu0
  %1851 = vmatprep.mubr.f32.mxu0 0.0
  %1852 = vmatmul.mubr.f32.gmra.mxu0 %v1727
  %v1853 = vpop.f32.mrf.mxu0
  %v1854 = vadd.f32 0.0, %v1853
  %v1855 = vpop.f32.mrf.mxu0
  %1856 = vmatprep.mubr.f32.mxu0 0.0
  %1857 = vmatmul.mubr.f32.gmra.mxu0 %v1728
  %v1858 = vpop.f32.mrf.mxu0
  %v1859 = vadd.f32 0.0, %v1858
  %v1860 = vpop.f32.mrf.mxu0
  %1861 = vmatprep.mubr.f32.mxu0 0.0
  %1862 = vmatmul.mubr.f32.gmra.mxu0 %v1729
  %v1863 = vpop.f32.mrf.mxu0
  %v1864 = vadd.f32 0.0, %v1863
  %v1865 = vpop.f32.mrf.mxu0
  %1866 = vmatprep.mubr.f32.mxu0 0.0
  %1867 = vmatmul.mubr.f32.gmra.mxu0 %v1730
  %v1868 = vpop.f32.mrf.mxu0
  %v1869 = vadd.f32 0.0, %v1868
  %v1870 = vpop.f32.mrf.mxu0
  %1871 = vmatprep.mubr.f32.mxu0 0.0
  %1872 = vmatmul.mubr.f32.gmra.mxu0 %v1731
  %v1873 = vpop.f32.mrf.mxu0
  %v1874 = vadd.f32 0.0, %v1873
  %v1875 = vpop.f32.mrf.mxu0
  %1876 = vmatprep.mubr.f32.mxu0 0.0
  %1877 = vmatmul.mubr.f32.gmra.mxu0 %v1732
  %v1878 = vpop.f32.mrf.mxu0
  %v1879 = vadd.f32 0.0, %v1878
  %v1880 = vpop.f32.mrf.mxu0
  %1881 = vmatprep.mubr.f32.mxu0 0.0
  %1882 = vmatmul.mubr.f32.gmra.mxu0 %v1733
  %v1883 = vpop.f32.mrf.mxu0
  %v1884 = vadd.f32 0.0, %v1883
  %v1885 = vpop.f32.mrf.mxu0
  %1886 = vmatprep.mubr.f32.mxu0 0.0
  %1887 = vmatmul.mubr.f32.gmra.mxu0 %v1734
  %v1888 = vpop.f32.mrf.mxu0
  %v1889 = vadd.f32 0.0, %v1888
  %v1890 = vpop.f32.mrf.mxu0
  %1891 = vmatprep.mubr.f32.mxu0 0.0
  %1892 = vmatmul.mubr.f32.gmra.mxu0 %v1735
  %v1893 = vpop.f32.mrf.mxu0
  %v1894 = vadd.f32 0.0, %v1893
  %v1895 = vpop.f32.mrf.mxu0
  %1896 = vmatprep.mubr.f32.mxu0 0.0
  %1897 = vmatmul.mubr.f32.gmra.mxu0 %v1736
  %v1898 = vpop.f32.mrf.mxu0
  %v1899 = vadd.f32 0.0, %v1898
  %v1900 = vpop.f32.mrf.mxu0
  %1901 = vmatprep.mubr.f32.mxu0 0.0
  %1902 = vmatmul.mubr.f32.gmra.mxu0 %v1737
  %v1903 = vpop.f32.mrf.mxu0
  %v1904 = vadd.f32 0.0, %v1903
  %v1905 = vpop.f32.mrf.mxu0
  %1906 = vmatprep.mubr.f32.mxu0 0.0
  %1907 = vmatmul.mubr.f32.gmra.mxu0 %v1738
  %v1908 = vpop.f32.mrf.mxu0
  %v1909 = vadd.f32 0.0, %v1908
  %v1910 = vpop.f32.mrf.mxu0
  %1911 = vmatprep.mubr.f32.mxu0 0.0
  %1912 = vmatmul.mubr.f32.gmra.mxu0 %v1739
  %v1913 = vpop.f32.mrf.mxu0
  %v1914 = vadd.f32 0.0, %v1913
  %v1915 = vpop.f32.mrf.mxu0
  %1916 = vmatprep.mubr.f32.mxu0 0.0
  %1917 = vmatmul.mubr.f32.gmra.mxu0 %v1740
  %v1918 = vpop.f32.mrf.mxu0
  %v1919 = vadd.f32 0.0, %v1918
  %v1920 = vpop.f32.mrf.mxu0
  %1921 = vmatprep.mubr.f32.mxu0 0.0
  %1922 = vmatmul.mubr.f32.gmra.mxu0 %v1741
  %v1923 = vpop.f32.mrf.mxu0
  %v1924 = vadd.f32 0.0, %v1923
  %v1925 = vpop.f32.mrf.mxu0
  %1926 = vmatprep.mubr.f32.mxu0 0.0
  %1927 = vmatmul.mubr.f32.gmra.mxu0 %v1742
  %v1928 = vpop.f32.mrf.mxu0
  %v1929 = vadd.f32 0.0, %v1928
  %v1930 = vpop.f32.mrf.mxu0
  %1931 = vmatprep.mubr.f32.mxu0 0.0
  %1932 = vmatmul.mubr.f32.gmra.mxu0 %v1743
  %v1933 = vpop.f32.mrf.mxu0
  %v1934 = vadd.f32 0.0, %v1933
  %v1935 = vpop.f32.mrf.mxu0
  %1936 = vmatprep.mubr.f32.mxu0 0.0
  %1937 = vmatmul.mubr.f32.gmra.mxu0 %v1744
  %v1938 = vpop.f32.mrf.mxu0
  %v1939 = vadd.f32 0.0, %v1938
  %v1940 = vpop.f32.mrf.mxu0
  %1941 = vmatprep.mubr.f32.mxu0 0.0
  %1942 = vmatmul.mubr.f32.gmra.mxu0 %v1745
  %v1943 = vpop.f32.mrf.mxu0
  %v1944 = vadd.f32 0.0, %v1943
  %v1945 = vpop.f32.mrf.mxu0
  %1946 = vmatprep.mubr.f32.mxu0 0.0
  %1947 = vmatmul.mubr.f32.gmra.mxu0 %v1746
  %v1948 = vpop.f32.mrf.mxu0
  %v1949 = vadd.f32 0.0, %v1948
  %v1950 = vpop.f32.mrf.mxu0
  %1951 = vmatprep.mubr.f32.mxu0 0.0
  %1952 = vmatmul.mubr.f32.gmra.mxu0 %v1747
  %v1953 = vpop.f32.mrf.mxu0
  %v1954 = vadd.f32 0.0, %v1953
  %v1955 = vpop.f32.mrf.mxu0
  %1956 = vmatprep.mubr.f32.mxu0 0.0
  %1957 = vmatmul.mubr.f32.gmra.mxu0 %v1748
  %v1958 = vpop.f32.mrf.mxu0
  %v1959 = vadd.f32 0.0, %v1958
  %v1960 = vpop.f32.mrf.mxu0
  %1961 = vmatprep.mubr.f32.mxu0 0.0
  %1962 = vmatmul.mubr.f32.gmra.mxu0 %v1749
  %v1963 = vpop.f32.mrf.mxu0
  %v1964 = vadd.f32 0.0, %v1963
  %v1965 = vpop.f32.mrf.mxu0
  %1966 = vmatprep.mubr.f32.mxu0 0.0
  %1967 = vmatmul.mubr.f32.gmra.mxu0 %v1750
  %v1968 = vpop.f32.mrf.mxu0
  %v1969 = vadd.f32 0.0, %v1968
  %v1970 = vpop.f32.mrf.mxu0
  %1971 = vmatprep.mubr.f32.mxu0 0.0
  %1972 = vmatmul.mubr.f32.gmra.mxu0 %v1751
  %v1973 = vpop.f32.mrf.mxu0
  %v1974 = vadd.f32 0.0, %v1973
  %v1975 = vpop.f32.mrf.mxu0
  %1976 = vmatprep.mubr.f32.mxu0 0.0
  %1977 = vmatmul.mubr.f32.gmra.mxu0 %v1752
  %v1978 = vpop.f32.mrf.mxu0
  %v1979 = vadd.f32 0.0, %v1978
  %v1980 = vpop.f32.mrf.mxu0
  %1981 = vmatprep.mubr.f32.mxu0 0.0
  %1982 = vmatmul.mubr.f32.gmra.mxu0 %v1753
  %v1983 = vpop.f32.mrf.mxu0
  %v1984 = vadd.f32 0.0, %v1983
  %v1985 = vpop.f32.mrf.mxu0
  %1986 = vmatprep.mubr.f32.mxu0 0.0
  %1987 = vmatmul.mubr.f32.gmra.mxu0 %v1754
  %v1988 = vpop.f32.mrf.mxu0
  %v1989 = vadd.f32 0.0, %v1988
  %v1990 = vpop.f32.mrf.mxu0
  %1991 = vmatprep.mubr.f32.mxu0 0.0
  %1992 = vmatmul.mubr.f32.gmra.mxu0 %v1755
  %v1993 = vpop.f32.mrf.mxu0
  %v1994 = vadd.f32 0.0, %v1993
  %v1995 = vpop.f32.mrf.mxu0
  %1996 = vdwg.mxu0
  %v1997 = vsub.f32 %v561, %v1839
  %v1998 = vsub.f32 %v564, %v1844
  %v1999 = vsub.f32 %v569, %v1849
  %v2000 = vsub.f32 %v572, %v1854
  %v2001 = vsub.f32 %v577, %v1859
  %v2002 = vsub.f32 %v580, %v1864
  %v2003 = vsub.f32 %v585, %v1869
  %v2004 = vsub.f32 %v588, %v1874
  %v2005 = vsub.f32 %v593, %v1879
  %v2006 = vsub.f32 %v596, %v1884
  %v2007 = vsub.f32 %v601, %v1889
  %v2008 = vsub.f32 %v604, %v1894
  %v2009 = vsub.f32 %v609, %v1899
  %v2010 = vsub.f32 %v612, %v1904
  %v2011 = vsub.f32 %v617, %v1909
  %v2012 = vsub.f32 %v620, %v1914
  %v2013 = vsub.f32 %v625, %v1919
  %v2014 = vsub.f32 %v628, %v1924
  %v2015 = vsub.f32 %v633, %v1929
  %v2016 = vsub.f32 %v636, %v1934
  %v2017 = vsub.f32 %v641, %v1939
  %v2018 = vsub.f32 %v644, %v1944
  %v2019 = vsub.f32 %v649, %v1949
  %v2020 = vsub.f32 %v652, %v1954
  %v2021 = vsub.f32 %v657, %v1959
  %v2022 = vsub.f32 %v660, %v1964
  %v2023 = vsub.f32 %v665, %v1969
  %v2024 = vsub.f32 %v668, %v1974
  %v2025 = vsub.f32 %v673, %v1979
  %v2026 = vsub.f32 %v676, %v1984
  %v2027 = vsub.f32 %v681, %v1989
  %v2028 = vsub.f32 %v684, %v1994
  %vm2029 = vcmp.eq.s32.totalorder %v689, 0
  %v2030 = vsel %vm2029, %v1225, 0
  %v2031 = vsel %vm2029, %v1239, 0
  %v2032 = vsel %vm2029, %v1253, 0
  %v2033 = vsel %vm2029, %v1267, 0
  %v2034 = vsel %vm2029, %v1281, 0
  %v2035 = vsel %vm2029, %v1295, 0
  %v2036 = vsel %vm2029, %v1309, 0
  %v2037 = vsel %vm2029, %v1323, 0
  %v2038 = vsel %vm2029, %v1337, 0
  %v2039 = vsel %vm2029, %v1351, 0
  %v2040 = vsel %vm2029, %v1365, 0
  %v2041 = vsel %vm2029, %v1379, 0
  %v2042 = vsel %vm2029, %v1393, 0
  %v2043 = vsel %vm2029, %v1407, 0
  %v2044 = vsel %vm2029, %v1421, 0
  %v2045 = vsel %vm2029, %v1435, 0
  %v2046 = vsel %vm2029, %v1449, 0
  %v2047 = vsel %vm2029, %v1463, 0
  %v2048 = vsel %vm2029, %v1477, 0
  %v2049 = vsel %vm2029, %v1491, 0
  %v2050 = vsel %vm2029, %v1505, 0
  %v2051 = vsel %vm2029, %v1519, 0
  %v2052 = vsel %vm2029, %v1533, 0
  %v2053 = vsel %vm2029, %v1547, 0
  %v2054 = vsel %vm2029, %v1561, 0
  %v2055 = vsel %vm2029, %v1575, 0
  %v2056 = vsel %vm2029, %v1589, 0
  %v2057 = vsel %vm2029, %v1603, 0
  %v2058 = vsel %vm2029, %v1617, 0
  %v2059 = vsel %vm2029, %v1631, 0
  %v2060 = vsel %vm2029, %v1645, 0
  %v2061 = vsel %vm2029, %v1659, 0
  %s2062 = scalar_lea.vmem %s6, 32
  %v2063 = vld [vmem:[%s2062] sm:$0xff]
  %v2064 = vld [vmem:[%s2062 + $0x8] sm:$0xff]
  %v2065 = vld [vmem:[%s2062 + $0x10] sm:$0xff]
  %v2066 = vld [vmem:[%s2062 + $0x18] sm:$0xff]
  %v2068 = vsel %vm694, %v1997, 0
  %v2071 = vsel %vm694, %v1998, 0
  %v2074 = vsel %vm694, %v1999, 0
  %v2077 = vsel %vm694, %v2000, 0
  %v2080 = vsel %vm694, %v2001, 0
  %v2083 = vsel %vm694, %v2002, 0
  %v2086 = vsel %vm694, %v2003, 0
  %v2089 = vsel %vm694, %v2004, 0
  %v2092 = vsel %vm694, %v2005, 0
  %v2095 = vsel %vm694, %v2006, 0
  %v2098 = vsel %vm694, %v2007, 0
  %v2101 = vsel %vm694, %v2008, 0
  %v2104 = vsel %vm694, %v2009, 0
  %v2107 = vsel %vm694, %v2010, 0
  %v2110 = vsel %vm694, %v2011, 0
  %v2113 = vsel %vm694, %v2012, 0
  %v2116 = vsel %vm694, %v2013, 0
  %v2119 = vsel %vm694, %v2014, 0
  %v2122 = vsel %vm694, %v2015, 0
  %v2125 = vsel %vm694, %v2016, 0
  %v2128 = vsel %vm694, %v2017, 0
  %v2131 = vsel %vm694, %v2018, 0
  %v2134 = vsel %vm694, %v2019, 0
  %v2137 = vsel %vm694, %v2020, 0
  %v2140 = vsel %vm694, %v2021, 0
  %v2143 = vsel %vm694, %v2022, 0
  %v2146 = vsel %vm694, %v2023, 0
  %v2149 = vsel %vm694, %v2024, 0
  %v2152 = vsel %vm694, %v2025, 0
  %v2155 = vsel %vm694, %v2026, 0
  %v2158 = vsel %vm694, %v2027, 0
  %v2161 = vsel %vm694, %v2028, 0
  %2163 = vmatprep.subr.mxu0 0.0
  %2164 = vmatpush1.msra.mxu0 0.0
  %2165 = vmatprep.subr.mxu0 0.0
  %2166 = vmatpush1.msra.mxu0 0.0
  %2167 = vmatprep.subr.mxu0 0.0
  %2168 = vmatpush1.msra.mxu0 0.0
  %2169 = vmatprep.subr.mxu0 0.0
  %2170 = vmatpush1.msra.mxu0 0.0
  %2171 = vmatprep.subr.mxu0 0.0
  %2172 = vmatpush1.msra.mxu0 0.0
  %2173 = vmatprep.subr.mxu0 0.0
  %2174 = vmatpush1.msra.mxu0 0.0
  %2175 = vmatprep.subr.mxu0 0.0
  %2176 = vmatpush1.msra.mxu0 0.0
  %2177 = vmatprep.subr.mxu0 0.0
  %2178 = vmatpush1.msra.mxu0 0.0
  %2179 = vmatprep.subr.mxu0 0.0
  %2180 = vmatpush1.msra.mxu0 0.0
  %2181 = vmatprep.subr.mxu0 0.0
  %2182 = vmatpush1.msra.mxu0 0.0
  %2183 = vmatprep.subr.mxu0 0.0
  %2184 = vmatpush1.msra.mxu0 0.0
  %2185 = vmatprep.subr.mxu0 0.0
  %2186 = vmatpush1.msra.mxu0 0.0
  %2187 = vmatprep.subr.mxu0 0.0
  %2188 = vmatpush1.msra.mxu0 %v2066
  %2189 = vmatprep.subr.mxu0 0.0
  %2190 = vmatpush1.msra.mxu0 %v2065
  %2191 = vmatprep.subr.mxu0 0.0
  %2192 = vmatpush1.msra.mxu0 %v2064
  %2193 = vmatprep.subr.mxu0 0.0
  %2194 = vmatpush1.msra.mxu0 %v2063
  %2195 = vmatprep.subr.mxu0 0.0
  %2196 = vmatpush2.msra.mxu0 0.0
  %2197 = vmatprep.subr.mxu0 0.0
  %2198 = vmatpush2.msra.mxu0 0.0
  %2199 = vmatprep.subr.mxu0 0.0
  %2200 = vmatpush2.msra.mxu0 0.0
  %2201 = vmatprep.subr.mxu0 0.0
  %2202 = vmatpush2.msra.mxu0 0.0
  %2203 = vmatprep.subr.mxu0 0.0
  %2204 = vmatpush2.msra.mxu0 0.0
  %2205 = vmatprep.subr.mxu0 0.0
  %2206 = vmatpush2.msra.mxu0 0.0
  %2207 = vmatprep.subr.mxu0 0.0
  %2208 = vmatpush2.msra.mxu0 0.0
  %2209 = vmatprep.subr.mxu0 0.0
  %2210 = vmatpush2.msra.mxu0 0.0
  %2211 = vmatprep.subr.mxu0 0.0
  %2212 = vmatpush2.msra.mxu0 0.0
  %2213 = vmatprep.subr.mxu0 0.0
  %2214 = vmatpush2.msra.mxu0 0.0
  %2215 = vmatprep.subr.mxu0 0.0
  %2216 = vmatpush2.msra.mxu0 0.0
  %2217 = vmatprep.subr.mxu0 0.0
  %2218 = vmatpush2.msra.mxu0 0.0
  %2219 = vmatprep.subr.mxu0 0.0
  %2220 = vmatpush2.msra.mxu0 0.0
  %2221 = vmatprep.subr.mxu0 0.0
  %2222 = vmatpush2.msra.mxu0 0.0
  %2223 = vmatprep.subr.mxu0 0.0
  %2224 = vmatpush2.msra.mxu0 0.0
  %2225 = vmatprep.subr.mxu0 0.0
  %2226 = vmatpush2.msra.mxu0 0.0
  %2227 = vmatprep.mubr.f32.mxu0 0.0
  %2228 = vmatmul.mubr.f32.gmra.mxu0 %v2068
  %v2229 = vpop.f32.mrf.mxu0
  %v2230 = vadd.f32 0.0, %v2229
  %v2231 = vpop.f32.mrf.mxu0
  %2232 = vmatprep.mubr.f32.mxu0 0.0
  %2233 = vmatmul.mubr.f32.gmra.mxu0 %v2071
  %v2234 = vpop.f32.mrf.mxu0
  %v2235 = vadd.f32 0.0, %v2234
  %v2236 = vpop.f32.mrf.mxu0
  %2237 = vmatprep.mubr.f32.mxu0 0.0
  %2238 = vmatmul.mubr.f32.gmra.mxu0 %v2074
  %v2239 = vpop.f32.mrf.mxu0
  %v2240 = vadd.f32 0.0, %v2239
  %v2241 = vpop.f32.mrf.mxu0
  %2242 = vmatprep.mubr.f32.mxu0 0.0
  %2243 = vmatmul.mubr.f32.gmra.mxu0 %v2077
  %v2244 = vpop.f32.mrf.mxu0
  %v2245 = vadd.f32 0.0, %v2244
  %v2246 = vpop.f32.mrf.mxu0
  %2247 = vmatprep.mubr.f32.mxu0 0.0
  %2248 = vmatmul.mubr.f32.gmra.mxu0 %v2080
  %v2249 = vpop.f32.mrf.mxu0
  %v2250 = vadd.f32 0.0, %v2249
  %v2251 = vpop.f32.mrf.mxu0
  %2252 = vmatprep.mubr.f32.mxu0 0.0
  %2253 = vmatmul.mubr.f32.gmra.mxu0 %v2083
  %v2254 = vpop.f32.mrf.mxu0
  %v2255 = vadd.f32 0.0, %v2254
  %v2256 = vpop.f32.mrf.mxu0
  %2257 = vmatprep.mubr.f32.mxu0 0.0
  %2258 = vmatmul.mubr.f32.gmra.mxu0 %v2086
  %v2259 = vpop.f32.mrf.mxu0
  %v2260 = vadd.f32 0.0, %v2259
  %v2261 = vpop.f32.mrf.mxu0
  %2262 = vmatprep.mubr.f32.mxu0 0.0
  %2263 = vmatmul.mubr.f32.gmra.mxu0 %v2089
  %v2264 = vpop.f32.mrf.mxu0
  %v2265 = vadd.f32 0.0, %v2264
  %v2266 = vpop.f32.mrf.mxu0
  %2267 = vmatprep.mubr.f32.mxu0 0.0
  %2268 = vmatmul.mubr.f32.gmra.mxu0 %v2092
  %v2269 = vpop.f32.mrf.mxu0
  %v2270 = vadd.f32 0.0, %v2269
  %v2271 = vpop.f32.mrf.mxu0
  %2272 = vmatprep.mubr.f32.mxu0 0.0
  %2273 = vmatmul.mubr.f32.gmra.mxu0 %v2095
  %v2274 = vpop.f32.mrf.mxu0
  %v2275 = vadd.f32 0.0, %v2274
  %v2276 = vpop.f32.mrf.mxu0
  %2277 = vmatprep.mubr.f32.mxu0 0.0
  %2278 = vmatmul.mubr.f32.gmra.mxu0 %v2098
  %v2279 = vpop.f32.mrf.mxu0
  %v2280 = vadd.f32 0.0, %v2279
  %v2281 = vpop.f32.mrf.mxu0
  %2282 = vmatprep.mubr.f32.mxu0 0.0
  %2283 = vmatmul.mubr.f32.gmra.mxu0 %v2101
  %v2284 = vpop.f32.mrf.mxu0
  %v2285 = vadd.f32 0.0, %v2284
  %v2286 = vpop.f32.mrf.mxu0
  %2287 = vmatprep.mubr.f32.mxu0 0.0
  %2288 = vmatmul.mubr.f32.gmra.mxu0 %v2104
  %v2289 = vpop.f32.mrf.mxu0
  %v2290 = vadd.f32 0.0, %v2289
  %v2291 = vpop.f32.mrf.mxu0
  %2292 = vmatprep.mubr.f32.mxu0 0.0
  %2293 = vmatmul.mubr.f32.gmra.mxu0 %v2107
  %v2294 = vpop.f32.mrf.mxu0
  %v2295 = vadd.f32 0.0, %v2294
  %v2296 = vpop.f32.mrf.mxu0
  %2297 = vmatprep.mubr.f32.mxu0 0.0
  %2298 = vmatmul.mubr.f32.gmra.mxu0 %v2110
  %v2299 = vpop.f32.mrf.mxu0
  %v2300 = vadd.f32 0.0, %v2299
  %v2301 = vpop.f32.mrf.mxu0
  %2302 = vmatprep.mubr.f32.mxu0 0.0
  %2303 = vmatmul.mubr.f32.gmra.mxu0 %v2113
  %v2304 = vpop.f32.mrf.mxu0
  %v2305 = vadd.f32 0.0, %v2304
  %v2306 = vpop.f32.mrf.mxu0
  %2307 = vmatprep.mubr.f32.mxu0 0.0
  %2308 = vmatmul.mubr.f32.gmra.mxu0 %v2116
  %v2309 = vpop.f32.mrf.mxu0
  %v2310 = vadd.f32 0.0, %v2309
  %v2311 = vpop.f32.mrf.mxu0
  %2312 = vmatprep.mubr.f32.mxu0 0.0
  %2313 = vmatmul.mubr.f32.gmra.mxu0 %v2119
  %v2314 = vpop.f32.mrf.mxu0
  %v2315 = vadd.f32 0.0, %v2314
  %v2316 = vpop.f32.mrf.mxu0
  %2317 = vmatprep.mubr.f32.mxu0 0.0
  %2318 = vmatmul.mubr.f32.gmra.mxu0 %v2122
  %v2319 = vpop.f32.mrf.mxu0
  %v2320 = vadd.f32 0.0, %v2319
  %v2321 = vpop.f32.mrf.mxu0
  %2322 = vmatprep.mubr.f32.mxu0 0.0
  %2323 = vmatmul.mubr.f32.gmra.mxu0 %v2125
  %v2324 = vpop.f32.mrf.mxu0
  %v2325 = vadd.f32 0.0, %v2324
  %v2326 = vpop.f32.mrf.mxu0
  %2327 = vmatprep.mubr.f32.mxu0 0.0
  %2328 = vmatmul.mubr.f32.gmra.mxu0 %v2128
  %v2329 = vpop.f32.mrf.mxu0
  %v2330 = vadd.f32 0.0, %v2329
  %v2331 = vpop.f32.mrf.mxu0
  %2332 = vmatprep.mubr.f32.mxu0 0.0
  %2333 = vmatmul.mubr.f32.gmra.mxu0 %v2131
  %v2334 = vpop.f32.mrf.mxu0
  %v2335 = vadd.f32 0.0, %v2334
  %v2336 = vpop.f32.mrf.mxu0
  %2337 = vmatprep.mubr.f32.mxu0 0.0
  %2338 = vmatmul.mubr.f32.gmra.mxu0 %v2134
  %v2339 = vpop.f32.mrf.mxu0
  %v2340 = vadd.f32 0.0, %v2339
  %v2341 = vpop.f32.mrf.mxu0
  %2342 = vmatprep.mubr.f32.mxu0 0.0
  %2343 = vmatmul.mubr.f32.gmra.mxu0 %v2137
  %v2344 = vpop.f32.mrf.mxu0
  %v2345 = vadd.f32 0.0, %v2344
  %v2346 = vpop.f32.mrf.mxu0
  %2347 = vmatprep.mubr.f32.mxu0 0.0
  %2348 = vmatmul.mubr.f32.gmra.mxu0 %v2140
  %v2349 = vpop.f32.mrf.mxu0
  %v2350 = vadd.f32 0.0, %v2349
  %v2351 = vpop.f32.mrf.mxu0
  %2352 = vmatprep.mubr.f32.mxu0 0.0
  %2353 = vmatmul.mubr.f32.gmra.mxu0 %v2143
  %v2354 = vpop.f32.mrf.mxu0
  %v2355 = vadd.f32 0.0, %v2354
  %v2356 = vpop.f32.mrf.mxu0
  %2357 = vmatprep.mubr.f32.mxu0 0.0
  %2358 = vmatmul.mubr.f32.gmra.mxu0 %v2146
  %v2359 = vpop.f32.mrf.mxu0
  %v2360 = vadd.f32 0.0, %v2359
  %v2361 = vpop.f32.mrf.mxu0
  %2362 = vmatprep.mubr.f32.mxu0 0.0
  %2363 = vmatmul.mubr.f32.gmra.mxu0 %v2149
  %v2364 = vpop.f32.mrf.mxu0
  %v2365 = vadd.f32 0.0, %v2364
  %v2366 = vpop.f32.mrf.mxu0
  %2367 = vmatprep.mubr.f32.mxu0 0.0
  %2368 = vmatmul.mubr.f32.gmra.mxu0 %v2152
  %v2369 = vpop.f32.mrf.mxu0
  %v2370 = vadd.f32 0.0, %v2369
  %v2371 = vpop.f32.mrf.mxu0
  %2372 = vmatprep.mubr.f32.mxu0 0.0
  %2373 = vmatmul.mubr.f32.gmra.mxu0 %v2155
  %v2374 = vpop.f32.mrf.mxu0
  %v2375 = vadd.f32 0.0, %v2374
  %v2376 = vpop.f32.mrf.mxu0
  %2377 = vmatprep.mubr.f32.mxu0 0.0
  %2378 = vmatmul.mubr.f32.gmra.mxu0 %v2158
  %v2379 = vpop.f32.mrf.mxu0
  %v2380 = vadd.f32 0.0, %v2379
  %v2381 = vpop.f32.mrf.mxu0
  %2382 = vmatprep.mubr.f32.mxu0 0.0
  %2383 = vmatmul.mubr.f32.gmra.mxu0 %v2161
  %v2384 = vpop.f32.mrf.mxu0
  %v2385 = vadd.f32 0.0, %v2384
  %v2386 = vpop.f32.mrf.mxu0
  %2387 = vdwg.mxu0
  %v2388 = vmul.f32 %v2230, 2.0
  %v2389 = vmul.f32 %v2235, 2.0
  %v2390 = vmul.f32 %v2240, 2.0
  %v2391 = vmul.f32 %v2245, 2.0
  %v2392 = vmul.f32 %v2250, 2.0
  %v2393 = vmul.f32 %v2255, 2.0
  %v2394 = vmul.f32 %v2260, 2.0
  %v2395 = vmul.f32 %v2265, 2.0
  %v2396 = vmul.f32 %v2270, 2.0
  %v2397 = vmul.f32 %v2275, 2.0
  %v2398 = vmul.f32 %v2280, 2.0
  %v2399 = vmul.f32 %v2285, 2.0
  %v2400 = vmul.f32 %v2290, 2.0
  %v2401 = vmul.f32 %v2295, 2.0
  %v2402 = vmul.f32 %v2300, 2.0
  %v2403 = vmul.f32 %v2305, 2.0
  %v2404 = vmul.f32 %v2310, 2.0
  %v2405 = vmul.f32 %v2315, 2.0
  %v2406 = vmul.f32 %v2320, 2.0
  %v2407 = vmul.f32 %v2325, 2.0
  %v2408 = vmul.f32 %v2330, 2.0
  %v2409 = vmul.f32 %v2335, 2.0
  %v2410 = vmul.f32 %v2340, 2.0
  %v2411 = vmul.f32 %v2345, 2.0
  %v2412 = vmul.f32 %v2350, 2.0
  %v2413 = vmul.f32 %v2355, 2.0
  %v2414 = vmul.f32 %v2360, 2.0
  %v2415 = vmul.f32 %v2365, 2.0
  %v2416 = vmul.f32 %v2370, 2.0
  %v2417 = vmul.f32 %v2375, 2.0
  %v2418 = vmul.f32 %v2380, 2.0
  %v2419 = vmul.f32 %v2385, 2.0
  %v2420 = vlaneseq
  %v2421 = vshrl.u32 %v2420, 7
  %v2422 = vsub.s32 1, %v2421
  %v2423 = vrot.slane %v687, %v2422
  %v2424 = vsub.f32 %v2423, %v2388
  %v2425 = vsub.f32 %v2423, %v2389
  %v2426 = vsub.f32 %v2423, %v2390
  %v2427 = vsub.f32 %v2423, %v2391
  %v2428 = vsub.f32 %v2423, %v2392
  %v2429 = vsub.f32 %v2423, %v2393
  %v2430 = vsub.f32 %v2423, %v2394
  %v2431 = vsub.f32 %v2423, %v2395
  %v2432 = vsub.f32 %v2423, %v2396
  %v2433 = vsub.f32 %v2423, %v2397
  %v2434 = vsub.f32 %v2423, %v2398
  %v2435 = vsub.f32 %v2423, %v2399
  %v2436 = vsub.f32 %v2423, %v2400
  %v2437 = vsub.f32 %v2423, %v2401
  %v2438 = vsub.f32 %v2423, %v2402
  %v2439 = vsub.f32 %v2423, %v2403
  %v2440 = vsub.f32 %v2423, %v2404
  %v2441 = vsub.f32 %v2423, %v2405
  %v2442 = vsub.f32 %v2423, %v2406
  %v2443 = vsub.f32 %v2423, %v2407
  %v2444 = vsub.f32 %v2423, %v2408
  %v2445 = vsub.f32 %v2423, %v2409
  %v2446 = vsub.f32 %v2423, %v2410
  %v2447 = vsub.f32 %v2423, %v2411
  %v2448 = vsub.f32 %v2423, %v2412
  %v2449 = vsub.f32 %v2423, %v2413
  %v2450 = vsub.f32 %v2423, %v2414
  %v2451 = vsub.f32 %v2423, %v2415
  %v2452 = vsub.f32 %v2423, %v2416
  %v2453 = vsub.f32 %v2423, %v2417
  %v2454 = vsub.f32 %v2423, %v2418
  %v2455 = vsub.f32 %v2423, %v2419
  %2456 = vmin.xlane.f32.xlu0 %v2424
  %v2457 = vpop.xlane.xlu0 %2456
  %2458 = vmin.xlane.f32.xlu0 %v2425
  %v2459 = vpop.xlane.xlu0 %2458
  %2460 = vmin.xlane.f32.xlu0 %v2426
  %v2461 = vpop.xlane.xlu0 %2460
  %2462 = vmin.xlane.f32.xlu0 %v2427
  %v2463 = vpop.xlane.xlu0 %2462
  %2464 = vmin.xlane.f32.xlu0 %v2428
  %v2465 = vpop.xlane.xlu0 %2464
  %2466 = vmin.xlane.f32.xlu0 %v2429
  %v2467 = vpop.xlane.xlu0 %2466
  %2468 = vmin.xlane.f32.xlu0 %v2430
  %v2469 = vpop.xlane.xlu0 %2468
  %2470 = vmin.xlane.f32.xlu0 %v2431
  %v2471 = vpop.xlane.xlu0 %2470
  %2472 = vmin.xlane.f32.xlu0 %v2432
  %v2473 = vpop.xlane.xlu0 %2472
  %2474 = vmin.xlane.f32.xlu0 %v2433
  %v2475 = vpop.xlane.xlu0 %2474
  %2476 = vmin.xlane.f32.xlu0 %v2434
  %v2477 = vpop.xlane.xlu0 %2476
  %2478 = vmin.xlane.f32.xlu0 %v2435
  %v2479 = vpop.xlane.xlu0 %2478
  %2480 = vmin.xlane.f32.xlu0 %v2436
  %v2481 = vpop.xlane.xlu0 %2480
  %2482 = vmin.xlane.f32.xlu0 %v2437
  %v2483 = vpop.xlane.xlu0 %2482
  %2484 = vmin.xlane.f32.xlu0 %v2438
  %v2485 = vpop.xlane.xlu0 %2484
  %2486 = vmin.xlane.f32.xlu0 %v2439
  %v2487 = vpop.xlane.xlu0 %2486
  %2488 = vmin.xlane.f32.xlu0 %v2440
  %v2489 = vpop.xlane.xlu0 %2488
  %2490 = vmin.xlane.f32.xlu0 %v2441
  %v2491 = vpop.xlane.xlu0 %2490
  %2492 = vmin.xlane.f32.xlu0 %v2442
  %v2493 = vpop.xlane.xlu0 %2492
  %2494 = vmin.xlane.f32.xlu0 %v2443
  %v2495 = vpop.xlane.xlu0 %2494
  %2496 = vmin.xlane.f32.xlu0 %v2444
  %v2497 = vpop.xlane.xlu0 %2496
  %2498 = vmin.xlane.f32.xlu0 %v2445
  %v2499 = vpop.xlane.xlu0 %2498
  %2500 = vmin.xlane.f32.xlu0 %v2446
  %v2501 = vpop.xlane.xlu0 %2500
  %2502 = vmin.xlane.f32.xlu0 %v2447
  %v2503 = vpop.xlane.xlu0 %2502
  %2504 = vmin.xlane.f32.xlu0 %v2448
  %v2505 = vpop.xlane.xlu0 %2504
  %2506 = vmin.xlane.f32.xlu0 %v2449
  %v2507 = vpop.xlane.xlu0 %2506
  %2508 = vmin.xlane.f32.xlu0 %v2450
  %v2509 = vpop.xlane.xlu0 %2508
  %2510 = vmin.xlane.f32.xlu0 %v2451
  %v2511 = vpop.xlane.xlu0 %2510
  %2512 = vmin.xlane.f32.xlu0 %v2452
  %v2513 = vpop.xlane.xlu0 %2512
  %2514 = vmin.xlane.f32.xlu0 %v2453
  %v2515 = vpop.xlane.xlu0 %2514
  %2516 = vmin.xlane.f32.xlu0 %v2454
  %v2517 = vpop.xlane.xlu0 %2516
  %2518 = vmin.xlane.f32.xlu0 %v2455
  %v2519 = vpop.xlane.xlu0 %2518
  %vm2520 = vcmp.le.f32.partialorder %v2424, %v2457
  %vm2521 = vcmp.le.f32.partialorder %v2425, %v2459
  %vm2522 = vcmp.le.f32.partialorder %v2426, %v2461
  %vm2523 = vcmp.le.f32.partialorder %v2427, %v2463
  %vm2524 = vcmp.le.f32.partialorder %v2428, %v2465
  %vm2525 = vcmp.le.f32.partialorder %v2429, %v2467
  %vm2526 = vcmp.le.f32.partialorder %v2430, %v2469
  %vm2527 = vcmp.le.f32.partialorder %v2431, %v2471
  %vm2528 = vcmp.le.f32.partialorder %v2432, %v2473
  %vm2529 = vcmp.le.f32.partialorder %v2433, %v2475
  %vm2530 = vcmp.le.f32.partialorder %v2434, %v2477
  %vm2531 = vcmp.le.f32.partialorder %v2435, %v2479
  %vm2532 = vcmp.le.f32.partialorder %v2436, %v2481
  %vm2533 = vcmp.le.f32.partialorder %v2437, %v2483
  %vm2534 = vcmp.le.f32.partialorder %v2438, %v2485
  %vm2535 = vcmp.le.f32.partialorder %v2439, %v2487
  %vm2536 = vcmp.le.f32.partialorder %v2440, %v2489
  %vm2537 = vcmp.le.f32.partialorder %v2441, %v2491
  %vm2538 = vcmp.le.f32.partialorder %v2442, %v2493
  %vm2539 = vcmp.le.f32.partialorder %v2443, %v2495
  %vm2540 = vcmp.le.f32.partialorder %v2444, %v2497
  %vm2541 = vcmp.le.f32.partialorder %v2445, %v2499
  %vm2542 = vcmp.le.f32.partialorder %v2446, %v2501
  %vm2543 = vcmp.le.f32.partialorder %v2447, %v2503
  %vm2544 = vcmp.le.f32.partialorder %v2448, %v2505
  %vm2545 = vcmp.le.f32.partialorder %v2449, %v2507
  %vm2546 = vcmp.le.f32.partialorder %v2450, %v2509
  %vm2547 = vcmp.le.f32.partialorder %v2451, %v2511
  %vm2548 = vcmp.le.f32.partialorder %v2452, %v2513
  %vm2549 = vcmp.le.f32.partialorder %v2453, %v2515
  %vm2550 = vcmp.le.f32.partialorder %v2454, %v2517
  %vm2551 = vcmp.le.f32.partialorder %v2455, %v2519
  %v2552 = vsel %vm2520, %v689, 128
  %v2553 = vsel %vm2521, %v689, 128
  %v2554 = vsel %vm2522, %v689, 128
  %v2555 = vsel %vm2523, %v689, 128
  %v2556 = vsel %vm2524, %v689, 128
  %v2557 = vsel %vm2525, %v689, 128
  %v2558 = vsel %vm2526, %v689, 128
  %v2559 = vsel %vm2527, %v689, 128
  %v2560 = vsel %vm2528, %v689, 128
  %v2561 = vsel %vm2529, %v689, 128
  %v2562 = vsel %vm2530, %v689, 128
  %v2563 = vsel %vm2531, %v689, 128
  %v2564 = vsel %vm2532, %v689, 128
  %v2565 = vsel %vm2533, %v689, 128
  %v2566 = vsel %vm2534, %v689, 128
  %v2567 = vsel %vm2535, %v689, 128
  %v2568 = vsel %vm2536, %v689, 128
  %v2569 = vsel %vm2537, %v689, 128
  %v2570 = vsel %vm2538, %v689, 128
  %v2571 = vsel %vm2539, %v689, 128
  %v2572 = vsel %vm2540, %v689, 128
  %v2573 = vsel %vm2541, %v689, 128
  %v2574 = vsel %vm2542, %v689, 128
  %v2575 = vsel %vm2543, %v689, 128
  %v2576 = vsel %vm2544, %v689, 128
  %v2577 = vsel %vm2545, %v689, 128
  %v2578 = vsel %vm2546, %v689, 128
  %v2579 = vsel %vm2547, %v689, 128
  %v2580 = vsel %vm2548, %v689, 128
  %v2581 = vsel %vm2549, %v689, 128
  %v2582 = vsel %vm2550, %v689, 128
  %v2583 = vsel %vm2551, %v689, 128
  %v2584 = vand.u32 %v2552, 65535
  %v2585 = vshra.s32 %v2552, 16
  %v2586 = vcvt.s32.f32 %v2584
  %v2587 = vcvt.s32.f32 %v2585
  %2588 = vmin.xlane.f32.xlu0 %v2587
  %v2589 = vpop.xlane.xlu0 %2588
  %vm2590 = vcmp.eq.f32.partialorder %v2587, %v2589
  %v2591 = vsel %vm2590, %v2586, inf
  %2592 = vmin.xlane.f32.xlu0 %v2591
  %v2593 = vpop.xlane.xlu0 %2592
  %v2594 = vcvt.f32.s32 %v2593
  %v2595 = vcvt.f32.s32 %v2589
  %v2596 = vshll.u32 %v2595, 16
  %v2597 = vadd.s32 %v2596, %v2594
  %v2598 = vand.u32 %v2553, 65535
  %v2599 = vshra.s32 %v2553, 16
  %v2600 = vcvt.s32.f32 %v2598
  %v2601 = vcvt.s32.f32 %v2599
  %2602 = vmin.xlane.f32.xlu0 %v2601
  %v2603 = vpop.xlane.xlu0 %2602
  %vm2604 = vcmp.eq.f32.partialorder %v2601, %v2603
  %v2605 = vsel %vm2604, %v2600, inf
  %2606 = vmin.xlane.f32.xlu0 %v2605
  %v2607 = vpop.xlane.xlu0 %2606
  %v2608 = vcvt.f32.s32 %v2607
  %v2609 = vcvt.f32.s32 %v2603
  %v2610 = vshll.u32 %v2609, 16
  %v2611 = vadd.s32 %v2610, %v2608
  %v2612 = vand.u32 %v2554, 65535
  %v2613 = vshra.s32 %v2554, 16
  %v2614 = vcvt.s32.f32 %v2612
  %v2615 = vcvt.s32.f32 %v2613
  %2616 = vmin.xlane.f32.xlu0 %v2615
  %v2617 = vpop.xlane.xlu0 %2616
  %vm2618 = vcmp.eq.f32.partialorder %v2615, %v2617
  %v2619 = vsel %vm2618, %v2614, inf
  %2620 = vmin.xlane.f32.xlu0 %v2619
  %v2621 = vpop.xlane.xlu0 %2620
  %v2622 = vcvt.f32.s32 %v2621
  %v2623 = vcvt.f32.s32 %v2617
  %v2624 = vshll.u32 %v2623, 16
  %v2625 = vadd.s32 %v2624, %v2622
  %v2626 = vand.u32 %v2555, 65535
  %v2627 = vshra.s32 %v2555, 16
  %v2628 = vcvt.s32.f32 %v2626
  %v2629 = vcvt.s32.f32 %v2627
  %2630 = vmin.xlane.f32.xlu0 %v2629
  %v2631 = vpop.xlane.xlu0 %2630
  %vm2632 = vcmp.eq.f32.partialorder %v2629, %v2631
  %v2633 = vsel %vm2632, %v2628, inf
  %2634 = vmin.xlane.f32.xlu0 %v2633
  %v2635 = vpop.xlane.xlu0 %2634
  %v2636 = vcvt.f32.s32 %v2635
  %v2637 = vcvt.f32.s32 %v2631
  %v2638 = vshll.u32 %v2637, 16
  %v2639 = vadd.s32 %v2638, %v2636
  %v2640 = vand.u32 %v2556, 65535
  %v2641 = vshra.s32 %v2556, 16
  %v2642 = vcvt.s32.f32 %v2640
  %v2643 = vcvt.s32.f32 %v2641
  %2644 = vmin.xlane.f32.xlu0 %v2643
  %v2645 = vpop.xlane.xlu0 %2644
  %vm2646 = vcmp.eq.f32.partialorder %v2643, %v2645
  %v2647 = vsel %vm2646, %v2642, inf
  %2648 = vmin.xlane.f32.xlu0 %v2647
  %v2649 = vpop.xlane.xlu0 %2648
  %v2650 = vcvt.f32.s32 %v2649
  %v2651 = vcvt.f32.s32 %v2645
  %v2652 = vshll.u32 %v2651, 16
  %v2653 = vadd.s32 %v2652, %v2650
  %v2654 = vand.u32 %v2557, 65535
  %v2655 = vshra.s32 %v2557, 16
  %v2656 = vcvt.s32.f32 %v2654
  %v2657 = vcvt.s32.f32 %v2655
  %2658 = vmin.xlane.f32.xlu0 %v2657
  %v2659 = vpop.xlane.xlu0 %2658
  %vm2660 = vcmp.eq.f32.partialorder %v2657, %v2659
  %v2661 = vsel %vm2660, %v2656, inf
  %2662 = vmin.xlane.f32.xlu0 %v2661
  %v2663 = vpop.xlane.xlu0 %2662
  %v2664 = vcvt.f32.s32 %v2663
  %v2665 = vcvt.f32.s32 %v2659
  %v2666 = vshll.u32 %v2665, 16
  %v2667 = vadd.s32 %v2666, %v2664
  %v2668 = vand.u32 %v2558, 65535
  %v2669 = vshra.s32 %v2558, 16
  %v2670 = vcvt.s32.f32 %v2668
  %v2671 = vcvt.s32.f32 %v2669
  %2672 = vmin.xlane.f32.xlu0 %v2671
  %v2673 = vpop.xlane.xlu0 %2672
  %vm2674 = vcmp.eq.f32.partialorder %v2671, %v2673
  %v2675 = vsel %vm2674, %v2670, inf
  %2676 = vmin.xlane.f32.xlu0 %v2675
  %v2677 = vpop.xlane.xlu0 %2676
  %v2678 = vcvt.f32.s32 %v2677
  %v2679 = vcvt.f32.s32 %v2673
  %v2680 = vshll.u32 %v2679, 16
  %v2681 = vadd.s32 %v2680, %v2678
  %v2682 = vand.u32 %v2559, 65535
  %v2683 = vshra.s32 %v2559, 16
  %v2684 = vcvt.s32.f32 %v2682
  %v2685 = vcvt.s32.f32 %v2683
  %2686 = vmin.xlane.f32.xlu0 %v2685
  %v2687 = vpop.xlane.xlu0 %2686
  %vm2688 = vcmp.eq.f32.partialorder %v2685, %v2687
  %v2689 = vsel %vm2688, %v2684, inf
  %2690 = vmin.xlane.f32.xlu0 %v2689
  %v2691 = vpop.xlane.xlu0 %2690
  %v2692 = vcvt.f32.s32 %v2691
  %v2693 = vcvt.f32.s32 %v2687
  %v2694 = vshll.u32 %v2693, 16
  %v2695 = vadd.s32 %v2694, %v2692
  %v2696 = vand.u32 %v2560, 65535
  %v2697 = vshra.s32 %v2560, 16
  %v2698 = vcvt.s32.f32 %v2696
  %v2699 = vcvt.s32.f32 %v2697
  %2700 = vmin.xlane.f32.xlu0 %v2699
  %v2701 = vpop.xlane.xlu0 %2700
  %vm2702 = vcmp.eq.f32.partialorder %v2699, %v2701
  %v2703 = vsel %vm2702, %v2698, inf
  %2704 = vmin.xlane.f32.xlu0 %v2703
  %v2705 = vpop.xlane.xlu0 %2704
  %v2706 = vcvt.f32.s32 %v2705
  %v2707 = vcvt.f32.s32 %v2701
  %v2708 = vshll.u32 %v2707, 16
  %v2709 = vadd.s32 %v2708, %v2706
  %v2710 = vand.u32 %v2561, 65535
  %v2711 = vshra.s32 %v2561, 16
  %v2712 = vcvt.s32.f32 %v2710
  %v2713 = vcvt.s32.f32 %v2711
  %2714 = vmin.xlane.f32.xlu0 %v2713
  %v2715 = vpop.xlane.xlu0 %2714
  %vm2716 = vcmp.eq.f32.partialorder %v2713, %v2715
  %v2717 = vsel %vm2716, %v2712, inf
  %2718 = vmin.xlane.f32.xlu0 %v2717
  %v2719 = vpop.xlane.xlu0 %2718
  %v2720 = vcvt.f32.s32 %v2719
  %v2721 = vcvt.f32.s32 %v2715
  %v2722 = vshll.u32 %v2721, 16
  %v2723 = vadd.s32 %v2722, %v2720
  %v2724 = vand.u32 %v2562, 65535
  %v2725 = vshra.s32 %v2562, 16
  %v2726 = vcvt.s32.f32 %v2724
  %v2727 = vcvt.s32.f32 %v2725
  %2728 = vmin.xlane.f32.xlu0 %v2727
  %v2729 = vpop.xlane.xlu0 %2728
  %vm2730 = vcmp.eq.f32.partialorder %v2727, %v2729
  %v2731 = vsel %vm2730, %v2726, inf
  %2732 = vmin.xlane.f32.xlu0 %v2731
  %v2733 = vpop.xlane.xlu0 %2732
  %v2734 = vcvt.f32.s32 %v2733
  %v2735 = vcvt.f32.s32 %v2729
  %v2736 = vshll.u32 %v2735, 16
  %v2737 = vadd.s32 %v2736, %v2734
  %v2738 = vand.u32 %v2563, 65535
  %v2739 = vshra.s32 %v2563, 16
  %v2740 = vcvt.s32.f32 %v2738
  %v2741 = vcvt.s32.f32 %v2739
  %2742 = vmin.xlane.f32.xlu0 %v2741
  %v2743 = vpop.xlane.xlu0 %2742
  %vm2744 = vcmp.eq.f32.partialorder %v2741, %v2743
  %v2745 = vsel %vm2744, %v2740, inf
  %2746 = vmin.xlane.f32.xlu0 %v2745
  %v2747 = vpop.xlane.xlu0 %2746
  %v2748 = vcvt.f32.s32 %v2747
  %v2749 = vcvt.f32.s32 %v2743
  %v2750 = vshll.u32 %v2749, 16
  %v2751 = vadd.s32 %v2750, %v2748
  %v2752 = vand.u32 %v2564, 65535
  %v2753 = vshra.s32 %v2564, 16
  %v2754 = vcvt.s32.f32 %v2752
  %v2755 = vcvt.s32.f32 %v2753
  %2756 = vmin.xlane.f32.xlu0 %v2755
  %v2757 = vpop.xlane.xlu0 %2756
  %vm2758 = vcmp.eq.f32.partialorder %v2755, %v2757
  %v2759 = vsel %vm2758, %v2754, inf
  %2760 = vmin.xlane.f32.xlu0 %v2759
  %v2761 = vpop.xlane.xlu0 %2760
  %v2762 = vcvt.f32.s32 %v2761
  %v2763 = vcvt.f32.s32 %v2757
  %v2764 = vshll.u32 %v2763, 16
  %v2765 = vadd.s32 %v2764, %v2762
  %v2766 = vand.u32 %v2565, 65535
  %v2767 = vshra.s32 %v2565, 16
  %v2768 = vcvt.s32.f32 %v2766
  %v2769 = vcvt.s32.f32 %v2767
  %2770 = vmin.xlane.f32.xlu0 %v2769
  %v2771 = vpop.xlane.xlu0 %2770
  %vm2772 = vcmp.eq.f32.partialorder %v2769, %v2771
  %v2773 = vsel %vm2772, %v2768, inf
  %2774 = vmin.xlane.f32.xlu0 %v2773
  %v2775 = vpop.xlane.xlu0 %2774
  %v2776 = vcvt.f32.s32 %v2775
  %v2777 = vcvt.f32.s32 %v2771
  %v2778 = vshll.u32 %v2777, 16
  %v2779 = vadd.s32 %v2778, %v2776
  %v2780 = vand.u32 %v2566, 65535
  %v2781 = vshra.s32 %v2566, 16
  %v2782 = vcvt.s32.f32 %v2780
  %v2783 = vcvt.s32.f32 %v2781
  %2784 = vmin.xlane.f32.xlu0 %v2783
  %v2785 = vpop.xlane.xlu0 %2784
  %vm2786 = vcmp.eq.f32.partialorder %v2783, %v2785
  %v2787 = vsel %vm2786, %v2782, inf
  %2788 = vmin.xlane.f32.xlu0 %v2787
  %v2789 = vpop.xlane.xlu0 %2788
  %v2790 = vcvt.f32.s32 %v2789
  %v2791 = vcvt.f32.s32 %v2785
  %v2792 = vshll.u32 %v2791, 16
  %v2793 = vadd.s32 %v2792, %v2790
  %v2794 = vand.u32 %v2567, 65535
  %v2795 = vshra.s32 %v2567, 16
  %v2796 = vcvt.s32.f32 %v2794
  %v2797 = vcvt.s32.f32 %v2795
  %2798 = vmin.xlane.f32.xlu0 %v2797
  %v2799 = vpop.xlane.xlu0 %2798
  %vm2800 = vcmp.eq.f32.partialorder %v2797, %v2799
  %v2801 = vsel %vm2800, %v2796, inf
  %2802 = vmin.xlane.f32.xlu0 %v2801
  %v2803 = vpop.xlane.xlu0 %2802
  %v2804 = vcvt.f32.s32 %v2803
  %v2805 = vcvt.f32.s32 %v2799
  %v2806 = vshll.u32 %v2805, 16
  %v2807 = vadd.s32 %v2806, %v2804
  %v2808 = vand.u32 %v2568, 65535
  %v2809 = vshra.s32 %v2568, 16
  %v2810 = vcvt.s32.f32 %v2808
  %v2811 = vcvt.s32.f32 %v2809
  %2812 = vmin.xlane.f32.xlu0 %v2811
  %v2813 = vpop.xlane.xlu0 %2812
  %vm2814 = vcmp.eq.f32.partialorder %v2811, %v2813
  %v2815 = vsel %vm2814, %v2810, inf
  %2816 = vmin.xlane.f32.xlu0 %v2815
  %v2817 = vpop.xlane.xlu0 %2816
  %v2818 = vcvt.f32.s32 %v2817
  %v2819 = vcvt.f32.s32 %v2813
  %v2820 = vshll.u32 %v2819, 16
  %v2821 = vadd.s32 %v2820, %v2818
  %v2822 = vand.u32 %v2569, 65535
  %v2823 = vshra.s32 %v2569, 16
  %v2824 = vcvt.s32.f32 %v2822
  %v2825 = vcvt.s32.f32 %v2823
  %2826 = vmin.xlane.f32.xlu0 %v2825
  %v2827 = vpop.xlane.xlu0 %2826
  %vm2828 = vcmp.eq.f32.partialorder %v2825, %v2827
  %v2829 = vsel %vm2828, %v2824, inf
  %2830 = vmin.xlane.f32.xlu0 %v2829
  %v2831 = vpop.xlane.xlu0 %2830
  %v2832 = vcvt.f32.s32 %v2831
  %v2833 = vcvt.f32.s32 %v2827
  %v2834 = vshll.u32 %v2833, 16
  %v2835 = vadd.s32 %v2834, %v2832
  %v2836 = vand.u32 %v2570, 65535
  %v2837 = vshra.s32 %v2570, 16
  %v2838 = vcvt.s32.f32 %v2836
  %v2839 = vcvt.s32.f32 %v2837
  %2840 = vmin.xlane.f32.xlu0 %v2839
  %v2841 = vpop.xlane.xlu0 %2840
  %vm2842 = vcmp.eq.f32.partialorder %v2839, %v2841
  %v2843 = vsel %vm2842, %v2838, inf
  %2844 = vmin.xlane.f32.xlu0 %v2843
  %v2845 = vpop.xlane.xlu0 %2844
  %v2846 = vcvt.f32.s32 %v2845
  %v2847 = vcvt.f32.s32 %v2841
  %v2848 = vshll.u32 %v2847, 16
  %v2849 = vadd.s32 %v2848, %v2846
  %v2850 = vand.u32 %v2571, 65535
  %v2851 = vshra.s32 %v2571, 16
  %v2852 = vcvt.s32.f32 %v2850
  %v2853 = vcvt.s32.f32 %v2851
  %2854 = vmin.xlane.f32.xlu0 %v2853
  %v2855 = vpop.xlane.xlu0 %2854
  %vm2856 = vcmp.eq.f32.partialorder %v2853, %v2855
  %v2857 = vsel %vm2856, %v2852, inf
  %2858 = vmin.xlane.f32.xlu0 %v2857
  %v2859 = vpop.xlane.xlu0 %2858
  %v2860 = vcvt.f32.s32 %v2859
  %v2861 = vcvt.f32.s32 %v2855
  %v2862 = vshll.u32 %v2861, 16
  %v2863 = vadd.s32 %v2862, %v2860
  %v2864 = vand.u32 %v2572, 65535
  %v2865 = vshra.s32 %v2572, 16
  %v2866 = vcvt.s32.f32 %v2864
  %v2867 = vcvt.s32.f32 %v2865
  %2868 = vmin.xlane.f32.xlu0 %v2867
  %v2869 = vpop.xlane.xlu0 %2868
  %vm2870 = vcmp.eq.f32.partialorder %v2867, %v2869
  %v2871 = vsel %vm2870, %v2866, inf
  %2872 = vmin.xlane.f32.xlu0 %v2871
  %v2873 = vpop.xlane.xlu0 %2872
  %v2874 = vcvt.f32.s32 %v2873
  %v2875 = vcvt.f32.s32 %v2869
  %v2876 = vshll.u32 %v2875, 16
  %v2877 = vadd.s32 %v2876, %v2874
  %v2878 = vand.u32 %v2573, 65535
  %v2879 = vshra.s32 %v2573, 16
  %v2880 = vcvt.s32.f32 %v2878
  %v2881 = vcvt.s32.f32 %v2879
  %2882 = vmin.xlane.f32.xlu0 %v2881
  %v2883 = vpop.xlane.xlu0 %2882
  %vm2884 = vcmp.eq.f32.partialorder %v2881, %v2883
  %v2885 = vsel %vm2884, %v2880, inf
  %2886 = vmin.xlane.f32.xlu0 %v2885
  %v2887 = vpop.xlane.xlu0 %2886
  %v2888 = vcvt.f32.s32 %v2887
  %v2889 = vcvt.f32.s32 %v2883
  %v2890 = vshll.u32 %v2889, 16
  %v2891 = vadd.s32 %v2890, %v2888
  %v2892 = vand.u32 %v2574, 65535
  %v2893 = vshra.s32 %v2574, 16
  %v2894 = vcvt.s32.f32 %v2892
  %v2895 = vcvt.s32.f32 %v2893
  %2896 = vmin.xlane.f32.xlu0 %v2895
  %v2897 = vpop.xlane.xlu0 %2896
  %vm2898 = vcmp.eq.f32.partialorder %v2895, %v2897
  %v2899 = vsel %vm2898, %v2894, inf
  %2900 = vmin.xlane.f32.xlu0 %v2899
  %v2901 = vpop.xlane.xlu0 %2900
  %v2902 = vcvt.f32.s32 %v2901
  %v2903 = vcvt.f32.s32 %v2897
  %v2904 = vshll.u32 %v2903, 16
  %v2905 = vadd.s32 %v2904, %v2902
  %v2906 = vand.u32 %v2575, 65535
  %v2907 = vshra.s32 %v2575, 16
  %v2908 = vcvt.s32.f32 %v2906
  %v2909 = vcvt.s32.f32 %v2907
  %2910 = vmin.xlane.f32.xlu0 %v2909
  %v2911 = vpop.xlane.xlu0 %2910
  %vm2912 = vcmp.eq.f32.partialorder %v2909, %v2911
  %v2913 = vsel %vm2912, %v2908, inf
  %2914 = vmin.xlane.f32.xlu0 %v2913
  %v2915 = vpop.xlane.xlu0 %2914
  %v2916 = vcvt.f32.s32 %v2915
  %v2917 = vcvt.f32.s32 %v2911
  %v2918 = vshll.u32 %v2917, 16
  %v2919 = vadd.s32 %v2918, %v2916
  %v2920 = vand.u32 %v2576, 65535
  %v2921 = vshra.s32 %v2576, 16
  %v2922 = vcvt.s32.f32 %v2920
  %v2923 = vcvt.s32.f32 %v2921
  %2924 = vmin.xlane.f32.xlu0 %v2923
  %v2925 = vpop.xlane.xlu0 %2924
  %vm2926 = vcmp.eq.f32.partialorder %v2923, %v2925
  %v2927 = vsel %vm2926, %v2922, inf
  %2928 = vmin.xlane.f32.xlu0 %v2927
  %v2929 = vpop.xlane.xlu0 %2928
  %v2930 = vcvt.f32.s32 %v2929
  %v2931 = vcvt.f32.s32 %v2925
  %v2932 = vshll.u32 %v2931, 16
  %v2933 = vadd.s32 %v2932, %v2930
  %v2934 = vand.u32 %v2577, 65535
  %v2935 = vshra.s32 %v2577, 16
  %v2936 = vcvt.s32.f32 %v2934
  %v2937 = vcvt.s32.f32 %v2935
  %2938 = vmin.xlane.f32.xlu0 %v2937
  %v2939 = vpop.xlane.xlu0 %2938
  %vm2940 = vcmp.eq.f32.partialorder %v2937, %v2939
  %v2941 = vsel %vm2940, %v2936, inf
  %2942 = vmin.xlane.f32.xlu0 %v2941
  %v2943 = vpop.xlane.xlu0 %2942
  %v2944 = vcvt.f32.s32 %v2943
  %v2945 = vcvt.f32.s32 %v2939
  %v2946 = vshll.u32 %v2945, 16
  %v2947 = vadd.s32 %v2946, %v2944
  %v2948 = vand.u32 %v2578, 65535
  %v2949 = vshra.s32 %v2578, 16
  %v2950 = vcvt.s32.f32 %v2948
  %v2951 = vcvt.s32.f32 %v2949
  %2952 = vmin.xlane.f32.xlu0 %v2951
  %v2953 = vpop.xlane.xlu0 %2952
  %vm2954 = vcmp.eq.f32.partialorder %v2951, %v2953
  %v2955 = vsel %vm2954, %v2950, inf
  %2956 = vmin.xlane.f32.xlu0 %v2955
  %v2957 = vpop.xlane.xlu0 %2956
  %v2958 = vcvt.f32.s32 %v2957
  %v2959 = vcvt.f32.s32 %v2953
  %v2960 = vshll.u32 %v2959, 16
  %v2961 = vadd.s32 %v2960, %v2958
  %v2962 = vand.u32 %v2579, 65535
  %v2963 = vshra.s32 %v2579, 16
  %v2964 = vcvt.s32.f32 %v2962
  %v2965 = vcvt.s32.f32 %v2963
  %2966 = vmin.xlane.f32.xlu0 %v2965
  %v2967 = vpop.xlane.xlu0 %2966
  %vm2968 = vcmp.eq.f32.partialorder %v2965, %v2967
  %v2969 = vsel %vm2968, %v2964, inf
  %2970 = vmin.xlane.f32.xlu0 %v2969
  %v2971 = vpop.xlane.xlu0 %2970
  %v2972 = vcvt.f32.s32 %v2971
  %v2973 = vcvt.f32.s32 %v2967
  %v2974 = vshll.u32 %v2973, 16
  %v2975 = vadd.s32 %v2974, %v2972
  %v2976 = vand.u32 %v2580, 65535
  %v2977 = vshra.s32 %v2580, 16
  %v2978 = vcvt.s32.f32 %v2976
  %v2979 = vcvt.s32.f32 %v2977
  %2980 = vmin.xlane.f32.xlu0 %v2979
  %v2981 = vpop.xlane.xlu0 %2980
  %vm2982 = vcmp.eq.f32.partialorder %v2979, %v2981
  %v2983 = vsel %vm2982, %v2978, inf
  %2984 = vmin.xlane.f32.xlu0 %v2983
  %v2985 = vpop.xlane.xlu0 %2984
  %v2986 = vcvt.f32.s32 %v2985
  %v2987 = vcvt.f32.s32 %v2981
  %v2988 = vshll.u32 %v2987, 16
  %v2989 = vadd.s32 %v2988, %v2986
  %v2990 = vand.u32 %v2581, 65535
  %v2991 = vshra.s32 %v2581, 16
  %v2992 = vcvt.s32.f32 %v2990
  %v2993 = vcvt.s32.f32 %v2991
  %2994 = vmin.xlane.f32.xlu0 %v2993
  %v2995 = vpop.xlane.xlu0 %2994
  %vm2996 = vcmp.eq.f32.partialorder %v2993, %v2995
  %v2997 = vsel %vm2996, %v2992, inf
  %2998 = vmin.xlane.f32.xlu0 %v2997
  %v2999 = vpop.xlane.xlu0 %2998
  %v3000 = vcvt.f32.s32 %v2999
  %v3001 = vcvt.f32.s32 %v2995
  %v3002 = vshll.u32 %v3001, 16
  %v3003 = vadd.s32 %v3002, %v3000
  %v3004 = vand.u32 %v2582, 65535
  %v3005 = vshra.s32 %v2582, 16
  %v3006 = vcvt.s32.f32 %v3004
  %v3007 = vcvt.s32.f32 %v3005
  %3008 = vmin.xlane.f32.xlu0 %v3007
  %v3009 = vpop.xlane.xlu0 %3008
  %vm3010 = vcmp.eq.f32.partialorder %v3007, %v3009
  %v3011 = vsel %vm3010, %v3006, inf
  %3012 = vmin.xlane.f32.xlu0 %v3011
  %v3013 = vpop.xlane.xlu0 %3012
  %v3014 = vcvt.f32.s32 %v3013
  %v3015 = vcvt.f32.s32 %v3009
  %v3016 = vshll.u32 %v3015, 16
  %v3017 = vadd.s32 %v3016, %v3014
  %v3018 = vand.u32 %v2583, 65535
  %v3019 = vshra.s32 %v2583, 16
  %v3020 = vcvt.s32.f32 %v3018
  %v3021 = vcvt.s32.f32 %v3019
  %3022 = vmin.xlane.f32.xlu0 %v3021
  %v3023 = vpop.xlane.xlu0 %3022
  %vm3024 = vcmp.eq.f32.partialorder %v3021, %v3023
  %v3025 = vsel %vm3024, %v3020, inf
  %3026 = vmin.xlane.f32.xlu0 %v3025
  %v3027 = vpop.xlane.xlu0 %3026
  %v3028 = vcvt.f32.s32 %v3027
  %v3029 = vcvt.f32.s32 %v3023
  %v3030 = vshll.u32 %v3029, 16
  %v3031 = vadd.s32 %v3030, %v3028
  %vm3032 = vcmp.eq.s32.totalorder %v689, %v2597
  %vm3033 = vcmp.eq.s32.totalorder %v689, %v2611
  %vm3034 = vcmp.eq.s32.totalorder %v689, %v2625
  %vm3035 = vcmp.eq.s32.totalorder %v689, %v2639
  %vm3036 = vcmp.eq.s32.totalorder %v689, %v2653
  %vm3037 = vcmp.eq.s32.totalorder %v689, %v2667
  %vm3038 = vcmp.eq.s32.totalorder %v689, %v2681
  %vm3039 = vcmp.eq.s32.totalorder %v689, %v2695
  %vm3040 = vcmp.eq.s32.totalorder %v689, %v2709
  %vm3041 = vcmp.eq.s32.totalorder %v689, %v2723
  %vm3042 = vcmp.eq.s32.totalorder %v689, %v2737
  %vm3043 = vcmp.eq.s32.totalorder %v689, %v2751
  %vm3044 = vcmp.eq.s32.totalorder %v689, %v2765
  %vm3045 = vcmp.eq.s32.totalorder %v689, %v2779
  %vm3046 = vcmp.eq.s32.totalorder %v689, %v2793
  %vm3047 = vcmp.eq.s32.totalorder %v689, %v2807
  %vm3048 = vcmp.eq.s32.totalorder %v689, %v2821
  %vm3049 = vcmp.eq.s32.totalorder %v689, %v2835
  %vm3050 = vcmp.eq.s32.totalorder %v689, %v2849
  %vm3051 = vcmp.eq.s32.totalorder %v689, %v2863
  %vm3052 = vcmp.eq.s32.totalorder %v689, %v2877
  %vm3053 = vcmp.eq.s32.totalorder %v689, %v2891
  %vm3054 = vcmp.eq.s32.totalorder %v689, %v2905
  %vm3055 = vcmp.eq.s32.totalorder %v689, %v2919
  %vm3056 = vcmp.eq.s32.totalorder %v689, %v2933
  %vm3057 = vcmp.eq.s32.totalorder %v689, %v2947
  %vm3058 = vcmp.eq.s32.totalorder %v689, %v2961
  %vm3059 = vcmp.eq.s32.totalorder %v689, %v2975
  %vm3060 = vcmp.eq.s32.totalorder %v689, %v2989
  %vm3061 = vcmp.eq.s32.totalorder %v689, %v3003
  %vm3062 = vcmp.eq.s32.totalorder %v689, %v3017
  %vm3063 = vcmp.eq.s32.totalorder %v689, %v3031
  %v3064 = vsel %vm3032, 1, 0
  %v3065 = vsel %vm3033, 1, 0
  %v3066 = vsel %vm3034, 1, 0
  %v3067 = vsel %vm3035, 1, 0
  %v3068 = vsel %vm3036, 1, 0
  %v3069 = vsel %vm3037, 1, 0
  %v3070 = vsel %vm3038, 1, 0
  %v3071 = vsel %vm3039, 1, 0
  %v3072 = vsel %vm3040, 1, 0
  %v3073 = vsel %vm3041, 1, 0
  %v3074 = vsel %vm3042, 1, 0
  %v3075 = vsel %vm3043, 1, 0
  %v3076 = vsel %vm3044, 1, 0
  %v3077 = vsel %vm3045, 1, 0
  %v3078 = vsel %vm3046, 1, 0
  %v3079 = vsel %vm3047, 1, 0
  %v3080 = vsel %vm3048, 1, 0
  %v3081 = vsel %vm3049, 1, 0
  %v3082 = vsel %vm3050, 1, 0
  %v3083 = vsel %vm3051, 1, 0
  %v3084 = vsel %vm3052, 1, 0
  %v3085 = vsel %vm3053, 1, 0
  %v3086 = vsel %vm3054, 1, 0
  %v3087 = vsel %vm3055, 1, 0
  %v3088 = vsel %vm3056, 1, 0
  %v3089 = vsel %vm3057, 1, 0
  %v3090 = vsel %vm3058, 1, 0
  %v3091 = vsel %vm3059, 1, 0
  %v3092 = vsel %vm3060, 1, 0
  %v3093 = vsel %vm3061, 1, 0
  %v3094 = vsel %vm3062, 1, 0
  %v3095 = vsel %vm3063, 1, 0
  %v3096 = vcvt.s32.f32 %v3064
  %v3097 = vcvt.s32.f32 %v3065
  %v3098 = vcvt.s32.f32 %v3066
  %v3099 = vcvt.s32.f32 %v3067
  %v3100 = vcvt.s32.f32 %v3068
  %v3101 = vcvt.s32.f32 %v3069
  %v3102 = vcvt.s32.f32 %v3070
  %v3103 = vcvt.s32.f32 %v3071
  %v3104 = vcvt.s32.f32 %v3072
  %v3105 = vcvt.s32.f32 %v3073
  %v3106 = vcvt.s32.f32 %v3074
  %v3107 = vcvt.s32.f32 %v3075
  %v3108 = vcvt.s32.f32 %v3076
  %v3109 = vcvt.s32.f32 %v3077
  %v3110 = vcvt.s32.f32 %v3078
  %v3111 = vcvt.s32.f32 %v3079
  %v3112 = vcvt.s32.f32 %v3080
  %v3113 = vcvt.s32.f32 %v3081
  %v3114 = vcvt.s32.f32 %v3082
  %v3115 = vcvt.s32.f32 %v3083
  %v3116 = vcvt.s32.f32 %v3084
  %v3117 = vcvt.s32.f32 %v3085
  %v3118 = vcvt.s32.f32 %v3086
  %v3119 = vcvt.s32.f32 %v3087
  %v3120 = vcvt.s32.f32 %v3088
  %v3121 = vcvt.s32.f32 %v3089
  %v3122 = vcvt.s32.f32 %v3090
  %v3123 = vcvt.s32.f32 %v3091
  %v3124 = vcvt.s32.f32 %v3092
  %v3125 = vcvt.s32.f32 %v3093
  %v3126 = vcvt.s32.f32 %v3094
  %v3127 = vcvt.s32.f32 %v3095
  %s3128 = scalar_lea.vmem %s5, 128
  %v3129 = vld [vmem:[%s3128] sm:$0xff]
  %v3130 = vld [vmem:[%s3128 + $0x8] sm:$0xff]
  %v3131 = vld [vmem:[%s3128 + $0x10] sm:$0xff]
  %v3132 = vld [vmem:[%s3128 + $0x18] sm:$0xff]
  %v3133 = vld [vmem:[%s3128 + $0x20] sm:$0xff]
  %v3134 = vld [vmem:[%s3128 + $0x28] sm:$0xff]
  %v3135 = vld [vmem:[%s3128 + $0x30] sm:$0xff]
  %v3136 = vld [vmem:[%s3128 + $0x38] sm:$0xff]
  %v3137 = vld [vmem:[%s3128 + $0x40] sm:$0xff]
  %v3138 = vld [vmem:[%s3128 + $0x48] sm:$0xff]
  %v3139 = vld [vmem:[%s3128 + $0x50] sm:$0xff]
  %v3140 = vld [vmem:[%s3128 + $0x58] sm:$0xff]
  %v3141 = vld [vmem:[%s3128 + $0x60] sm:$0xff]
  %v3142 = vld [vmem:[%s3128 + $0x68] sm:$0xff]
  %v3143 = vld [vmem:[%s3128 + $0x70] sm:$0xff]
  %v3144 = vld [vmem:[%s3128 + $0x78] sm:$0xff]
  %3145 = vmatprep.subr.mxu0 0.0
  %3146 = vmatpush1.msra.mxu0 %v3144
  %3147 = vmatprep.subr.mxu0 0.0
  %3148 = vmatpush1.msra.mxu0 %v3143
  %3149 = vmatprep.subr.mxu0 0.0
  %3150 = vmatpush1.msra.mxu0 %v3142
  %3151 = vmatprep.subr.mxu0 0.0
  %3152 = vmatpush1.msra.mxu0 %v3141
  %3153 = vmatprep.subr.mxu0 0.0
  %3154 = vmatpush1.msra.mxu0 %v3140
  %3155 = vmatprep.subr.mxu0 0.0
  %3156 = vmatpush1.msra.mxu0 %v3139
  %3157 = vmatprep.subr.mxu0 0.0
  %3158 = vmatpush1.msra.mxu0 %v3138
  %3159 = vmatprep.subr.mxu0 0.0
  %3160 = vmatpush1.msra.mxu0 %v3137
  %3161 = vmatprep.subr.mxu0 0.0
  %3162 = vmatpush1.msra.mxu0 %v3136
  %3163 = vmatprep.subr.mxu0 0.0
  %3164 = vmatpush1.msra.mxu0 %v3135
  %3165 = vmatprep.subr.mxu0 0.0
  %3166 = vmatpush1.msra.mxu0 %v3134
  %3167 = vmatprep.subr.mxu0 0.0
  %3168 = vmatpush1.msra.mxu0 %v3133
  %3169 = vmatprep.subr.mxu0 0.0
  %3170 = vmatpush1.msra.mxu0 %v3132
  %3171 = vmatprep.subr.mxu0 0.0
  %3172 = vmatpush1.msra.mxu0 %v3131
  %3173 = vmatprep.subr.mxu0 0.0
  %3174 = vmatpush1.msra.mxu0 %v3130
  %3175 = vmatprep.subr.mxu0 0.0
  %3176 = vmatpush1.msra.mxu0 %v3129
  %3177 = vmatprep.subr.mxu0 0.0
  %3178 = vmatpush2.msra.mxu0 0.0
  %3179 = vmatprep.subr.mxu0 0.0
  %3180 = vmatpush2.msra.mxu0 0.0
  %3181 = vmatprep.subr.mxu0 0.0
  %3182 = vmatpush2.msra.mxu0 0.0
  %3183 = vmatprep.subr.mxu0 0.0
  %3184 = vmatpush2.msra.mxu0 0.0
  %3185 = vmatprep.subr.mxu0 0.0
  %3186 = vmatpush2.msra.mxu0 0.0
  %3187 = vmatprep.subr.mxu0 0.0
  %3188 = vmatpush2.msra.mxu0 0.0
  %3189 = vmatprep.subr.mxu0 0.0
  %3190 = vmatpush2.msra.mxu0 0.0
  %3191 = vmatprep.subr.mxu0 0.0
  %3192 = vmatpush2.msra.mxu0 0.0
  %3193 = vmatprep.subr.mxu0 0.0
  %3194 = vmatpush2.msra.mxu0 0.0
  %3195 = vmatprep.subr.mxu0 0.0
  %3196 = vmatpush2.msra.mxu0 0.0
  %3197 = vmatprep.subr.mxu0 0.0
  %3198 = vmatpush2.msra.mxu0 0.0
  %3199 = vmatprep.subr.mxu0 0.0
  %3200 = vmatpush2.msra.mxu0 0.0
  %3201 = vmatprep.subr.mxu0 0.0
  %3202 = vmatpush2.msra.mxu0 0.0
  %3203 = vmatprep.subr.mxu0 0.0
  %3204 = vmatpush2.msra.mxu0 0.0
  %3205 = vmatprep.subr.mxu0 0.0
  %3206 = vmatpush2.msra.mxu0 0.0
  %3207 = vmatprep.subr.mxu0 0.0
  %3208 = vmatpush2.msra.mxu0 0.0
  %3209 = vmatprep.mubr.f32.mxu0 0.0
  %3210 = vmatmul.mubr.f32.gmra.mxu0 %v3096
  %v3211 = vpop.f32.mrf.mxu0
  %v3212 = vadd.f32 0.0, %v3211
  %v3213 = vpop.f32.mrf.mxu0
  %3214 = vmatprep.mubr.f32.mxu0 0.0
  %3215 = vmatmul.mubr.f32.gmra.mxu0 %v3097
  %v3216 = vpop.f32.mrf.mxu0
  %v3217 = vadd.f32 0.0, %v3216
  %v3218 = vpop.f32.mrf.mxu0
  %3219 = vmatprep.mubr.f32.mxu0 0.0
  %3220 = vmatmul.mubr.f32.gmra.mxu0 %v3098
  %v3221 = vpop.f32.mrf.mxu0
  %v3222 = vadd.f32 0.0, %v3221
  %v3223 = vpop.f32.mrf.mxu0
  %3224 = vmatprep.mubr.f32.mxu0 0.0
  %3225 = vmatmul.mubr.f32.gmra.mxu0 %v3099
  %v3226 = vpop.f32.mrf.mxu0
  %v3227 = vadd.f32 0.0, %v3226
  %v3228 = vpop.f32.mrf.mxu0
  %3229 = vmatprep.mubr.f32.mxu0 0.0
  %3230 = vmatmul.mubr.f32.gmra.mxu0 %v3100
  %v3231 = vpop.f32.mrf.mxu0
  %v3232 = vadd.f32 0.0, %v3231
  %v3233 = vpop.f32.mrf.mxu0
  %3234 = vmatprep.mubr.f32.mxu0 0.0
  %3235 = vmatmul.mubr.f32.gmra.mxu0 %v3101
  %v3236 = vpop.f32.mrf.mxu0
  %v3237 = vadd.f32 0.0, %v3236
  %v3238 = vpop.f32.mrf.mxu0
  %3239 = vmatprep.mubr.f32.mxu0 0.0
  %3240 = vmatmul.mubr.f32.gmra.mxu0 %v3102
  %v3241 = vpop.f32.mrf.mxu0
  %v3242 = vadd.f32 0.0, %v3241
  %v3243 = vpop.f32.mrf.mxu0
  %3244 = vmatprep.mubr.f32.mxu0 0.0
  %3245 = vmatmul.mubr.f32.gmra.mxu0 %v3103
  %v3246 = vpop.f32.mrf.mxu0
  %v3247 = vadd.f32 0.0, %v3246
  %v3248 = vpop.f32.mrf.mxu0
  %3249 = vmatprep.mubr.f32.mxu0 0.0
  %3250 = vmatmul.mubr.f32.gmra.mxu0 %v3104
  %v3251 = vpop.f32.mrf.mxu0
  %v3252 = vadd.f32 0.0, %v3251
  %v3253 = vpop.f32.mrf.mxu0
  %3254 = vmatprep.mubr.f32.mxu0 0.0
  %3255 = vmatmul.mubr.f32.gmra.mxu0 %v3105
  %v3256 = vpop.f32.mrf.mxu0
  %v3257 = vadd.f32 0.0, %v3256
  %v3258 = vpop.f32.mrf.mxu0
  %3259 = vmatprep.mubr.f32.mxu0 0.0
  %3260 = vmatmul.mubr.f32.gmra.mxu0 %v3106
  %v3261 = vpop.f32.mrf.mxu0
  %v3262 = vadd.f32 0.0, %v3261
  %v3263 = vpop.f32.mrf.mxu0
  %3264 = vmatprep.mubr.f32.mxu0 0.0
  %3265 = vmatmul.mubr.f32.gmra.mxu0 %v3107
  %v3266 = vpop.f32.mrf.mxu0
  %v3267 = vadd.f32 0.0, %v3266
  %v3268 = vpop.f32.mrf.mxu0
  %3269 = vmatprep.mubr.f32.mxu0 0.0
  %3270 = vmatmul.mubr.f32.gmra.mxu0 %v3108
  %v3271 = vpop.f32.mrf.mxu0
  %v3272 = vadd.f32 0.0, %v3271
  %v3273 = vpop.f32.mrf.mxu0
  %3274 = vmatprep.mubr.f32.mxu0 0.0
  %3275 = vmatmul.mubr.f32.gmra.mxu0 %v3109
  %v3276 = vpop.f32.mrf.mxu0
  %v3277 = vadd.f32 0.0, %v3276
  %v3278 = vpop.f32.mrf.mxu0
  %3279 = vmatprep.mubr.f32.mxu0 0.0
  %3280 = vmatmul.mubr.f32.gmra.mxu0 %v3110
  %v3281 = vpop.f32.mrf.mxu0
  %v3282 = vadd.f32 0.0, %v3281
  %v3283 = vpop.f32.mrf.mxu0
  %3284 = vmatprep.mubr.f32.mxu0 0.0
  %3285 = vmatmul.mubr.f32.gmra.mxu0 %v3111
  %v3286 = vpop.f32.mrf.mxu0
  %v3287 = vadd.f32 0.0, %v3286
  %v3288 = vpop.f32.mrf.mxu0
  %3289 = vmatprep.mubr.f32.mxu0 0.0
  %3290 = vmatmul.mubr.f32.gmra.mxu0 %v3112
  %v3291 = vpop.f32.mrf.mxu0
  %v3292 = vadd.f32 0.0, %v3291
  %v3293 = vpop.f32.mrf.mxu0
  %3294 = vmatprep.mubr.f32.mxu0 0.0
  %3295 = vmatmul.mubr.f32.gmra.mxu0 %v3113
  %v3296 = vpop.f32.mrf.mxu0
  %v3297 = vadd.f32 0.0, %v3296
  %v3298 = vpop.f32.mrf.mxu0
  %3299 = vmatprep.mubr.f32.mxu0 0.0
  %3300 = vmatmul.mubr.f32.gmra.mxu0 %v3114
  %v3301 = vpop.f32.mrf.mxu0
  %v3302 = vadd.f32 0.0, %v3301
  %v3303 = vpop.f32.mrf.mxu0
  %3304 = vmatprep.mubr.f32.mxu0 0.0
  %3305 = vmatmul.mubr.f32.gmra.mxu0 %v3115
  %v3306 = vpop.f32.mrf.mxu0
  %v3307 = vadd.f32 0.0, %v3306
  %v3308 = vpop.f32.mrf.mxu0
  %3309 = vmatprep.mubr.f32.mxu0 0.0
  %3310 = vmatmul.mubr.f32.gmra.mxu0 %v3116
  %v3311 = vpop.f32.mrf.mxu0
  %v3312 = vadd.f32 0.0, %v3311
  %v3313 = vpop.f32.mrf.mxu0
  %3314 = vmatprep.mubr.f32.mxu0 0.0
  %3315 = vmatmul.mubr.f32.gmra.mxu0 %v3117
  %v3316 = vpop.f32.mrf.mxu0
  %v3317 = vadd.f32 0.0, %v3316
  %v3318 = vpop.f32.mrf.mxu0
  %3319 = vmatprep.mubr.f32.mxu0 0.0
  %3320 = vmatmul.mubr.f32.gmra.mxu0 %v3118
  %v3321 = vpop.f32.mrf.mxu0
  %v3322 = vadd.f32 0.0, %v3321
  %v3323 = vpop.f32.mrf.mxu0
  %3324 = vmatprep.mubr.f32.mxu0 0.0
  %3325 = vmatmul.mubr.f32.gmra.mxu0 %v3119
  %v3326 = vpop.f32.mrf.mxu0
  %v3327 = vadd.f32 0.0, %v3326
  %v3328 = vpop.f32.mrf.mxu0
  %3329 = vmatprep.mubr.f32.mxu0 0.0
  %3330 = vmatmul.mubr.f32.gmra.mxu0 %v3120
  %v3331 = vpop.f32.mrf.mxu0
  %v3332 = vadd.f32 0.0, %v3331
  %v3333 = vpop.f32.mrf.mxu0
  %3334 = vmatprep.mubr.f32.mxu0 0.0
  %3335 = vmatmul.mubr.f32.gmra.mxu0 %v3121
  %v3336 = vpop.f32.mrf.mxu0
  %v3337 = vadd.f32 0.0, %v3336
  %v3338 = vpop.f32.mrf.mxu0
  %3339 = vmatprep.mubr.f32.mxu0 0.0
  %3340 = vmatmul.mubr.f32.gmra.mxu0 %v3122
  %v3341 = vpop.f32.mrf.mxu0
  %v3342 = vadd.f32 0.0, %v3341
  %v3343 = vpop.f32.mrf.mxu0
  %3344 = vmatprep.mubr.f32.mxu0 0.0
  %3345 = vmatmul.mubr.f32.gmra.mxu0 %v3123
  %v3346 = vpop.f32.mrf.mxu0
  %v3347 = vadd.f32 0.0, %v3346
  %v3348 = vpop.f32.mrf.mxu0
  %3349 = vmatprep.mubr.f32.mxu0 0.0
  %3350 = vmatmul.mubr.f32.gmra.mxu0 %v3124
  %v3351 = vpop.f32.mrf.mxu0
  %v3352 = vadd.f32 0.0, %v3351
  %v3353 = vpop.f32.mrf.mxu0
  %3354 = vmatprep.mubr.f32.mxu0 0.0
  %3355 = vmatmul.mubr.f32.gmra.mxu0 %v3125
  %v3356 = vpop.f32.mrf.mxu0
  %v3357 = vadd.f32 0.0, %v3356
  %v3358 = vpop.f32.mrf.mxu0
  %3359 = vmatprep.mubr.f32.mxu0 0.0
  %3360 = vmatmul.mubr.f32.gmra.mxu0 %v3126
  %v3361 = vpop.f32.mrf.mxu0
  %v3362 = vadd.f32 0.0, %v3361
  %v3363 = vpop.f32.mrf.mxu0
  %3364 = vmatprep.mubr.f32.mxu0 0.0
  %3365 = vmatmul.mubr.f32.gmra.mxu0 %v3127
  %v3366 = vpop.f32.mrf.mxu0
  %v3367 = vadd.f32 0.0, %v3366
  %v3368 = vpop.f32.mrf.mxu0
  %3369 = vdwg.mxu0
  %v3370 = vsub.f32 %v1997, %v3212
  %v3371 = vsub.f32 %v1998, %v3217
  %v3372 = vsub.f32 %v1999, %v3222
  %v3373 = vsub.f32 %v2000, %v3227
  %v3374 = vsub.f32 %v2001, %v3232
  %v3375 = vsub.f32 %v2002, %v3237
  %v3376 = vsub.f32 %v2003, %v3242
  %v3377 = vsub.f32 %v2004, %v3247
  %v3378 = vsub.f32 %v2005, %v3252
  %v3379 = vsub.f32 %v2006, %v3257
  %v3380 = vsub.f32 %v2007, %v3262
  %v3381 = vsub.f32 %v2008, %v3267
  %v3382 = vsub.f32 %v2009, %v3272
  %v3383 = vsub.f32 %v2010, %v3277
  %v3384 = vsub.f32 %v2011, %v3282
  %v3385 = vsub.f32 %v2012, %v3287
  %v3386 = vsub.f32 %v2013, %v3292
  %v3387 = vsub.f32 %v2014, %v3297
  %v3388 = vsub.f32 %v2015, %v3302
  %v3389 = vsub.f32 %v2016, %v3307
  %v3390 = vsub.f32 %v2017, %v3312
  %v3391 = vsub.f32 %v2018, %v3317
  %v3392 = vsub.f32 %v2019, %v3322
  %v3393 = vsub.f32 %v2020, %v3327
  %v3394 = vsub.f32 %v2021, %v3332
  %v3395 = vsub.f32 %v2022, %v3337
  %v3396 = vsub.f32 %v2023, %v3342
  %v3397 = vsub.f32 %v2024, %v3347
  %v3398 = vsub.f32 %v2025, %v3352
  %v3399 = vsub.f32 %v2026, %v3357
  %v3400 = vsub.f32 %v2027, %v3362
  %v3401 = vsub.f32 %v2028, %v3367
  %vm3402 = vcmp.eq.s32.totalorder %v689, 1
  %v3403 = vsel %vm3402, %v2597, %v2030
  %v3404 = vsel %vm3402, %v2611, %v2031
  %v3405 = vsel %vm3402, %v2625, %v2032
  %v3406 = vsel %vm3402, %v2639, %v2033
  %v3407 = vsel %vm3402, %v2653, %v2034
  %v3408 = vsel %vm3402, %v2667, %v2035
  %v3409 = vsel %vm3402, %v2681, %v2036
  %v3410 = vsel %vm3402, %v2695, %v2037
  %v3411 = vsel %vm3402, %v2709, %v2038
  %v3412 = vsel %vm3402, %v2723, %v2039
  %v3413 = vsel %vm3402, %v2737, %v2040
  %v3414 = vsel %vm3402, %v2751, %v2041
  %v3415 = vsel %vm3402, %v2765, %v2042
  %v3416 = vsel %vm3402, %v2779, %v2043
  %v3417 = vsel %vm3402, %v2793, %v2044
  %v3418 = vsel %vm3402, %v2807, %v2045
  %v3419 = vsel %vm3402, %v2821, %v2046
  %v3420 = vsel %vm3402, %v2835, %v2047
  %v3421 = vsel %vm3402, %v2849, %v2048
  %v3422 = vsel %vm3402, %v2863, %v2049
  %v3423 = vsel %vm3402, %v2877, %v2050
  %v3424 = vsel %vm3402, %v2891, %v2051
  %v3425 = vsel %vm3402, %v2905, %v2052
  %v3426 = vsel %vm3402, %v2919, %v2053
  %v3427 = vsel %vm3402, %v2933, %v2054
  %v3428 = vsel %vm3402, %v2947, %v2055
  %v3429 = vsel %vm3402, %v2961, %v2056
  %v3430 = vsel %vm3402, %v2975, %v2057
  %v3431 = vsel %vm3402, %v2989, %v2058
  %v3432 = vsel %vm3402, %v3003, %v2059
  %v3433 = vsel %vm3402, %v3017, %v2060
  %v3434 = vsel %vm3402, %v3031, %v2061
  %s3435 = scalar_lea.vmem %s6, 64
  %v3436 = vld [vmem:[%s3435] sm:$0xff]
  %v3437 = vld [vmem:[%s3435 + $0x8] sm:$0xff]
  %v3438 = vld [vmem:[%s3435 + $0x10] sm:$0xff]
  %v3439 = vld [vmem:[%s3435 + $0x18] sm:$0xff]
  %v3441 = vsel %vm694, %v3370, 0
  %v3444 = vsel %vm694, %v3371, 0
  %v3447 = vsel %vm694, %v3372, 0
  %v3450 = vsel %vm694, %v3373, 0
  %v3453 = vsel %vm694, %v3374, 0
  %v3456 = vsel %vm694, %v3375, 0
  %v3459 = vsel %vm694, %v3376, 0
  %v3462 = vsel %vm694, %v3377, 0
  %v3465 = vsel %vm694, %v3378, 0
  %v3468 = vsel %vm694, %v3379, 0
  %v3471 = vsel %vm694, %v3380, 0
  %v3474 = vsel %vm694, %v3381, 0
  %v3477 = vsel %vm694, %v3382, 0
  %v3480 = vsel %vm694, %v3383, 0
  %v3483 = vsel %vm694, %v3384, 0
  %v3486 = vsel %vm694, %v3385, 0
  %v3489 = vsel %vm694, %v3386, 0
  %v3492 = vsel %vm694, %v3387, 0
  %v3495 = vsel %vm694, %v3388, 0
  %v3498 = vsel %vm694, %v3389, 0
  %v3501 = vsel %vm694, %v3390, 0
  %v3504 = vsel %vm694, %v3391, 0
  %v3507 = vsel %vm694, %v3392, 0
  %v3510 = vsel %vm694, %v3393, 0
  %v3513 = vsel %vm694, %v3394, 0
  %v3516 = vsel %vm694, %v3395, 0
  %v3519 = vsel %vm694, %v3396, 0
  %v3522 = vsel %vm694, %v3397, 0
  %v3525 = vsel %vm694, %v3398, 0
  %v3528 = vsel %vm694, %v3399, 0
  %v3531 = vsel %vm694, %v3400, 0
  %v3534 = vsel %vm694, %v3401, 0
  %3536 = vmatprep.subr.mxu0 0.0
  %3537 = vmatpush1.msra.mxu0 0.0
  %3538 = vmatprep.subr.mxu0 0.0
  %3539 = vmatpush1.msra.mxu0 0.0
  %3540 = vmatprep.subr.mxu0 0.0
  %3541 = vmatpush1.msra.mxu0 0.0
  %3542 = vmatprep.subr.mxu0 0.0
  %3543 = vmatpush1.msra.mxu0 0.0
  %3544 = vmatprep.subr.mxu0 0.0
  %3545 = vmatpush1.msra.mxu0 0.0
  %3546 = vmatprep.subr.mxu0 0.0
  %3547 = vmatpush1.msra.mxu0 0.0
  %3548 = vmatprep.subr.mxu0 0.0
  %3549 = vmatpush1.msra.mxu0 0.0
  %3550 = vmatprep.subr.mxu0 0.0
  %3551 = vmatpush1.msra.mxu0 0.0
  %3552 = vmatprep.subr.mxu0 0.0
  %3553 = vmatpush1.msra.mxu0 0.0
  %3554 = vmatprep.subr.mxu0 0.0
  %3555 = vmatpush1.msra.mxu0 0.0
  %3556 = vmatprep.subr.mxu0 0.0
  %3557 = vmatpush1.msra.mxu0 0.0
  %3558 = vmatprep.subr.mxu0 0.0
  %3559 = vmatpush1.msra.mxu0 0.0
  %3560 = vmatprep.subr.mxu0 0.0
  %3561 = vmatpush1.msra.mxu0 %v3439
  %3562 = vmatprep.subr.mxu0 0.0
  %3563 = vmatpush1.msra.mxu0 %v3438
  %3564 = vmatprep.subr.mxu0 0.0
  %3565 = vmatpush1.msra.mxu0 %v3437
  %3566 = vmatprep.subr.mxu0 0.0
  %3567 = vmatpush1.msra.mxu0 %v3436
  %3568 = vmatprep.subr.mxu0 0.0
  %3569 = vmatpush2.msra.mxu0 0.0
  %3570 = vmatprep.subr.mxu0 0.0
  %3571 = vmatpush2.msra.mxu0 0.0
  %3572 = vmatprep.subr.mxu0 0.0
  %3573 = vmatpush2.msra.mxu0 0.0
  %3574 = vmatprep.subr.mxu0 0.0
  %3575 = vmatpush2.msra.mxu0 0.0
  %3576 = vmatprep.subr.mxu0 0.0
  %3577 = vmatpush2.msra.mxu0 0.0
  %3578 = vmatprep.subr.mxu0 0.0
  %3579 = vmatpush2.msra.mxu0 0.0
  %3580 = vmatprep.subr.mxu0 0.0
  %3581 = vmatpush2.msra.mxu0 0.0
  %3582 = vmatprep.subr.mxu0 0.0
  %3583 = vmatpush2.msra.mxu0 0.0
  %3584 = vmatprep.subr.mxu0 0.0
  %3585 = vmatpush2.msra.mxu0 0.0
  %3586 = vmatprep.subr.mxu0 0.0
  %3587 = vmatpush2.msra.mxu0 0.0
  %3588 = vmatprep.subr.mxu0 0.0
  %3589 = vmatpush2.msra.mxu0 0.0
  %3590 = vmatprep.subr.mxu0 0.0
  %3591 = vmatpush2.msra.mxu0 0.0
  %3592 = vmatprep.subr.mxu0 0.0
  %3593 = vmatpush2.msra.mxu0 0.0
  %3594 = vmatprep.subr.mxu0 0.0
  %3595 = vmatpush2.msra.mxu0 0.0
  %3596 = vmatprep.subr.mxu0 0.0
  %3597 = vmatpush2.msra.mxu0 0.0
  %3598 = vmatprep.subr.mxu0 0.0
  %3599 = vmatpush2.msra.mxu0 0.0
  %3600 = vmatprep.mubr.f32.mxu0 0.0
  %3601 = vmatmul.mubr.f32.gmra.mxu0 %v3441
  %v3602 = vpop.f32.mrf.mxu0
  %v3603 = vadd.f32 0.0, %v3602
  %v3604 = vpop.f32.mrf.mxu0
  %3605 = vmatprep.mubr.f32.mxu0 0.0
  %3606 = vmatmul.mubr.f32.gmra.mxu0 %v3444
  %v3607 = vpop.f32.mrf.mxu0
  %v3608 = vadd.f32 0.0, %v3607
  %v3609 = vpop.f32.mrf.mxu0
  %3610 = vmatprep.mubr.f32.mxu0 0.0
  %3611 = vmatmul.mubr.f32.gmra.mxu0 %v3447
  %v3612 = vpop.f32.mrf.mxu0
  %v3613 = vadd.f32 0.0, %v3612
  %v3614 = vpop.f32.mrf.mxu0
  %3615 = vmatprep.mubr.f32.mxu0 0.0
  %3616 = vmatmul.mubr.f32.gmra.mxu0 %v3450
  %v3617 = vpop.f32.mrf.mxu0
  %v3618 = vadd.f32 0.0, %v3617
  %v3619 = vpop.f32.mrf.mxu0
  %3620 = vmatprep.mubr.f32.mxu0 0.0
  %3621 = vmatmul.mubr.f32.gmra.mxu0 %v3453
  %v3622 = vpop.f32.mrf.mxu0
  %v3623 = vadd.f32 0.0, %v3622
  %v3624 = vpop.f32.mrf.mxu0
  %3625 = vmatprep.mubr.f32.mxu0 0.0
  %3626 = vmatmul.mubr.f32.gmra.mxu0 %v3456
  %v3627 = vpop.f32.mrf.mxu0
  %v3628 = vadd.f32 0.0, %v3627
  %v3629 = vpop.f32.mrf.mxu0
  %3630 = vmatprep.mubr.f32.mxu0 0.0
  %3631 = vmatmul.mubr.f32.gmra.mxu0 %v3459
  %v3632 = vpop.f32.mrf.mxu0
  %v3633 = vadd.f32 0.0, %v3632
  %v3634 = vpop.f32.mrf.mxu0
  %3635 = vmatprep.mubr.f32.mxu0 0.0
  %3636 = vmatmul.mubr.f32.gmra.mxu0 %v3462
  %v3637 = vpop.f32.mrf.mxu0
  %v3638 = vadd.f32 0.0, %v3637
  %v3639 = vpop.f32.mrf.mxu0
  %3640 = vmatprep.mubr.f32.mxu0 0.0
  %3641 = vmatmul.mubr.f32.gmra.mxu0 %v3465
  %v3642 = vpop.f32.mrf.mxu0
  %v3643 = vadd.f32 0.0, %v3642
  %v3644 = vpop.f32.mrf.mxu0
  %3645 = vmatprep.mubr.f32.mxu0 0.0
  %3646 = vmatmul.mubr.f32.gmra.mxu0 %v3468
  %v3647 = vpop.f32.mrf.mxu0
  %v3648 = vadd.f32 0.0, %v3647
  %v3649 = vpop.f32.mrf.mxu0
  %3650 = vmatprep.mubr.f32.mxu0 0.0
  %3651 = vmatmul.mubr.f32.gmra.mxu0 %v3471
  %v3652 = vpop.f32.mrf.mxu0
  %v3653 = vadd.f32 0.0, %v3652
  %v3654 = vpop.f32.mrf.mxu0
  %3655 = vmatprep.mubr.f32.mxu0 0.0
  %3656 = vmatmul.mubr.f32.gmra.mxu0 %v3474
  %v3657 = vpop.f32.mrf.mxu0
  %v3658 = vadd.f32 0.0, %v3657
  %v3659 = vpop.f32.mrf.mxu0
  %3660 = vmatprep.mubr.f32.mxu0 0.0
  %3661 = vmatmul.mubr.f32.gmra.mxu0 %v3477
  %v3662 = vpop.f32.mrf.mxu0
  %v3663 = vadd.f32 0.0, %v3662
  %v3664 = vpop.f32.mrf.mxu0
  %3665 = vmatprep.mubr.f32.mxu0 0.0
  %3666 = vmatmul.mubr.f32.gmra.mxu0 %v3480
  %v3667 = vpop.f32.mrf.mxu0
  %v3668 = vadd.f32 0.0, %v3667
  %v3669 = vpop.f32.mrf.mxu0
  %3670 = vmatprep.mubr.f32.mxu0 0.0
  %3671 = vmatmul.mubr.f32.gmra.mxu0 %v3483
  %v3672 = vpop.f32.mrf.mxu0
  %v3673 = vadd.f32 0.0, %v3672
  %v3674 = vpop.f32.mrf.mxu0
  %3675 = vmatprep.mubr.f32.mxu0 0.0
  %3676 = vmatmul.mubr.f32.gmra.mxu0 %v3486
  %v3677 = vpop.f32.mrf.mxu0
  %v3678 = vadd.f32 0.0, %v3677
  %v3679 = vpop.f32.mrf.mxu0
  %3680 = vmatprep.mubr.f32.mxu0 0.0
  %3681 = vmatmul.mubr.f32.gmra.mxu0 %v3489
  %v3682 = vpop.f32.mrf.mxu0
  %v3683 = vadd.f32 0.0, %v3682
  %v3684 = vpop.f32.mrf.mxu0
  %3685 = vmatprep.mubr.f32.mxu0 0.0
  %3686 = vmatmul.mubr.f32.gmra.mxu0 %v3492
  %v3687 = vpop.f32.mrf.mxu0
  %v3688 = vadd.f32 0.0, %v3687
  %v3689 = vpop.f32.mrf.mxu0
  %3690 = vmatprep.mubr.f32.mxu0 0.0
  %3691 = vmatmul.mubr.f32.gmra.mxu0 %v3495
  %v3692 = vpop.f32.mrf.mxu0
  %v3693 = vadd.f32 0.0, %v3692
  %v3694 = vpop.f32.mrf.mxu0
  %3695 = vmatprep.mubr.f32.mxu0 0.0
  %3696 = vmatmul.mubr.f32.gmra.mxu0 %v3498
  %v3697 = vpop.f32.mrf.mxu0
  %v3698 = vadd.f32 0.0, %v3697
  %v3699 = vpop.f32.mrf.mxu0
  %3700 = vmatprep.mubr.f32.mxu0 0.0
  %3701 = vmatmul.mubr.f32.gmra.mxu0 %v3501
  %v3702 = vpop.f32.mrf.mxu0
  %v3703 = vadd.f32 0.0, %v3702
  %v3704 = vpop.f32.mrf.mxu0
  %3705 = vmatprep.mubr.f32.mxu0 0.0
  %3706 = vmatmul.mubr.f32.gmra.mxu0 %v3504
  %v3707 = vpop.f32.mrf.mxu0
  %v3708 = vadd.f32 0.0, %v3707
  %v3709 = vpop.f32.mrf.mxu0
  %3710 = vmatprep.mubr.f32.mxu0 0.0
  %3711 = vmatmul.mubr.f32.gmra.mxu0 %v3507
  %v3712 = vpop.f32.mrf.mxu0
  %v3713 = vadd.f32 0.0, %v3712
  %v3714 = vpop.f32.mrf.mxu0
  %3715 = vmatprep.mubr.f32.mxu0 0.0
  %3716 = vmatmul.mubr.f32.gmra.mxu0 %v3510
  %v3717 = vpop.f32.mrf.mxu0
  %v3718 = vadd.f32 0.0, %v3717
  %v3719 = vpop.f32.mrf.mxu0
  %3720 = vmatprep.mubr.f32.mxu0 0.0
  %3721 = vmatmul.mubr.f32.gmra.mxu0 %v3513
  %v3722 = vpop.f32.mrf.mxu0
  %v3723 = vadd.f32 0.0, %v3722
  %v3724 = vpop.f32.mrf.mxu0
  %3725 = vmatprep.mubr.f32.mxu0 0.0
  %3726 = vmatmul.mubr.f32.gmra.mxu0 %v3516
  %v3727 = vpop.f32.mrf.mxu0
  %v3728 = vadd.f32 0.0, %v3727
  %v3729 = vpop.f32.mrf.mxu0
  %3730 = vmatprep.mubr.f32.mxu0 0.0
  %3731 = vmatmul.mubr.f32.gmra.mxu0 %v3519
  %v3732 = vpop.f32.mrf.mxu0
  %v3733 = vadd.f32 0.0, %v3732
  %v3734 = vpop.f32.mrf.mxu0
  %3735 = vmatprep.mubr.f32.mxu0 0.0
  %3736 = vmatmul.mubr.f32.gmra.mxu0 %v3522
  %v3737 = vpop.f32.mrf.mxu0
  %v3738 = vadd.f32 0.0, %v3737
  %v3739 = vpop.f32.mrf.mxu0
  %3740 = vmatprep.mubr.f32.mxu0 0.0
  %3741 = vmatmul.mubr.f32.gmra.mxu0 %v3525
  %v3742 = vpop.f32.mrf.mxu0
  %v3743 = vadd.f32 0.0, %v3742
  %v3744 = vpop.f32.mrf.mxu0
  %3745 = vmatprep.mubr.f32.mxu0 0.0
  %3746 = vmatmul.mubr.f32.gmra.mxu0 %v3528
  %v3747 = vpop.f32.mrf.mxu0
  %v3748 = vadd.f32 0.0, %v3747
  %v3749 = vpop.f32.mrf.mxu0
  %3750 = vmatprep.mubr.f32.mxu0 0.0
  %3751 = vmatmul.mubr.f32.gmra.mxu0 %v3531
  %v3752 = vpop.f32.mrf.mxu0
  %v3753 = vadd.f32 0.0, %v3752
  %v3754 = vpop.f32.mrf.mxu0
  %3755 = vmatprep.mubr.f32.mxu0 0.0
  %3756 = vmatmul.mubr.f32.gmra.mxu0 %v3534
  %v3757 = vpop.f32.mrf.mxu0
  %v3758 = vadd.f32 0.0, %v3757
  %v3759 = vpop.f32.mrf.mxu0
  %3760 = vdwg.mxu0
  %v3761 = vmul.f32 %v3603, 2.0
  %v3762 = vmul.f32 %v3608, 2.0
  %v3763 = vmul.f32 %v3613, 2.0
  %v3764 = vmul.f32 %v3618, 2.0
  %v3765 = vmul.f32 %v3623, 2.0
  %v3766 = vmul.f32 %v3628, 2.0
  %v3767 = vmul.f32 %v3633, 2.0
  %v3768 = vmul.f32 %v3638, 2.0
  %v3769 = vmul.f32 %v3643, 2.0
  %v3770 = vmul.f32 %v3648, 2.0
  %v3771 = vmul.f32 %v3653, 2.0
  %v3772 = vmul.f32 %v3658, 2.0
  %v3773 = vmul.f32 %v3663, 2.0
  %v3774 = vmul.f32 %v3668, 2.0
  %v3775 = vmul.f32 %v3673, 2.0
  %v3776 = vmul.f32 %v3678, 2.0
  %v3777 = vmul.f32 %v3683, 2.0
  %v3778 = vmul.f32 %v3688, 2.0
  %v3779 = vmul.f32 %v3693, 2.0
  %v3780 = vmul.f32 %v3698, 2.0
  %v3781 = vmul.f32 %v3703, 2.0
  %v3782 = vmul.f32 %v3708, 2.0
  %v3783 = vmul.f32 %v3713, 2.0
  %v3784 = vmul.f32 %v3718, 2.0
  %v3785 = vmul.f32 %v3723, 2.0
  %v3786 = vmul.f32 %v3728, 2.0
  %v3787 = vmul.f32 %v3733, 2.0
  %v3788 = vmul.f32 %v3738, 2.0
  %v3789 = vmul.f32 %v3743, 2.0
  %v3790 = vmul.f32 %v3748, 2.0
  %v3791 = vmul.f32 %v3753, 2.0
  %v3792 = vmul.f32 %v3758, 2.0
  %v3793 = vlaneseq
  %v3794 = vshrl.u32 %v3793, 7
  %v3795 = vsub.s32 2, %v3794
  %v3796 = vrot.slane %v687, %v3795
  %v3797 = vsub.f32 %v3796, %v3761
  %v3798 = vsub.f32 %v3796, %v3762
  %v3799 = vsub.f32 %v3796, %v3763
  %v3800 = vsub.f32 %v3796, %v3764
  %v3801 = vsub.f32 %v3796, %v3765
  %v3802 = vsub.f32 %v3796, %v3766
  %v3803 = vsub.f32 %v3796, %v3767
  %v3804 = vsub.f32 %v3796, %v3768
  %v3805 = vsub.f32 %v3796, %v3769
  %v3806 = vsub.f32 %v3796, %v3770
  %v3807 = vsub.f32 %v3796, %v3771
  %v3808 = vsub.f32 %v3796, %v3772
  %v3809 = vsub.f32 %v3796, %v3773
  %v3810 = vsub.f32 %v3796, %v3774
  %v3811 = vsub.f32 %v3796, %v3775
  %v3812 = vsub.f32 %v3796, %v3776
  %v3813 = vsub.f32 %v3796, %v3777
  %v3814 = vsub.f32 %v3796, %v3778
  %v3815 = vsub.f32 %v3796, %v3779
  %v3816 = vsub.f32 %v3796, %v3780
  %v3817 = vsub.f32 %v3796, %v3781
  %v3818 = vsub.f32 %v3796, %v3782
  %v3819 = vsub.f32 %v3796, %v3783
  %v3820 = vsub.f32 %v3796, %v3784
  %v3821 = vsub.f32 %v3796, %v3785
  %v3822 = vsub.f32 %v3796, %v3786
  %v3823 = vsub.f32 %v3796, %v3787
  %v3824 = vsub.f32 %v3796, %v3788
  %v3825 = vsub.f32 %v3796, %v3789
  %v3826 = vsub.f32 %v3796, %v3790
  %v3827 = vsub.f32 %v3796, %v3791
  %v3828 = vsub.f32 %v3796, %v3792
  %3829 = vmin.xlane.f32.xlu0 %v3797
  %v3830 = vpop.xlane.xlu0 %3829
  %3831 = vmin.xlane.f32.xlu0 %v3798
  %v3832 = vpop.xlane.xlu0 %3831
  %3833 = vmin.xlane.f32.xlu0 %v3799
  %v3834 = vpop.xlane.xlu0 %3833
  %3835 = vmin.xlane.f32.xlu0 %v3800
  %v3836 = vpop.xlane.xlu0 %3835
  %3837 = vmin.xlane.f32.xlu0 %v3801
  %v3838 = vpop.xlane.xlu0 %3837
  %3839 = vmin.xlane.f32.xlu0 %v3802
  %v3840 = vpop.xlane.xlu0 %3839
  %3841 = vmin.xlane.f32.xlu0 %v3803
  %v3842 = vpop.xlane.xlu0 %3841
  %3843 = vmin.xlane.f32.xlu0 %v3804
  %v3844 = vpop.xlane.xlu0 %3843
  %3845 = vmin.xlane.f32.xlu0 %v3805
  %v3846 = vpop.xlane.xlu0 %3845
  %3847 = vmin.xlane.f32.xlu0 %v3806
  %v3848 = vpop.xlane.xlu0 %3847
  %3849 = vmin.xlane.f32.xlu0 %v3807
  %v3850 = vpop.xlane.xlu0 %3849
  %3851 = vmin.xlane.f32.xlu0 %v3808
  %v3852 = vpop.xlane.xlu0 %3851
  %3853 = vmin.xlane.f32.xlu0 %v3809
  %v3854 = vpop.xlane.xlu0 %3853
  %3855 = vmin.xlane.f32.xlu0 %v3810
  %v3856 = vpop.xlane.xlu0 %3855
  %3857 = vmin.xlane.f32.xlu0 %v3811
  %v3858 = vpop.xlane.xlu0 %3857
  %3859 = vmin.xlane.f32.xlu0 %v3812
  %v3860 = vpop.xlane.xlu0 %3859
  %3861 = vmin.xlane.f32.xlu0 %v3813
  %v3862 = vpop.xlane.xlu0 %3861
  %3863 = vmin.xlane.f32.xlu0 %v3814
  %v3864 = vpop.xlane.xlu0 %3863
  %3865 = vmin.xlane.f32.xlu0 %v3815
  %v3866 = vpop.xlane.xlu0 %3865
  %3867 = vmin.xlane.f32.xlu0 %v3816
  %v3868 = vpop.xlane.xlu0 %3867
  %3869 = vmin.xlane.f32.xlu0 %v3817
  %v3870 = vpop.xlane.xlu0 %3869
  %3871 = vmin.xlane.f32.xlu0 %v3818
  %v3872 = vpop.xlane.xlu0 %3871
  %3873 = vmin.xlane.f32.xlu0 %v3819
  %v3874 = vpop.xlane.xlu0 %3873
  %3875 = vmin.xlane.f32.xlu0 %v3820
  %v3876 = vpop.xlane.xlu0 %3875
  %3877 = vmin.xlane.f32.xlu0 %v3821
  %v3878 = vpop.xlane.xlu0 %3877
  %3879 = vmin.xlane.f32.xlu0 %v3822
  %v3880 = vpop.xlane.xlu0 %3879
  %3881 = vmin.xlane.f32.xlu0 %v3823
  %v3882 = vpop.xlane.xlu0 %3881
  %3883 = vmin.xlane.f32.xlu0 %v3824
  %v3884 = vpop.xlane.xlu0 %3883
  %3885 = vmin.xlane.f32.xlu0 %v3825
  %v3886 = vpop.xlane.xlu0 %3885
  %3887 = vmin.xlane.f32.xlu0 %v3826
  %v3888 = vpop.xlane.xlu0 %3887
  %3889 = vmin.xlane.f32.xlu0 %v3827
  %v3890 = vpop.xlane.xlu0 %3889
  %3891 = vmin.xlane.f32.xlu0 %v3828
  %v3892 = vpop.xlane.xlu0 %3891
  %vm3893 = vcmp.le.f32.partialorder %v3797, %v3830
  %vm3894 = vcmp.le.f32.partialorder %v3798, %v3832
  %vm3895 = vcmp.le.f32.partialorder %v3799, %v3834
  %vm3896 = vcmp.le.f32.partialorder %v3800, %v3836
  %vm3897 = vcmp.le.f32.partialorder %v3801, %v3838
  %vm3898 = vcmp.le.f32.partialorder %v3802, %v3840
  %vm3899 = vcmp.le.f32.partialorder %v3803, %v3842
  %vm3900 = vcmp.le.f32.partialorder %v3804, %v3844
  %vm3901 = vcmp.le.f32.partialorder %v3805, %v3846
  %vm3902 = vcmp.le.f32.partialorder %v3806, %v3848
  %vm3903 = vcmp.le.f32.partialorder %v3807, %v3850
  %vm3904 = vcmp.le.f32.partialorder %v3808, %v3852
  %vm3905 = vcmp.le.f32.partialorder %v3809, %v3854
  %vm3906 = vcmp.le.f32.partialorder %v3810, %v3856
  %vm3907 = vcmp.le.f32.partialorder %v3811, %v3858
  %vm3908 = vcmp.le.f32.partialorder %v3812, %v3860
  %vm3909 = vcmp.le.f32.partialorder %v3813, %v3862
  %vm3910 = vcmp.le.f32.partialorder %v3814, %v3864
  %vm3911 = vcmp.le.f32.partialorder %v3815, %v3866
  %vm3912 = vcmp.le.f32.partialorder %v3816, %v3868
  %vm3913 = vcmp.le.f32.partialorder %v3817, %v3870
  %vm3914 = vcmp.le.f32.partialorder %v3818, %v3872
  %vm3915 = vcmp.le.f32.partialorder %v3819, %v3874
  %vm3916 = vcmp.le.f32.partialorder %v3820, %v3876
  %vm3917 = vcmp.le.f32.partialorder %v3821, %v3878
  %vm3918 = vcmp.le.f32.partialorder %v3822, %v3880
  %vm3919 = vcmp.le.f32.partialorder %v3823, %v3882
  %vm3920 = vcmp.le.f32.partialorder %v3824, %v3884
  %vm3921 = vcmp.le.f32.partialorder %v3825, %v3886
  %vm3922 = vcmp.le.f32.partialorder %v3826, %v3888
  %vm3923 = vcmp.le.f32.partialorder %v3827, %v3890
  %vm3924 = vcmp.le.f32.partialorder %v3828, %v3892
  %v3925 = vsel %vm3893, %v689, 128
  %v3926 = vsel %vm3894, %v689, 128
  %v3927 = vsel %vm3895, %v689, 128
  %v3928 = vsel %vm3896, %v689, 128
  %v3929 = vsel %vm3897, %v689, 128
  %v3930 = vsel %vm3898, %v689, 128
  %v3931 = vsel %vm3899, %v689, 128
  %v3932 = vsel %vm3900, %v689, 128
  %v3933 = vsel %vm3901, %v689, 128
  %v3934 = vsel %vm3902, %v689, 128
  %v3935 = vsel %vm3903, %v689, 128
  %v3936 = vsel %vm3904, %v689, 128
  %v3937 = vsel %vm3905, %v689, 128
  %v3938 = vsel %vm3906, %v689, 128
  %v3939 = vsel %vm3907, %v689, 128
  %v3940 = vsel %vm3908, %v689, 128
  %v3941 = vsel %vm3909, %v689, 128
  %v3942 = vsel %vm3910, %v689, 128
  %v3943 = vsel %vm3911, %v689, 128
  %v3944 = vsel %vm3912, %v689, 128
  %v3945 = vsel %vm3913, %v689, 128
  %v3946 = vsel %vm3914, %v689, 128
  %v3947 = vsel %vm3915, %v689, 128
  %v3948 = vsel %vm3916, %v689, 128
  %v3949 = vsel %vm3917, %v689, 128
  %v3950 = vsel %vm3918, %v689, 128
  %v3951 = vsel %vm3919, %v689, 128
  %v3952 = vsel %vm3920, %v689, 128
  %v3953 = vsel %vm3921, %v689, 128
  %v3954 = vsel %vm3922, %v689, 128
  %v3955 = vsel %vm3923, %v689, 128
  %v3956 = vsel %vm3924, %v689, 128
  %v3957 = vand.u32 %v3925, 65535
  %v3958 = vshra.s32 %v3925, 16
  %v3959 = vcvt.s32.f32 %v3957
  %v3960 = vcvt.s32.f32 %v3958
  %3961 = vmin.xlane.f32.xlu0 %v3960
  %v3962 = vpop.xlane.xlu0 %3961
  %vm3963 = vcmp.eq.f32.partialorder %v3960, %v3962
  %v3964 = vsel %vm3963, %v3959, inf
  %3965 = vmin.xlane.f32.xlu0 %v3964
  %v3966 = vpop.xlane.xlu0 %3965
  %v3967 = vcvt.f32.s32 %v3966
  %v3968 = vcvt.f32.s32 %v3962
  %v3969 = vshll.u32 %v3968, 16
  %v3970 = vadd.s32 %v3969, %v3967
  %v3971 = vand.u32 %v3926, 65535
  %v3972 = vshra.s32 %v3926, 16
  %v3973 = vcvt.s32.f32 %v3971
  %v3974 = vcvt.s32.f32 %v3972
  %3975 = vmin.xlane.f32.xlu0 %v3974
  %v3976 = vpop.xlane.xlu0 %3975
  %vm3977 = vcmp.eq.f32.partialorder %v3974, %v3976
  %v3978 = vsel %vm3977, %v3973, inf
  %3979 = vmin.xlane.f32.xlu0 %v3978
  %v3980 = vpop.xlane.xlu0 %3979
  %v3981 = vcvt.f32.s32 %v3980
  %v3982 = vcvt.f32.s32 %v3976
  %v3983 = vshll.u32 %v3982, 16
  %v3984 = vadd.s32 %v3983, %v3981
  %v3985 = vand.u32 %v3927, 65535
  %v3986 = vshra.s32 %v3927, 16
  %v3987 = vcvt.s32.f32 %v3985
  %v3988 = vcvt.s32.f32 %v3986
  %3989 = vmin.xlane.f32.xlu0 %v3988
  %v3990 = vpop.xlane.xlu0 %3989
  %vm3991 = vcmp.eq.f32.partialorder %v3988, %v3990
  %v3992 = vsel %vm3991, %v3987, inf
  %3993 = vmin.xlane.f32.xlu0 %v3992
  %v3994 = vpop.xlane.xlu0 %3993
  %v3995 = vcvt.f32.s32 %v3994
  %v3996 = vcvt.f32.s32 %v3990
  %v3997 = vshll.u32 %v3996, 16
  %v3998 = vadd.s32 %v3997, %v3995
  %v3999 = vand.u32 %v3928, 65535
  %v4000 = vshra.s32 %v3928, 16
  %v4001 = vcvt.s32.f32 %v3999
  %v4002 = vcvt.s32.f32 %v4000
  %4003 = vmin.xlane.f32.xlu0 %v4002
  %v4004 = vpop.xlane.xlu0 %4003
  %vm4005 = vcmp.eq.f32.partialorder %v4002, %v4004
  %v4006 = vsel %vm4005, %v4001, inf
  %4007 = vmin.xlane.f32.xlu0 %v4006
  %v4008 = vpop.xlane.xlu0 %4007
  %v4009 = vcvt.f32.s32 %v4008
  %v4010 = vcvt.f32.s32 %v4004
  %v4011 = vshll.u32 %v4010, 16
  %v4012 = vadd.s32 %v4011, %v4009
  %v4013 = vand.u32 %v3929, 65535
  %v4014 = vshra.s32 %v3929, 16
  %v4015 = vcvt.s32.f32 %v4013
  %v4016 = vcvt.s32.f32 %v4014
  %4017 = vmin.xlane.f32.xlu0 %v4016
  %v4018 = vpop.xlane.xlu0 %4017
  %vm4019 = vcmp.eq.f32.partialorder %v4016, %v4018
  %v4020 = vsel %vm4019, %v4015, inf
  %4021 = vmin.xlane.f32.xlu0 %v4020
  %v4022 = vpop.xlane.xlu0 %4021
  %v4023 = vcvt.f32.s32 %v4022
  %v4024 = vcvt.f32.s32 %v4018
  %v4025 = vshll.u32 %v4024, 16
  %v4026 = vadd.s32 %v4025, %v4023
  %v4027 = vand.u32 %v3930, 65535
  %v4028 = vshra.s32 %v3930, 16
  %v4029 = vcvt.s32.f32 %v4027
  %v4030 = vcvt.s32.f32 %v4028
  %4031 = vmin.xlane.f32.xlu0 %v4030
  %v4032 = vpop.xlane.xlu0 %4031
  %vm4033 = vcmp.eq.f32.partialorder %v4030, %v4032
  %v4034 = vsel %vm4033, %v4029, inf
  %4035 = vmin.xlane.f32.xlu0 %v4034
  %v4036 = vpop.xlane.xlu0 %4035
  %v4037 = vcvt.f32.s32 %v4036
  %v4038 = vcvt.f32.s32 %v4032
  %v4039 = vshll.u32 %v4038, 16
  %v4040 = vadd.s32 %v4039, %v4037
  %v4041 = vand.u32 %v3931, 65535
  %v4042 = vshra.s32 %v3931, 16
  %v4043 = vcvt.s32.f32 %v4041
  %v4044 = vcvt.s32.f32 %v4042
  %4045 = vmin.xlane.f32.xlu0 %v4044
  %v4046 = vpop.xlane.xlu0 %4045
  %vm4047 = vcmp.eq.f32.partialorder %v4044, %v4046
  %v4048 = vsel %vm4047, %v4043, inf
  %4049 = vmin.xlane.f32.xlu0 %v4048
  %v4050 = vpop.xlane.xlu0 %4049
  %v4051 = vcvt.f32.s32 %v4050
  %v4052 = vcvt.f32.s32 %v4046
  %v4053 = vshll.u32 %v4052, 16
  %v4054 = vadd.s32 %v4053, %v4051
  %v4055 = vand.u32 %v3932, 65535
  %v4056 = vshra.s32 %v3932, 16
  %v4057 = vcvt.s32.f32 %v4055
  %v4058 = vcvt.s32.f32 %v4056
  %4059 = vmin.xlane.f32.xlu0 %v4058
  %v4060 = vpop.xlane.xlu0 %4059
  %vm4061 = vcmp.eq.f32.partialorder %v4058, %v4060
  %v4062 = vsel %vm4061, %v4057, inf
  %4063 = vmin.xlane.f32.xlu0 %v4062
  %v4064 = vpop.xlane.xlu0 %4063
  %v4065 = vcvt.f32.s32 %v4064
  %v4066 = vcvt.f32.s32 %v4060
  %v4067 = vshll.u32 %v4066, 16
  %v4068 = vadd.s32 %v4067, %v4065
  %v4069 = vand.u32 %v3933, 65535
  %v4070 = vshra.s32 %v3933, 16
  %v4071 = vcvt.s32.f32 %v4069
  %v4072 = vcvt.s32.f32 %v4070
  %4073 = vmin.xlane.f32.xlu0 %v4072
  %v4074 = vpop.xlane.xlu0 %4073
  %vm4075 = vcmp.eq.f32.partialorder %v4072, %v4074
  %v4076 = vsel %vm4075, %v4071, inf
  %4077 = vmin.xlane.f32.xlu0 %v4076
  %v4078 = vpop.xlane.xlu0 %4077
  %v4079 = vcvt.f32.s32 %v4078
  %v4080 = vcvt.f32.s32 %v4074
  %v4081 = vshll.u32 %v4080, 16
  %v4082 = vadd.s32 %v4081, %v4079
  %v4083 = vand.u32 %v3934, 65535
  %v4084 = vshra.s32 %v3934, 16
  %v4085 = vcvt.s32.f32 %v4083
  %v4086 = vcvt.s32.f32 %v4084
  %4087 = vmin.xlane.f32.xlu0 %v4086
  %v4088 = vpop.xlane.xlu0 %4087
  %vm4089 = vcmp.eq.f32.partialorder %v4086, %v4088
  %v4090 = vsel %vm4089, %v4085, inf
  %4091 = vmin.xlane.f32.xlu0 %v4090
  %v4092 = vpop.xlane.xlu0 %4091
  %v4093 = vcvt.f32.s32 %v4092
  %v4094 = vcvt.f32.s32 %v4088
  %v4095 = vshll.u32 %v4094, 16
  %v4096 = vadd.s32 %v4095, %v4093
  %v4097 = vand.u32 %v3935, 65535
  %v4098 = vshra.s32 %v3935, 16
  %v4099 = vcvt.s32.f32 %v4097
  %v4100 = vcvt.s32.f32 %v4098
  %4101 = vmin.xlane.f32.xlu0 %v4100
  %v4102 = vpop.xlane.xlu0 %4101
  %vm4103 = vcmp.eq.f32.partialorder %v4100, %v4102
  %v4104 = vsel %vm4103, %v4099, inf
  %4105 = vmin.xlane.f32.xlu0 %v4104
  %v4106 = vpop.xlane.xlu0 %4105
  %v4107 = vcvt.f32.s32 %v4106
  %v4108 = vcvt.f32.s32 %v4102
  %v4109 = vshll.u32 %v4108, 16
  %v4110 = vadd.s32 %v4109, %v4107
  %v4111 = vand.u32 %v3936, 65535
  %v4112 = vshra.s32 %v3936, 16
  %v4113 = vcvt.s32.f32 %v4111
  %v4114 = vcvt.s32.f32 %v4112
  %4115 = vmin.xlane.f32.xlu0 %v4114
  %v4116 = vpop.xlane.xlu0 %4115
  %vm4117 = vcmp.eq.f32.partialorder %v4114, %v4116
  %v4118 = vsel %vm4117, %v4113, inf
  %4119 = vmin.xlane.f32.xlu0 %v4118
  %v4120 = vpop.xlane.xlu0 %4119
  %v4121 = vcvt.f32.s32 %v4120
  %v4122 = vcvt.f32.s32 %v4116
  %v4123 = vshll.u32 %v4122, 16
  %v4124 = vadd.s32 %v4123, %v4121
  %v4125 = vand.u32 %v3937, 65535
  %v4126 = vshra.s32 %v3937, 16
  %v4127 = vcvt.s32.f32 %v4125
  %v4128 = vcvt.s32.f32 %v4126
  %4129 = vmin.xlane.f32.xlu0 %v4128
  %v4130 = vpop.xlane.xlu0 %4129
  %vm4131 = vcmp.eq.f32.partialorder %v4128, %v4130
  %v4132 = vsel %vm4131, %v4127, inf
  %4133 = vmin.xlane.f32.xlu0 %v4132
  %v4134 = vpop.xlane.xlu0 %4133
  %v4135 = vcvt.f32.s32 %v4134
  %v4136 = vcvt.f32.s32 %v4130
  %v4137 = vshll.u32 %v4136, 16
  %v4138 = vadd.s32 %v4137, %v4135
  %v4139 = vand.u32 %v3938, 65535
  %v4140 = vshra.s32 %v3938, 16
  %v4141 = vcvt.s32.f32 %v4139
  %v4142 = vcvt.s32.f32 %v4140
  %4143 = vmin.xlane.f32.xlu0 %v4142
  %v4144 = vpop.xlane.xlu0 %4143
  %vm4145 = vcmp.eq.f32.partialorder %v4142, %v4144
  %v4146 = vsel %vm4145, %v4141, inf
  %4147 = vmin.xlane.f32.xlu0 %v4146
  %v4148 = vpop.xlane.xlu0 %4147
  %v4149 = vcvt.f32.s32 %v4148
  %v4150 = vcvt.f32.s32 %v4144
  %v4151 = vshll.u32 %v4150, 16
  %v4152 = vadd.s32 %v4151, %v4149
  %v4153 = vand.u32 %v3939, 65535
  %v4154 = vshra.s32 %v3939, 16
  %v4155 = vcvt.s32.f32 %v4153
  %v4156 = vcvt.s32.f32 %v4154
  %4157 = vmin.xlane.f32.xlu0 %v4156
  %v4158 = vpop.xlane.xlu0 %4157
  %vm4159 = vcmp.eq.f32.partialorder %v4156, %v4158
  %v4160 = vsel %vm4159, %v4155, inf
  %4161 = vmin.xlane.f32.xlu0 %v4160
  %v4162 = vpop.xlane.xlu0 %4161
  %v4163 = vcvt.f32.s32 %v4162
  %v4164 = vcvt.f32.s32 %v4158
  %v4165 = vshll.u32 %v4164, 16
  %v4166 = vadd.s32 %v4165, %v4163
  %v4167 = vand.u32 %v3940, 65535
  %v4168 = vshra.s32 %v3940, 16
  %v4169 = vcvt.s32.f32 %v4167
  %v4170 = vcvt.s32.f32 %v4168
  %4171 = vmin.xlane.f32.xlu0 %v4170
  %v4172 = vpop.xlane.xlu0 %4171
  %vm4173 = vcmp.eq.f32.partialorder %v4170, %v4172
  %v4174 = vsel %vm4173, %v4169, inf
  %4175 = vmin.xlane.f32.xlu0 %v4174
  %v4176 = vpop.xlane.xlu0 %4175
  %v4177 = vcvt.f32.s32 %v4176
  %v4178 = vcvt.f32.s32 %v4172
  %v4179 = vshll.u32 %v4178, 16
  %v4180 = vadd.s32 %v4179, %v4177
  %v4181 = vand.u32 %v3941, 65535
  %v4182 = vshra.s32 %v3941, 16
  %v4183 = vcvt.s32.f32 %v4181
  %v4184 = vcvt.s32.f32 %v4182
  %4185 = vmin.xlane.f32.xlu0 %v4184
  %v4186 = vpop.xlane.xlu0 %4185
  %vm4187 = vcmp.eq.f32.partialorder %v4184, %v4186
  %v4188 = vsel %vm4187, %v4183, inf
  %4189 = vmin.xlane.f32.xlu0 %v4188
  %v4190 = vpop.xlane.xlu0 %4189
  %v4191 = vcvt.f32.s32 %v4190
  %v4192 = vcvt.f32.s32 %v4186
  %v4193 = vshll.u32 %v4192, 16
  %v4194 = vadd.s32 %v4193, %v4191
  %v4195 = vand.u32 %v3942, 65535
  %v4196 = vshra.s32 %v3942, 16
  %v4197 = vcvt.s32.f32 %v4195
  %v4198 = vcvt.s32.f32 %v4196
  %4199 = vmin.xlane.f32.xlu0 %v4198
  %v4200 = vpop.xlane.xlu0 %4199
  %vm4201 = vcmp.eq.f32.partialorder %v4198, %v4200
  %v4202 = vsel %vm4201, %v4197, inf
  %4203 = vmin.xlane.f32.xlu0 %v4202
  %v4204 = vpop.xlane.xlu0 %4203
  %v4205 = vcvt.f32.s32 %v4204
  %v4206 = vcvt.f32.s32 %v4200
  %v4207 = vshll.u32 %v4206, 16
  %v4208 = vadd.s32 %v4207, %v4205
  %v4209 = vand.u32 %v3943, 65535
  %v4210 = vshra.s32 %v3943, 16
  %v4211 = vcvt.s32.f32 %v4209
  %v4212 = vcvt.s32.f32 %v4210
  %4213 = vmin.xlane.f32.xlu0 %v4212
  %v4214 = vpop.xlane.xlu0 %4213
  %vm4215 = vcmp.eq.f32.partialorder %v4212, %v4214
  %v4216 = vsel %vm4215, %v4211, inf
  %4217 = vmin.xlane.f32.xlu0 %v4216
  %v4218 = vpop.xlane.xlu0 %4217
  %v4219 = vcvt.f32.s32 %v4218
  %v4220 = vcvt.f32.s32 %v4214
  %v4221 = vshll.u32 %v4220, 16
  %v4222 = vadd.s32 %v4221, %v4219
  %v4223 = vand.u32 %v3944, 65535
  %v4224 = vshra.s32 %v3944, 16
  %v4225 = vcvt.s32.f32 %v4223
  %v4226 = vcvt.s32.f32 %v4224
  %4227 = vmin.xlane.f32.xlu0 %v4226
  %v4228 = vpop.xlane.xlu0 %4227
  %vm4229 = vcmp.eq.f32.partialorder %v4226, %v4228
  %v4230 = vsel %vm4229, %v4225, inf
  %4231 = vmin.xlane.f32.xlu0 %v4230
  %v4232 = vpop.xlane.xlu0 %4231
  %v4233 = vcvt.f32.s32 %v4232
  %v4234 = vcvt.f32.s32 %v4228
  %v4235 = vshll.u32 %v4234, 16
  %v4236 = vadd.s32 %v4235, %v4233
  %v4237 = vand.u32 %v3945, 65535
  %v4238 = vshra.s32 %v3945, 16
  %v4239 = vcvt.s32.f32 %v4237
  %v4240 = vcvt.s32.f32 %v4238
  %4241 = vmin.xlane.f32.xlu0 %v4240
  %v4242 = vpop.xlane.xlu0 %4241
  %vm4243 = vcmp.eq.f32.partialorder %v4240, %v4242
  %v4244 = vsel %vm4243, %v4239, inf
  %4245 = vmin.xlane.f32.xlu0 %v4244
  %v4246 = vpop.xlane.xlu0 %4245
  %v4247 = vcvt.f32.s32 %v4246
  %v4248 = vcvt.f32.s32 %v4242
  %v4249 = vshll.u32 %v4248, 16
  %v4250 = vadd.s32 %v4249, %v4247
  %v4251 = vand.u32 %v3946, 65535
  %v4252 = vshra.s32 %v3946, 16
  %v4253 = vcvt.s32.f32 %v4251
  %v4254 = vcvt.s32.f32 %v4252
  %4255 = vmin.xlane.f32.xlu0 %v4254
  %v4256 = vpop.xlane.xlu0 %4255
  %vm4257 = vcmp.eq.f32.partialorder %v4254, %v4256
  %v4258 = vsel %vm4257, %v4253, inf
  %4259 = vmin.xlane.f32.xlu0 %v4258
  %v4260 = vpop.xlane.xlu0 %4259
  %v4261 = vcvt.f32.s32 %v4260
  %v4262 = vcvt.f32.s32 %v4256
  %v4263 = vshll.u32 %v4262, 16
  %v4264 = vadd.s32 %v4263, %v4261
  %v4265 = vand.u32 %v3947, 65535
  %v4266 = vshra.s32 %v3947, 16
  %v4267 = vcvt.s32.f32 %v4265
  %v4268 = vcvt.s32.f32 %v4266
  %4269 = vmin.xlane.f32.xlu0 %v4268
  %v4270 = vpop.xlane.xlu0 %4269
  %vm4271 = vcmp.eq.f32.partialorder %v4268, %v4270
  %v4272 = vsel %vm4271, %v4267, inf
  %4273 = vmin.xlane.f32.xlu0 %v4272
  %v4274 = vpop.xlane.xlu0 %4273
  %v4275 = vcvt.f32.s32 %v4274
  %v4276 = vcvt.f32.s32 %v4270
  %v4277 = vshll.u32 %v4276, 16
  %v4278 = vadd.s32 %v4277, %v4275
  %v4279 = vand.u32 %v3948, 65535
  %v4280 = vshra.s32 %v3948, 16
  %v4281 = vcvt.s32.f32 %v4279
  %v4282 = vcvt.s32.f32 %v4280
  %4283 = vmin.xlane.f32.xlu0 %v4282
  %v4284 = vpop.xlane.xlu0 %4283
  %vm4285 = vcmp.eq.f32.partialorder %v4282, %v4284
  %v4286 = vsel %vm4285, %v4281, inf
  %4287 = vmin.xlane.f32.xlu0 %v4286
  %v4288 = vpop.xlane.xlu0 %4287
  %v4289 = vcvt.f32.s32 %v4288
  %v4290 = vcvt.f32.s32 %v4284
  %v4291 = vshll.u32 %v4290, 16
  %v4292 = vadd.s32 %v4291, %v4289
  %v4293 = vand.u32 %v3949, 65535
  %v4294 = vshra.s32 %v3949, 16
  %v4295 = vcvt.s32.f32 %v4293
  %v4296 = vcvt.s32.f32 %v4294
  %4297 = vmin.xlane.f32.xlu0 %v4296
  %v4298 = vpop.xlane.xlu0 %4297
  %vm4299 = vcmp.eq.f32.partialorder %v4296, %v4298
  %v4300 = vsel %vm4299, %v4295, inf
  %4301 = vmin.xlane.f32.xlu0 %v4300
  %v4302 = vpop.xlane.xlu0 %4301
  %v4303 = vcvt.f32.s32 %v4302
  %v4304 = vcvt.f32.s32 %v4298
  %v4305 = vshll.u32 %v4304, 16
  %v4306 = vadd.s32 %v4305, %v4303
  %v4307 = vand.u32 %v3950, 65535
  %v4308 = vshra.s32 %v3950, 16
  %v4309 = vcvt.s32.f32 %v4307
  %v4310 = vcvt.s32.f32 %v4308
  %4311 = vmin.xlane.f32.xlu0 %v4310
  %v4312 = vpop.xlane.xlu0 %4311
  %vm4313 = vcmp.eq.f32.partialorder %v4310, %v4312
  %v4314 = vsel %vm4313, %v4309, inf
  %4315 = vmin.xlane.f32.xlu0 %v4314
  %v4316 = vpop.xlane.xlu0 %4315
  %v4317 = vcvt.f32.s32 %v4316
  %v4318 = vcvt.f32.s32 %v4312
  %v4319 = vshll.u32 %v4318, 16
  %v4320 = vadd.s32 %v4319, %v4317
  %v4321 = vand.u32 %v3951, 65535
  %v4322 = vshra.s32 %v3951, 16
  %v4323 = vcvt.s32.f32 %v4321
  %v4324 = vcvt.s32.f32 %v4322
  %4325 = vmin.xlane.f32.xlu0 %v4324
  %v4326 = vpop.xlane.xlu0 %4325
  %vm4327 = vcmp.eq.f32.partialorder %v4324, %v4326
  %v4328 = vsel %vm4327, %v4323, inf
  %4329 = vmin.xlane.f32.xlu0 %v4328
  %v4330 = vpop.xlane.xlu0 %4329
  %v4331 = vcvt.f32.s32 %v4330
  %v4332 = vcvt.f32.s32 %v4326
  %v4333 = vshll.u32 %v4332, 16
  %v4334 = vadd.s32 %v4333, %v4331
  %v4335 = vand.u32 %v3952, 65535
  %v4336 = vshra.s32 %v3952, 16
  %v4337 = vcvt.s32.f32 %v4335
  %v4338 = vcvt.s32.f32 %v4336
  %4339 = vmin.xlane.f32.xlu0 %v4338
  %v4340 = vpop.xlane.xlu0 %4339
  %vm4341 = vcmp.eq.f32.partialorder %v4338, %v4340
  %v4342 = vsel %vm4341, %v4337, inf
  %4343 = vmin.xlane.f32.xlu0 %v4342
  %v4344 = vpop.xlane.xlu0 %4343
  %v4345 = vcvt.f32.s32 %v4344
  %v4346 = vcvt.f32.s32 %v4340
  %v4347 = vshll.u32 %v4346, 16
  %v4348 = vadd.s32 %v4347, %v4345
  %v4349 = vand.u32 %v3953, 65535
  %v4350 = vshra.s32 %v3953, 16
  %v4351 = vcvt.s32.f32 %v4349
  %v4352 = vcvt.s32.f32 %v4350
  %4353 = vmin.xlane.f32.xlu0 %v4352
  %v4354 = vpop.xlane.xlu0 %4353
  %vm4355 = vcmp.eq.f32.partialorder %v4352, %v4354
  %v4356 = vsel %vm4355, %v4351, inf
  %4357 = vmin.xlane.f32.xlu0 %v4356
  %v4358 = vpop.xlane.xlu0 %4357
  %v4359 = vcvt.f32.s32 %v4358
  %v4360 = vcvt.f32.s32 %v4354
  %v4361 = vshll.u32 %v4360, 16
  %v4362 = vadd.s32 %v4361, %v4359
  %v4363 = vand.u32 %v3954, 65535
  %v4364 = vshra.s32 %v3954, 16
  %v4365 = vcvt.s32.f32 %v4363
  %v4366 = vcvt.s32.f32 %v4364
  %4367 = vmin.xlane.f32.xlu0 %v4366
  %v4368 = vpop.xlane.xlu0 %4367
  %vm4369 = vcmp.eq.f32.partialorder %v4366, %v4368
  %v4370 = vsel %vm4369, %v4365, inf
  %4371 = vmin.xlane.f32.xlu0 %v4370
  %v4372 = vpop.xlane.xlu0 %4371
  %v4373 = vcvt.f32.s32 %v4372
  %v4374 = vcvt.f32.s32 %v4368
  %v4375 = vshll.u32 %v4374, 16
  %v4376 = vadd.s32 %v4375, %v4373
  %v4377 = vand.u32 %v3955, 65535
  %v4378 = vshra.s32 %v3955, 16
  %v4379 = vcvt.s32.f32 %v4377
  %v4380 = vcvt.s32.f32 %v4378
  %4381 = vmin.xlane.f32.xlu0 %v4380
  %v4382 = vpop.xlane.xlu0 %4381
  %vm4383 = vcmp.eq.f32.partialorder %v4380, %v4382
  %v4384 = vsel %vm4383, %v4379, inf
  %4385 = vmin.xlane.f32.xlu0 %v4384
  %v4386 = vpop.xlane.xlu0 %4385
  %v4387 = vcvt.f32.s32 %v4386
  %v4388 = vcvt.f32.s32 %v4382
  %v4389 = vshll.u32 %v4388, 16
  %v4390 = vadd.s32 %v4389, %v4387
  %v4391 = vand.u32 %v3956, 65535
  %v4392 = vshra.s32 %v3956, 16
  %v4393 = vcvt.s32.f32 %v4391
  %v4394 = vcvt.s32.f32 %v4392
  %4395 = vmin.xlane.f32.xlu0 %v4394
  %v4396 = vpop.xlane.xlu0 %4395
  %vm4397 = vcmp.eq.f32.partialorder %v4394, %v4396
  %v4398 = vsel %vm4397, %v4393, inf
  %4399 = vmin.xlane.f32.xlu0 %v4398
  %v4400 = vpop.xlane.xlu0 %4399
  %v4401 = vcvt.f32.s32 %v4400
  %v4402 = vcvt.f32.s32 %v4396
  %v4403 = vshll.u32 %v4402, 16
  %v4404 = vadd.s32 %v4403, %v4401
  %vm4405 = vcmp.eq.s32.totalorder %v689, %v3970
  %vm4406 = vcmp.eq.s32.totalorder %v689, %v3984
  %vm4407 = vcmp.eq.s32.totalorder %v689, %v3998
  %vm4408 = vcmp.eq.s32.totalorder %v689, %v4012
  %vm4409 = vcmp.eq.s32.totalorder %v689, %v4026
  %vm4410 = vcmp.eq.s32.totalorder %v689, %v4040
  %vm4411 = vcmp.eq.s32.totalorder %v689, %v4054
  %vm4412 = vcmp.eq.s32.totalorder %v689, %v4068
  %vm4413 = vcmp.eq.s32.totalorder %v689, %v4082
  %vm4414 = vcmp.eq.s32.totalorder %v689, %v4096
  %vm4415 = vcmp.eq.s32.totalorder %v689, %v4110
  %vm4416 = vcmp.eq.s32.totalorder %v689, %v4124
  %vm4417 = vcmp.eq.s32.totalorder %v689, %v4138
  %vm4418 = vcmp.eq.s32.totalorder %v689, %v4152
  %vm4419 = vcmp.eq.s32.totalorder %v689, %v4166
  %vm4420 = vcmp.eq.s32.totalorder %v689, %v4180
  %vm4421 = vcmp.eq.s32.totalorder %v689, %v4194
  %vm4422 = vcmp.eq.s32.totalorder %v689, %v4208
  %vm4423 = vcmp.eq.s32.totalorder %v689, %v4222
  %vm4424 = vcmp.eq.s32.totalorder %v689, %v4236
  %vm4425 = vcmp.eq.s32.totalorder %v689, %v4250
  %vm4426 = vcmp.eq.s32.totalorder %v689, %v4264
  %vm4427 = vcmp.eq.s32.totalorder %v689, %v4278
  %vm4428 = vcmp.eq.s32.totalorder %v689, %v4292
  %vm4429 = vcmp.eq.s32.totalorder %v689, %v4306
  %vm4430 = vcmp.eq.s32.totalorder %v689, %v4320
  %vm4431 = vcmp.eq.s32.totalorder %v689, %v4334
  %vm4432 = vcmp.eq.s32.totalorder %v689, %v4348
  %vm4433 = vcmp.eq.s32.totalorder %v689, %v4362
  %vm4434 = vcmp.eq.s32.totalorder %v689, %v4376
  %vm4435 = vcmp.eq.s32.totalorder %v689, %v4390
  %vm4436 = vcmp.eq.s32.totalorder %v689, %v4404
  %v4437 = vsel %vm4405, 1, 0
  %v4438 = vsel %vm4406, 1, 0
  %v4439 = vsel %vm4407, 1, 0
  %v4440 = vsel %vm4408, 1, 0
  %v4441 = vsel %vm4409, 1, 0
  %v4442 = vsel %vm4410, 1, 0
  %v4443 = vsel %vm4411, 1, 0
  %v4444 = vsel %vm4412, 1, 0
  %v4445 = vsel %vm4413, 1, 0
  %v4446 = vsel %vm4414, 1, 0
  %v4447 = vsel %vm4415, 1, 0
  %v4448 = vsel %vm4416, 1, 0
  %v4449 = vsel %vm4417, 1, 0
  %v4450 = vsel %vm4418, 1, 0
  %v4451 = vsel %vm4419, 1, 0
  %v4452 = vsel %vm4420, 1, 0
  %v4453 = vsel %vm4421, 1, 0
  %v4454 = vsel %vm4422, 1, 0
  %v4455 = vsel %vm4423, 1, 0
  %v4456 = vsel %vm4424, 1, 0
  %v4457 = vsel %vm4425, 1, 0
  %v4458 = vsel %vm4426, 1, 0
  %v4459 = vsel %vm4427, 1, 0
  %v4460 = vsel %vm4428, 1, 0
  %v4461 = vsel %vm4429, 1, 0
  %v4462 = vsel %vm4430, 1, 0
  %v4463 = vsel %vm4431, 1, 0
  %v4464 = vsel %vm4432, 1, 0
  %v4465 = vsel %vm4433, 1, 0
  %v4466 = vsel %vm4434, 1, 0
  %v4467 = vsel %vm4435, 1, 0
  %v4468 = vsel %vm4436, 1, 0
  %v4469 = vcvt.s32.f32 %v4437
  %v4470 = vcvt.s32.f32 %v4438
  %v4471 = vcvt.s32.f32 %v4439
  %v4472 = vcvt.s32.f32 %v4440
  %v4473 = vcvt.s32.f32 %v4441
  %v4474 = vcvt.s32.f32 %v4442
  %v4475 = vcvt.s32.f32 %v4443
  %v4476 = vcvt.s32.f32 %v4444
  %v4477 = vcvt.s32.f32 %v4445
  %v4478 = vcvt.s32.f32 %v4446
  %v4479 = vcvt.s32.f32 %v4447
  %v4480 = vcvt.s32.f32 %v4448
  %v4481 = vcvt.s32.f32 %v4449
  %v4482 = vcvt.s32.f32 %v4450
  %v4483 = vcvt.s32.f32 %v4451
  %v4484 = vcvt.s32.f32 %v4452
  %v4485 = vcvt.s32.f32 %v4453
  %v4486 = vcvt.s32.f32 %v4454
  %v4487 = vcvt.s32.f32 %v4455
  %v4488 = vcvt.s32.f32 %v4456
  %v4489 = vcvt.s32.f32 %v4457
  %v4490 = vcvt.s32.f32 %v4458
  %v4491 = vcvt.s32.f32 %v4459
  %v4492 = vcvt.s32.f32 %v4460
  %v4493 = vcvt.s32.f32 %v4461
  %v4494 = vcvt.s32.f32 %v4462
  %v4495 = vcvt.s32.f32 %v4463
  %v4496 = vcvt.s32.f32 %v4464
  %v4497 = vcvt.s32.f32 %v4465
  %v4498 = vcvt.s32.f32 %v4466
  %v4499 = vcvt.s32.f32 %v4467
  %v4500 = vcvt.s32.f32 %v4468
  %s4501 = scalar_lea.vmem %s5, 256
  %v4502 = vld [vmem:[%s4501] sm:$0xff]
  %v4503 = vld [vmem:[%s4501 + $0x8] sm:$0xff]
  %v4504 = vld [vmem:[%s4501 + $0x10] sm:$0xff]
  %v4505 = vld [vmem:[%s4501 + $0x18] sm:$0xff]
  %v4506 = vld [vmem:[%s4501 + $0x20] sm:$0xff]
  %v4507 = vld [vmem:[%s4501 + $0x28] sm:$0xff]
  %v4508 = vld [vmem:[%s4501 + $0x30] sm:$0xff]
  %v4509 = vld [vmem:[%s4501 + $0x38] sm:$0xff]
  %v4510 = vld [vmem:[%s4501 + $0x40] sm:$0xff]
  %v4511 = vld [vmem:[%s4501 + $0x48] sm:$0xff]
  %v4512 = vld [vmem:[%s4501 + $0x50] sm:$0xff]
  %v4513 = vld [vmem:[%s4501 + $0x58] sm:$0xff]
  %v4514 = vld [vmem:[%s4501 + $0x60] sm:$0xff]
  %v4515 = vld [vmem:[%s4501 + $0x68] sm:$0xff]
  %v4516 = vld [vmem:[%s4501 + $0x70] sm:$0xff]
  %v4517 = vld [vmem:[%s4501 + $0x78] sm:$0xff]
  %4518 = vmatprep.subr.mxu0 0.0
  %4519 = vmatpush1.msra.mxu0 %v4517
  %4520 = vmatprep.subr.mxu0 0.0
  %4521 = vmatpush1.msra.mxu0 %v4516
  %4522 = vmatprep.subr.mxu0 0.0
  %4523 = vmatpush1.msra.mxu0 %v4515
  %4524 = vmatprep.subr.mxu0 0.0
  %4525 = vmatpush1.msra.mxu0 %v4514
  %4526 = vmatprep.subr.mxu0 0.0
  %4527 = vmatpush1.msra.mxu0 %v4513
  %4528 = vmatprep.subr.mxu0 0.0
  %4529 = vmatpush1.msra.mxu0 %v4512
  %4530 = vmatprep.subr.mxu0 0.0
  %4531 = vmatpush1.msra.mxu0 %v4511
  %4532 = vmatprep.subr.mxu0 0.0
  %4533 = vmatpush1.msra.mxu0 %v4510
  %4534 = vmatprep.subr.mxu0 0.0
  %4535 = vmatpush1.msra.mxu0 %v4509
  %4536 = vmatprep.subr.mxu0 0.0
  %4537 = vmatpush1.msra.mxu0 %v4508
  %4538 = vmatprep.subr.mxu0 0.0
  %4539 = vmatpush1.msra.mxu0 %v4507
  %4540 = vmatprep.subr.mxu0 0.0
  %4541 = vmatpush1.msra.mxu0 %v4506
  %4542 = vmatprep.subr.mxu0 0.0
  %4543 = vmatpush1.msra.mxu0 %v4505
  %4544 = vmatprep.subr.mxu0 0.0
  %4545 = vmatpush1.msra.mxu0 %v4504
  %4546 = vmatprep.subr.mxu0 0.0
  %4547 = vmatpush1.msra.mxu0 %v4503
  %4548 = vmatprep.subr.mxu0 0.0
  %4549 = vmatpush1.msra.mxu0 %v4502
  %4550 = vmatprep.subr.mxu0 0.0
  %4551 = vmatpush2.msra.mxu0 0.0
  %4552 = vmatprep.subr.mxu0 0.0
  %4553 = vmatpush2.msra.mxu0 0.0
  %4554 = vmatprep.subr.mxu0 0.0
  %4555 = vmatpush2.msra.mxu0 0.0
  %4556 = vmatprep.subr.mxu0 0.0
  %4557 = vmatpush2.msra.mxu0 0.0
  %4558 = vmatprep.subr.mxu0 0.0
  %4559 = vmatpush2.msra.mxu0 0.0
  %4560 = vmatprep.subr.mxu0 0.0
  %4561 = vmatpush2.msra.mxu0 0.0
  %4562 = vmatprep.subr.mxu0 0.0
  %4563 = vmatpush2.msra.mxu0 0.0
  %4564 = vmatprep.subr.mxu0 0.0
  %4565 = vmatpush2.msra.mxu0 0.0
  %4566 = vmatprep.subr.mxu0 0.0
  %4567 = vmatpush2.msra.mxu0 0.0
  %4568 = vmatprep.subr.mxu0 0.0
  %4569 = vmatpush2.msra.mxu0 0.0
  %4570 = vmatprep.subr.mxu0 0.0
  %4571 = vmatpush2.msra.mxu0 0.0
  %4572 = vmatprep.subr.mxu0 0.0
  %4573 = vmatpush2.msra.mxu0 0.0
  %4574 = vmatprep.subr.mxu0 0.0
  %4575 = vmatpush2.msra.mxu0 0.0
  %4576 = vmatprep.subr.mxu0 0.0
  %4577 = vmatpush2.msra.mxu0 0.0
  %4578 = vmatprep.subr.mxu0 0.0
  %4579 = vmatpush2.msra.mxu0 0.0
  %4580 = vmatprep.subr.mxu0 0.0
  %4581 = vmatpush2.msra.mxu0 0.0
  %4582 = vmatprep.mubr.f32.mxu0 0.0
  %4583 = vmatmul.mubr.f32.gmra.mxu0 %v4469
  %v4584 = vpop.f32.mrf.mxu0
  %v4585 = vadd.f32 0.0, %v4584
  %v4586 = vpop.f32.mrf.mxu0
  %4587 = vmatprep.mubr.f32.mxu0 0.0
  %4588 = vmatmul.mubr.f32.gmra.mxu0 %v4470
  %v4589 = vpop.f32.mrf.mxu0
  %v4590 = vadd.f32 0.0, %v4589
  %v4591 = vpop.f32.mrf.mxu0
  %4592 = vmatprep.mubr.f32.mxu0 0.0
  %4593 = vmatmul.mubr.f32.gmra.mxu0 %v4471
  %v4594 = vpop.f32.mrf.mxu0
  %v4595 = vadd.f32 0.0, %v4594
  %v4596 = vpop.f32.mrf.mxu0
  %4597 = vmatprep.mubr.f32.mxu0 0.0
  %4598 = vmatmul.mubr.f32.gmra.mxu0 %v4472
  %v4599 = vpop.f32.mrf.mxu0
  %v4600 = vadd.f32 0.0, %v4599
  %v4601 = vpop.f32.mrf.mxu0
  %4602 = vmatprep.mubr.f32.mxu0 0.0
  %4603 = vmatmul.mubr.f32.gmra.mxu0 %v4473
  %v4604 = vpop.f32.mrf.mxu0
  %v4605 = vadd.f32 0.0, %v4604
  %v4606 = vpop.f32.mrf.mxu0
  %4607 = vmatprep.mubr.f32.mxu0 0.0
  %4608 = vmatmul.mubr.f32.gmra.mxu0 %v4474
  %v4609 = vpop.f32.mrf.mxu0
  %v4610 = vadd.f32 0.0, %v4609
  %v4611 = vpop.f32.mrf.mxu0
  %4612 = vmatprep.mubr.f32.mxu0 0.0
  %4613 = vmatmul.mubr.f32.gmra.mxu0 %v4475
  %v4614 = vpop.f32.mrf.mxu0
  %v4615 = vadd.f32 0.0, %v4614
  %v4616 = vpop.f32.mrf.mxu0
  %4617 = vmatprep.mubr.f32.mxu0 0.0
  %4618 = vmatmul.mubr.f32.gmra.mxu0 %v4476
  %v4619 = vpop.f32.mrf.mxu0
  %v4620 = vadd.f32 0.0, %v4619
  %v4621 = vpop.f32.mrf.mxu0
  %4622 = vmatprep.mubr.f32.mxu0 0.0
  %4623 = vmatmul.mubr.f32.gmra.mxu0 %v4477
  %v4624 = vpop.f32.mrf.mxu0
  %v4625 = vadd.f32 0.0, %v4624
  %v4626 = vpop.f32.mrf.mxu0
  %4627 = vmatprep.mubr.f32.mxu0 0.0
  %4628 = vmatmul.mubr.f32.gmra.mxu0 %v4478
  %v4629 = vpop.f32.mrf.mxu0
  %v4630 = vadd.f32 0.0, %v4629
  %v4631 = vpop.f32.mrf.mxu0
  %4632 = vmatprep.mubr.f32.mxu0 0.0
  %4633 = vmatmul.mubr.f32.gmra.mxu0 %v4479
  %v4634 = vpop.f32.mrf.mxu0
  %v4635 = vadd.f32 0.0, %v4634
  %v4636 = vpop.f32.mrf.mxu0
  %4637 = vmatprep.mubr.f32.mxu0 0.0
  %4638 = vmatmul.mubr.f32.gmra.mxu0 %v4480
  %v4639 = vpop.f32.mrf.mxu0
  %v4640 = vadd.f32 0.0, %v4639
  %v4641 = vpop.f32.mrf.mxu0
  %4642 = vmatprep.mubr.f32.mxu0 0.0
  %4643 = vmatmul.mubr.f32.gmra.mxu0 %v4481
  %v4644 = vpop.f32.mrf.mxu0
  %v4645 = vadd.f32 0.0, %v4644
  %v4646 = vpop.f32.mrf.mxu0
  %4647 = vmatprep.mubr.f32.mxu0 0.0
  %4648 = vmatmul.mubr.f32.gmra.mxu0 %v4482
  %v4649 = vpop.f32.mrf.mxu0
  %v4650 = vadd.f32 0.0, %v4649
  %v4651 = vpop.f32.mrf.mxu0
  %4652 = vmatprep.mubr.f32.mxu0 0.0
  %4653 = vmatmul.mubr.f32.gmra.mxu0 %v4483
  %v4654 = vpop.f32.mrf.mxu0
  %v4655 = vadd.f32 0.0, %v4654
  %v4656 = vpop.f32.mrf.mxu0
  %4657 = vmatprep.mubr.f32.mxu0 0.0
  %4658 = vmatmul.mubr.f32.gmra.mxu0 %v4484
  %v4659 = vpop.f32.mrf.mxu0
  %v4660 = vadd.f32 0.0, %v4659
  %v4661 = vpop.f32.mrf.mxu0
  %4662 = vmatprep.mubr.f32.mxu0 0.0
  %4663 = vmatmul.mubr.f32.gmra.mxu0 %v4485
  %v4664 = vpop.f32.mrf.mxu0
  %v4665 = vadd.f32 0.0, %v4664
  %v4666 = vpop.f32.mrf.mxu0
  %4667 = vmatprep.mubr.f32.mxu0 0.0
  %4668 = vmatmul.mubr.f32.gmra.mxu0 %v4486
  %v4669 = vpop.f32.mrf.mxu0
  %v4670 = vadd.f32 0.0, %v4669
  %v4671 = vpop.f32.mrf.mxu0
  %4672 = vmatprep.mubr.f32.mxu0 0.0
  %4673 = vmatmul.mubr.f32.gmra.mxu0 %v4487
  %v4674 = vpop.f32.mrf.mxu0
  %v4675 = vadd.f32 0.0, %v4674
  %v4676 = vpop.f32.mrf.mxu0
  %4677 = vmatprep.mubr.f32.mxu0 0.0
  %4678 = vmatmul.mubr.f32.gmra.mxu0 %v4488
  %v4679 = vpop.f32.mrf.mxu0
  %v4680 = vadd.f32 0.0, %v4679
  %v4681 = vpop.f32.mrf.mxu0
  %4682 = vmatprep.mubr.f32.mxu0 0.0
  %4683 = vmatmul.mubr.f32.gmra.mxu0 %v4489
  %v4684 = vpop.f32.mrf.mxu0
  %v4685 = vadd.f32 0.0, %v4684
  %v4686 = vpop.f32.mrf.mxu0
  %4687 = vmatprep.mubr.f32.mxu0 0.0
  %4688 = vmatmul.mubr.f32.gmra.mxu0 %v4490
  %v4689 = vpop.f32.mrf.mxu0
  %v4690 = vadd.f32 0.0, %v4689
  %v4691 = vpop.f32.mrf.mxu0
  %4692 = vmatprep.mubr.f32.mxu0 0.0
  %4693 = vmatmul.mubr.f32.gmra.mxu0 %v4491
  %v4694 = vpop.f32.mrf.mxu0
  %v4695 = vadd.f32 0.0, %v4694
  %v4696 = vpop.f32.mrf.mxu0
  %4697 = vmatprep.mubr.f32.mxu0 0.0
  %4698 = vmatmul.mubr.f32.gmra.mxu0 %v4492
  %v4699 = vpop.f32.mrf.mxu0
  %v4700 = vadd.f32 0.0, %v4699
  %v4701 = vpop.f32.mrf.mxu0
  %4702 = vmatprep.mubr.f32.mxu0 0.0
  %4703 = vmatmul.mubr.f32.gmra.mxu0 %v4493
  %v4704 = vpop.f32.mrf.mxu0
  %v4705 = vadd.f32 0.0, %v4704
  %v4706 = vpop.f32.mrf.mxu0
  %4707 = vmatprep.mubr.f32.mxu0 0.0
  %4708 = vmatmul.mubr.f32.gmra.mxu0 %v4494
  %v4709 = vpop.f32.mrf.mxu0
  %v4710 = vadd.f32 0.0, %v4709
  %v4711 = vpop.f32.mrf.mxu0
  %4712 = vmatprep.mubr.f32.mxu0 0.0
  %4713 = vmatmul.mubr.f32.gmra.mxu0 %v4495
  %v4714 = vpop.f32.mrf.mxu0
  %v4715 = vadd.f32 0.0, %v4714
  %v4716 = vpop.f32.mrf.mxu0
  %4717 = vmatprep.mubr.f32.mxu0 0.0
  %4718 = vmatmul.mubr.f32.gmra.mxu0 %v4496
  %v4719 = vpop.f32.mrf.mxu0
  %v4720 = vadd.f32 0.0, %v4719
  %v4721 = vpop.f32.mrf.mxu0
  %4722 = vmatprep.mubr.f32.mxu0 0.0
  %4723 = vmatmul.mubr.f32.gmra.mxu0 %v4497
  %v4724 = vpop.f32.mrf.mxu0
  %v4725 = vadd.f32 0.0, %v4724
  %v4726 = vpop.f32.mrf.mxu0
  %4727 = vmatprep.mubr.f32.mxu0 0.0
  %4728 = vmatmul.mubr.f32.gmra.mxu0 %v4498
  %v4729 = vpop.f32.mrf.mxu0
  %v4730 = vadd.f32 0.0, %v4729
  %v4731 = vpop.f32.mrf.mxu0
  %4732 = vmatprep.mubr.f32.mxu0 0.0
  %4733 = vmatmul.mubr.f32.gmra.mxu0 %v4499
  %v4734 = vpop.f32.mrf.mxu0
  %v4735 = vadd.f32 0.0, %v4734
  %v4736 = vpop.f32.mrf.mxu0
  %4737 = vmatprep.mubr.f32.mxu0 0.0
  %4738 = vmatmul.mubr.f32.gmra.mxu0 %v4500
  %v4739 = vpop.f32.mrf.mxu0
  %v4740 = vadd.f32 0.0, %v4739
  %v4741 = vpop.f32.mrf.mxu0
  %4742 = vdwg.mxu0
  %v4743 = vsub.f32 %v3370, %v4585
  %v4744 = vsub.f32 %v3371, %v4590
  %v4745 = vsub.f32 %v3372, %v4595
  %v4746 = vsub.f32 %v3373, %v4600
  %v4747 = vsub.f32 %v3374, %v4605
  %v4748 = vsub.f32 %v3375, %v4610
  %v4749 = vsub.f32 %v3376, %v4615
  %v4750 = vsub.f32 %v3377, %v4620
  %v4751 = vsub.f32 %v3378, %v4625
  %v4752 = vsub.f32 %v3379, %v4630
  %v4753 = vsub.f32 %v3380, %v4635
  %v4754 = vsub.f32 %v3381, %v4640
  %v4755 = vsub.f32 %v3382, %v4645
  %v4756 = vsub.f32 %v3383, %v4650
  %v4757 = vsub.f32 %v3384, %v4655
  %v4758 = vsub.f32 %v3385, %v4660
  %v4759 = vsub.f32 %v3386, %v4665
  %v4760 = vsub.f32 %v3387, %v4670
  %v4761 = vsub.f32 %v3388, %v4675
  %v4762 = vsub.f32 %v3389, %v4680
  %v4763 = vsub.f32 %v3390, %v4685
  %v4764 = vsub.f32 %v3391, %v4690
  %v4765 = vsub.f32 %v3392, %v4695
  %v4766 = vsub.f32 %v3393, %v4700
  %v4767 = vsub.f32 %v3394, %v4705
  %v4768 = vsub.f32 %v3395, %v4710
  %v4769 = vsub.f32 %v3396, %v4715
  %v4770 = vsub.f32 %v3397, %v4720
  %v4771 = vsub.f32 %v3398, %v4725
  %v4772 = vsub.f32 %v3399, %v4730
  %v4773 = vsub.f32 %v3400, %v4735
  %v4774 = vsub.f32 %v3401, %v4740
  %vm4775 = vcmp.eq.s32.totalorder %v689, 2
  %v4776 = vsel %vm4775, %v3970, %v3403
  %v4777 = vsel %vm4775, %v3984, %v3404
  %v4778 = vsel %vm4775, %v3998, %v3405
  %v4779 = vsel %vm4775, %v4012, %v3406
  %v4780 = vsel %vm4775, %v4026, %v3407
  %v4781 = vsel %vm4775, %v4040, %v3408
  %v4782 = vsel %vm4775, %v4054, %v3409
  %v4783 = vsel %vm4775, %v4068, %v3410
  %v4784 = vsel %vm4775, %v4082, %v3411
  %v4785 = vsel %vm4775, %v4096, %v3412
  %v4786 = vsel %vm4775, %v4110, %v3413
  %v4787 = vsel %vm4775, %v4124, %v3414
  %v4788 = vsel %vm4775, %v4138, %v3415
  %v4789 = vsel %vm4775, %v4152, %v3416
  %v4790 = vsel %vm4775, %v4166, %v3417
  %v4791 = vsel %vm4775, %v4180, %v3418
  %v4792 = vsel %vm4775, %v4194, %v3419
  %v4793 = vsel %vm4775, %v4208, %v3420
  %v4794 = vsel %vm4775, %v4222, %v3421
  %v4795 = vsel %vm4775, %v4236, %v3422
  %v4796 = vsel %vm4775, %v4250, %v3423
  %v4797 = vsel %vm4775, %v4264, %v3424
  %v4798 = vsel %vm4775, %v4278, %v3425
  %v4799 = vsel %vm4775, %v4292, %v3426
  %v4800 = vsel %vm4775, %v4306, %v3427
  %v4801 = vsel %vm4775, %v4320, %v3428
  %v4802 = vsel %vm4775, %v4334, %v3429
  %v4803 = vsel %vm4775, %v4348, %v3430
  %v4804 = vsel %vm4775, %v4362, %v3431
  %v4805 = vsel %vm4775, %v4376, %v3432
  %v4806 = vsel %vm4775, %v4390, %v3433
  %v4807 = vsel %vm4775, %v4404, %v3434
  %s4808 = scalar_lea.vmem %s6, 96
  %v4809 = vld [vmem:[%s4808] sm:$0xff]
  %v4810 = vld [vmem:[%s4808 + $0x8] sm:$0xff]
  %v4811 = vld [vmem:[%s4808 + $0x10] sm:$0xff]
  %v4812 = vld [vmem:[%s4808 + $0x18] sm:$0xff]
  %v4814 = vsel %vm694, %v4743, 0
  %v4817 = vsel %vm694, %v4744, 0
  %v4820 = vsel %vm694, %v4745, 0
  %v4823 = vsel %vm694, %v4746, 0
  %v4826 = vsel %vm694, %v4747, 0
  %v4829 = vsel %vm694, %v4748, 0
  %v4832 = vsel %vm694, %v4749, 0
  %v4835 = vsel %vm694, %v4750, 0
  %v4838 = vsel %vm694, %v4751, 0
  %v4841 = vsel %vm694, %v4752, 0
  %v4844 = vsel %vm694, %v4753, 0
  %v4847 = vsel %vm694, %v4754, 0
  %v4850 = vsel %vm694, %v4755, 0
  %v4853 = vsel %vm694, %v4756, 0
  %v4856 = vsel %vm694, %v4757, 0
  %v4859 = vsel %vm694, %v4758, 0
  %v4862 = vsel %vm694, %v4759, 0
  %v4865 = vsel %vm694, %v4760, 0
  %v4868 = vsel %vm694, %v4761, 0
  %v4871 = vsel %vm694, %v4762, 0
  %v4874 = vsel %vm694, %v4763, 0
  %v4877 = vsel %vm694, %v4764, 0
  %v4880 = vsel %vm694, %v4765, 0
  %v4883 = vsel %vm694, %v4766, 0
  %v4886 = vsel %vm694, %v4767, 0
  %v4889 = vsel %vm694, %v4768, 0
  %v4892 = vsel %vm694, %v4769, 0
  %v4895 = vsel %vm694, %v4770, 0
  %v4898 = vsel %vm694, %v4771, 0
  %v4901 = vsel %vm694, %v4772, 0
  %v4904 = vsel %vm694, %v4773, 0
  %v4907 = vsel %vm694, %v4774, 0
  %4909 = vmatprep.subr.mxu0 0.0
  %4910 = vmatpush1.msra.mxu0 0.0
  %4911 = vmatprep.subr.mxu0 0.0
  %4912 = vmatpush1.msra.mxu0 0.0
  %4913 = vmatprep.subr.mxu0 0.0
  %4914 = vmatpush1.msra.mxu0 0.0
  %4915 = vmatprep.subr.mxu0 0.0
  %4916 = vmatpush1.msra.mxu0 0.0
  %4917 = vmatprep.subr.mxu0 0.0
  %4918 = vmatpush1.msra.mxu0 0.0
  %4919 = vmatprep.subr.mxu0 0.0
  %4920 = vmatpush1.msra.mxu0 0.0
  %4921 = vmatprep.subr.mxu0 0.0
  %4922 = vmatpush1.msra.mxu0 0.0
  %4923 = vmatprep.subr.mxu0 0.0
  %4924 = vmatpush1.msra.mxu0 0.0
  %4925 = vmatprep.subr.mxu0 0.0
  %4926 = vmatpush1.msra.mxu0 0.0
  %4927 = vmatprep.subr.mxu0 0.0
  %4928 = vmatpush1.msra.mxu0 0.0
  %4929 = vmatprep.subr.mxu0 0.0
  %4930 = vmatpush1.msra.mxu0 0.0
  %4931 = vmatprep.subr.mxu0 0.0
  %4932 = vmatpush1.msra.mxu0 0.0
  %4933 = vmatprep.subr.mxu0 0.0
  %4934 = vmatpush1.msra.mxu0 %v4812
  %4935 = vmatprep.subr.mxu0 0.0
  %4936 = vmatpush1.msra.mxu0 %v4811
  %4937 = vmatprep.subr.mxu0 0.0
  %4938 = vmatpush1.msra.mxu0 %v4810
  %4939 = vmatprep.subr.mxu0 0.0
  %4940 = vmatpush1.msra.mxu0 %v4809
  %4941 = vmatprep.subr.mxu0 0.0
  %4942 = vmatpush2.msra.mxu0 0.0
  %4943 = vmatprep.subr.mxu0 0.0
  %4944 = vmatpush2.msra.mxu0 0.0
  %4945 = vmatprep.subr.mxu0 0.0
  %4946 = vmatpush2.msra.mxu0 0.0
  %4947 = vmatprep.subr.mxu0 0.0
  %4948 = vmatpush2.msra.mxu0 0.0
  %4949 = vmatprep.subr.mxu0 0.0
  %4950 = vmatpush2.msra.mxu0 0.0
  %4951 = vmatprep.subr.mxu0 0.0
  %4952 = vmatpush2.msra.mxu0 0.0
  %4953 = vmatprep.subr.mxu0 0.0
  %4954 = vmatpush2.msra.mxu0 0.0
  %4955 = vmatprep.subr.mxu0 0.0
  %4956 = vmatpush2.msra.mxu0 0.0
  %4957 = vmatprep.subr.mxu0 0.0
  %4958 = vmatpush2.msra.mxu0 0.0
  %4959 = vmatprep.subr.mxu0 0.0
  %4960 = vmatpush2.msra.mxu0 0.0
  %4961 = vmatprep.subr.mxu0 0.0
  %4962 = vmatpush2.msra.mxu0 0.0
  %4963 = vmatprep.subr.mxu0 0.0
  %4964 = vmatpush2.msra.mxu0 0.0
  %4965 = vmatprep.subr.mxu0 0.0
  %4966 = vmatpush2.msra.mxu0 0.0
  %4967 = vmatprep.subr.mxu0 0.0
  %4968 = vmatpush2.msra.mxu0 0.0
  %4969 = vmatprep.subr.mxu0 0.0
  %4970 = vmatpush2.msra.mxu0 0.0
  %4971 = vmatprep.subr.mxu0 0.0
  %4972 = vmatpush2.msra.mxu0 0.0
  %4973 = vmatprep.mubr.f32.mxu0 0.0
  %4974 = vmatmul.mubr.f32.gmra.mxu0 %v4814
  %v4975 = vpop.f32.mrf.mxu0
  %v4976 = vadd.f32 0.0, %v4975
  %v4977 = vpop.f32.mrf.mxu0
  %4978 = vmatprep.mubr.f32.mxu0 0.0
  %4979 = vmatmul.mubr.f32.gmra.mxu0 %v4817
  %v4980 = vpop.f32.mrf.mxu0
  %v4981 = vadd.f32 0.0, %v4980
  %v4982 = vpop.f32.mrf.mxu0
  %4983 = vmatprep.mubr.f32.mxu0 0.0
  %4984 = vmatmul.mubr.f32.gmra.mxu0 %v4820
  %v4985 = vpop.f32.mrf.mxu0
  %v4986 = vadd.f32 0.0, %v4985
  %v4987 = vpop.f32.mrf.mxu0
  %4988 = vmatprep.mubr.f32.mxu0 0.0
  %4989 = vmatmul.mubr.f32.gmra.mxu0 %v4823
  %v4990 = vpop.f32.mrf.mxu0
  %v4991 = vadd.f32 0.0, %v4990
  %v4992 = vpop.f32.mrf.mxu0
  %4993 = vmatprep.mubr.f32.mxu0 0.0
  %4994 = vmatmul.mubr.f32.gmra.mxu0 %v4826
  %v4995 = vpop.f32.mrf.mxu0
  %v4996 = vadd.f32 0.0, %v4995
  %v4997 = vpop.f32.mrf.mxu0
  %4998 = vmatprep.mubr.f32.mxu0 0.0
  %4999 = vmatmul.mubr.f32.gmra.mxu0 %v4829
  %v5000 = vpop.f32.mrf.mxu0
  %v5001 = vadd.f32 0.0, %v5000
  %v5002 = vpop.f32.mrf.mxu0
  %5003 = vmatprep.mubr.f32.mxu0 0.0
  %5004 = vmatmul.mubr.f32.gmra.mxu0 %v4832
  %v5005 = vpop.f32.mrf.mxu0
  %v5006 = vadd.f32 0.0, %v5005
  %v5007 = vpop.f32.mrf.mxu0
  %5008 = vmatprep.mubr.f32.mxu0 0.0
  %5009 = vmatmul.mubr.f32.gmra.mxu0 %v4835
  %v5010 = vpop.f32.mrf.mxu0
  %v5011 = vadd.f32 0.0, %v5010
  %v5012 = vpop.f32.mrf.mxu0
  %5013 = vmatprep.mubr.f32.mxu0 0.0
  %5014 = vmatmul.mubr.f32.gmra.mxu0 %v4838
  %v5015 = vpop.f32.mrf.mxu0
  %v5016 = vadd.f32 0.0, %v5015
  %v5017 = vpop.f32.mrf.mxu0
  %5018 = vmatprep.mubr.f32.mxu0 0.0
  %5019 = vmatmul.mubr.f32.gmra.mxu0 %v4841
  %v5020 = vpop.f32.mrf.mxu0
  %v5021 = vadd.f32 0.0, %v5020
  %v5022 = vpop.f32.mrf.mxu0
  %5023 = vmatprep.mubr.f32.mxu0 0.0
  %5024 = vmatmul.mubr.f32.gmra.mxu0 %v4844
  %v5025 = vpop.f32.mrf.mxu0
  %v5026 = vadd.f32 0.0, %v5025
  %v5027 = vpop.f32.mrf.mxu0
  %5028 = vmatprep.mubr.f32.mxu0 0.0
  %5029 = vmatmul.mubr.f32.gmra.mxu0 %v4847
  %v5030 = vpop.f32.mrf.mxu0
  %v5031 = vadd.f32 0.0, %v5030
  %v5032 = vpop.f32.mrf.mxu0
  %5033 = vmatprep.mubr.f32.mxu0 0.0
  %5034 = vmatmul.mubr.f32.gmra.mxu0 %v4850
  %v5035 = vpop.f32.mrf.mxu0
  %v5036 = vadd.f32 0.0, %v5035
  %v5037 = vpop.f32.mrf.mxu0
  %5038 = vmatprep.mubr.f32.mxu0 0.0
  %5039 = vmatmul.mubr.f32.gmra.mxu0 %v4853
  %v5040 = vpop.f32.mrf.mxu0
  %v5041 = vadd.f32 0.0, %v5040
  %v5042 = vpop.f32.mrf.mxu0
  %5043 = vmatprep.mubr.f32.mxu0 0.0
  %5044 = vmatmul.mubr.f32.gmra.mxu0 %v4856
  %v5045 = vpop.f32.mrf.mxu0
  %v5046 = vadd.f32 0.0, %v5045
  %v5047 = vpop.f32.mrf.mxu0
  %5048 = vmatprep.mubr.f32.mxu0 0.0
  %5049 = vmatmul.mubr.f32.gmra.mxu0 %v4859
  %v5050 = vpop.f32.mrf.mxu0
  %v5051 = vadd.f32 0.0, %v5050
  %v5052 = vpop.f32.mrf.mxu0
  %5053 = vmatprep.mubr.f32.mxu0 0.0
  %5054 = vmatmul.mubr.f32.gmra.mxu0 %v4862
  %v5055 = vpop.f32.mrf.mxu0
  %v5056 = vadd.f32 0.0, %v5055
  %v5057 = vpop.f32.mrf.mxu0
  %5058 = vmatprep.mubr.f32.mxu0 0.0
  %5059 = vmatmul.mubr.f32.gmra.mxu0 %v4865
  %v5060 = vpop.f32.mrf.mxu0
  %v5061 = vadd.f32 0.0, %v5060
  %v5062 = vpop.f32.mrf.mxu0
  %5063 = vmatprep.mubr.f32.mxu0 0.0
  %5064 = vmatmul.mubr.f32.gmra.mxu0 %v4868
  %v5065 = vpop.f32.mrf.mxu0
  %v5066 = vadd.f32 0.0, %v5065
  %v5067 = vpop.f32.mrf.mxu0
  %5068 = vmatprep.mubr.f32.mxu0 0.0
  %5069 = vmatmul.mubr.f32.gmra.mxu0 %v4871
  %v5070 = vpop.f32.mrf.mxu0
  %v5071 = vadd.f32 0.0, %v5070
  %v5072 = vpop.f32.mrf.mxu0
  %5073 = vmatprep.mubr.f32.mxu0 0.0
  %5074 = vmatmul.mubr.f32.gmra.mxu0 %v4874
  %v5075 = vpop.f32.mrf.mxu0
  %v5076 = vadd.f32 0.0, %v5075
  %v5077 = vpop.f32.mrf.mxu0
  %5078 = vmatprep.mubr.f32.mxu0 0.0
  %5079 = vmatmul.mubr.f32.gmra.mxu0 %v4877
  %v5080 = vpop.f32.mrf.mxu0
  %v5081 = vadd.f32 0.0, %v5080
  %v5082 = vpop.f32.mrf.mxu0
  %5083 = vmatprep.mubr.f32.mxu0 0.0
  %5084 = vmatmul.mubr.f32.gmra.mxu0 %v4880
  %v5085 = vpop.f32.mrf.mxu0
  %v5086 = vadd.f32 0.0, %v5085
  %v5087 = vpop.f32.mrf.mxu0
  %5088 = vmatprep.mubr.f32.mxu0 0.0
  %5089 = vmatmul.mubr.f32.gmra.mxu0 %v4883
  %v5090 = vpop.f32.mrf.mxu0
  %v5091 = vadd.f32 0.0, %v5090
  %v5092 = vpop.f32.mrf.mxu0
  %5093 = vmatprep.mubr.f32.mxu0 0.0
  %5094 = vmatmul.mubr.f32.gmra.mxu0 %v4886
  %v5095 = vpop.f32.mrf.mxu0
  %v5096 = vadd.f32 0.0, %v5095
  %v5097 = vpop.f32.mrf.mxu0
  %5098 = vmatprep.mubr.f32.mxu0 0.0
  %5099 = vmatmul.mubr.f32.gmra.mxu0 %v4889
  %v5100 = vpop.f32.mrf.mxu0
  %v5101 = vadd.f32 0.0, %v5100
  %v5102 = vpop.f32.mrf.mxu0
  %5103 = vmatprep.mubr.f32.mxu0 0.0
  %5104 = vmatmul.mubr.f32.gmra.mxu0 %v4892
  %v5105 = vpop.f32.mrf.mxu0
  %v5106 = vadd.f32 0.0, %v5105
  %v5107 = vpop.f32.mrf.mxu0
  %5108 = vmatprep.mubr.f32.mxu0 0.0
  %5109 = vmatmul.mubr.f32.gmra.mxu0 %v4895
  %v5110 = vpop.f32.mrf.mxu0
  %v5111 = vadd.f32 0.0, %v5110
  %v5112 = vpop.f32.mrf.mxu0
  %5113 = vmatprep.mubr.f32.mxu0 0.0
  %5114 = vmatmul.mubr.f32.gmra.mxu0 %v4898
  %v5115 = vpop.f32.mrf.mxu0
  %v5116 = vadd.f32 0.0, %v5115
  %v5117 = vpop.f32.mrf.mxu0
  %5118 = vmatprep.mubr.f32.mxu0 0.0
  %5119 = vmatmul.mubr.f32.gmra.mxu0 %v4901
  %v5120 = vpop.f32.mrf.mxu0
  %v5121 = vadd.f32 0.0, %v5120
  %v5122 = vpop.f32.mrf.mxu0
  %5123 = vmatprep.mubr.f32.mxu0 0.0
  %5124 = vmatmul.mubr.f32.gmra.mxu0 %v4904
  %v5125 = vpop.f32.mrf.mxu0
  %v5126 = vadd.f32 0.0, %v5125
  %v5127 = vpop.f32.mrf.mxu0
  %5128 = vmatprep.mubr.f32.mxu0 0.0
  %5129 = vmatmul.mubr.f32.gmra.mxu0 %v4907
  %v5130 = vpop.f32.mrf.mxu0
  %v5131 = vadd.f32 0.0, %v5130
  %v5132 = vpop.f32.mrf.mxu0
  %5133 = vdwg.mxu0
  %v5134 = vmul.f32 %v4976, 2.0
  %v5135 = vmul.f32 %v4981, 2.0
  %v5136 = vmul.f32 %v4986, 2.0
  %v5137 = vmul.f32 %v4991, 2.0
  %v5138 = vmul.f32 %v4996, 2.0
  %v5139 = vmul.f32 %v5001, 2.0
  %v5140 = vmul.f32 %v5006, 2.0
  %v5141 = vmul.f32 %v5011, 2.0
  %v5142 = vmul.f32 %v5016, 2.0
  %v5143 = vmul.f32 %v5021, 2.0
  %v5144 = vmul.f32 %v5026, 2.0
  %v5145 = vmul.f32 %v5031, 2.0
  %v5146 = vmul.f32 %v5036, 2.0
  %v5147 = vmul.f32 %v5041, 2.0
  %v5148 = vmul.f32 %v5046, 2.0
  %v5149 = vmul.f32 %v5051, 2.0
  %v5150 = vmul.f32 %v5056, 2.0
  %v5151 = vmul.f32 %v5061, 2.0
  %v5152 = vmul.f32 %v5066, 2.0
  %v5153 = vmul.f32 %v5071, 2.0
  %v5154 = vmul.f32 %v5076, 2.0
  %v5155 = vmul.f32 %v5081, 2.0
  %v5156 = vmul.f32 %v5086, 2.0
  %v5157 = vmul.f32 %v5091, 2.0
  %v5158 = vmul.f32 %v5096, 2.0
  %v5159 = vmul.f32 %v5101, 2.0
  %v5160 = vmul.f32 %v5106, 2.0
  %v5161 = vmul.f32 %v5111, 2.0
  %v5162 = vmul.f32 %v5116, 2.0
  %v5163 = vmul.f32 %v5121, 2.0
  %v5164 = vmul.f32 %v5126, 2.0
  %v5165 = vmul.f32 %v5131, 2.0
  %v5166 = vlaneseq
  %v5167 = vshrl.u32 %v5166, 7
  %v5168 = vsub.s32 3, %v5167
  %v5169 = vrot.slane %v687, %v5168
  %v5170 = vsub.f32 %v5169, %v5134
  %v5171 = vsub.f32 %v5169, %v5135
  %v5172 = vsub.f32 %v5169, %v5136
  %v5173 = vsub.f32 %v5169, %v5137
  %v5174 = vsub.f32 %v5169, %v5138
  %v5175 = vsub.f32 %v5169, %v5139
  %v5176 = vsub.f32 %v5169, %v5140
  %v5177 = vsub.f32 %v5169, %v5141
  %v5178 = vsub.f32 %v5169, %v5142
  %v5179 = vsub.f32 %v5169, %v5143
  %v5180 = vsub.f32 %v5169, %v5144
  %v5181 = vsub.f32 %v5169, %v5145
  %v5182 = vsub.f32 %v5169, %v5146
  %v5183 = vsub.f32 %v5169, %v5147
  %v5184 = vsub.f32 %v5169, %v5148
  %v5185 = vsub.f32 %v5169, %v5149
  %v5186 = vsub.f32 %v5169, %v5150
  %v5187 = vsub.f32 %v5169, %v5151
  %v5188 = vsub.f32 %v5169, %v5152
  %v5189 = vsub.f32 %v5169, %v5153
  %v5190 = vsub.f32 %v5169, %v5154
  %v5191 = vsub.f32 %v5169, %v5155
  %v5192 = vsub.f32 %v5169, %v5156
  %v5193 = vsub.f32 %v5169, %v5157
  %v5194 = vsub.f32 %v5169, %v5158
  %v5195 = vsub.f32 %v5169, %v5159
  %v5196 = vsub.f32 %v5169, %v5160
  %v5197 = vsub.f32 %v5169, %v5161
  %v5198 = vsub.f32 %v5169, %v5162
  %v5199 = vsub.f32 %v5169, %v5163
  %v5200 = vsub.f32 %v5169, %v5164
  %v5201 = vsub.f32 %v5169, %v5165
  %5202 = vmin.xlane.f32.xlu0 %v5170
  %v5203 = vpop.xlane.xlu0 %5202
  %5204 = vmin.xlane.f32.xlu0 %v5171
  %v5205 = vpop.xlane.xlu0 %5204
  %5206 = vmin.xlane.f32.xlu0 %v5172
  %v5207 = vpop.xlane.xlu0 %5206
  %5208 = vmin.xlane.f32.xlu0 %v5173
  %v5209 = vpop.xlane.xlu0 %5208
  %5210 = vmin.xlane.f32.xlu0 %v5174
  %v5211 = vpop.xlane.xlu0 %5210
  %5212 = vmin.xlane.f32.xlu0 %v5175
  %v5213 = vpop.xlane.xlu0 %5212
  %5214 = vmin.xlane.f32.xlu0 %v5176
  %v5215 = vpop.xlane.xlu0 %5214
  %5216 = vmin.xlane.f32.xlu0 %v5177
  %v5217 = vpop.xlane.xlu0 %5216
  %5218 = vmin.xlane.f32.xlu0 %v5178
  %v5219 = vpop.xlane.xlu0 %5218
  %5220 = vmin.xlane.f32.xlu0 %v5179
  %v5221 = vpop.xlane.xlu0 %5220
  %5222 = vmin.xlane.f32.xlu0 %v5180
  %v5223 = vpop.xlane.xlu0 %5222
  %5224 = vmin.xlane.f32.xlu0 %v5181
  %v5225 = vpop.xlane.xlu0 %5224
  %5226 = vmin.xlane.f32.xlu0 %v5182
  %v5227 = vpop.xlane.xlu0 %5226
  %5228 = vmin.xlane.f32.xlu0 %v5183
  %v5229 = vpop.xlane.xlu0 %5228
  %5230 = vmin.xlane.f32.xlu0 %v5184
  %v5231 = vpop.xlane.xlu0 %5230
  %5232 = vmin.xlane.f32.xlu0 %v5185
  %v5233 = vpop.xlane.xlu0 %5232
  %5234 = vmin.xlane.f32.xlu0 %v5186
  %v5235 = vpop.xlane.xlu0 %5234
  %5236 = vmin.xlane.f32.xlu0 %v5187
  %v5237 = vpop.xlane.xlu0 %5236
  %5238 = vmin.xlane.f32.xlu0 %v5188
  %v5239 = vpop.xlane.xlu0 %5238
  %5240 = vmin.xlane.f32.xlu0 %v5189
  %v5241 = vpop.xlane.xlu0 %5240
  %5242 = vmin.xlane.f32.xlu0 %v5190
  %v5243 = vpop.xlane.xlu0 %5242
  %5244 = vmin.xlane.f32.xlu0 %v5191
  %v5245 = vpop.xlane.xlu0 %5244
  %5246 = vmin.xlane.f32.xlu0 %v5192
  %v5247 = vpop.xlane.xlu0 %5246
  %5248 = vmin.xlane.f32.xlu0 %v5193
  %v5249 = vpop.xlane.xlu0 %5248
  %5250 = vmin.xlane.f32.xlu0 %v5194
  %v5251 = vpop.xlane.xlu0 %5250
  %5252 = vmin.xlane.f32.xlu0 %v5195
  %v5253 = vpop.xlane.xlu0 %5252
  %5254 = vmin.xlane.f32.xlu0 %v5196
  %v5255 = vpop.xlane.xlu0 %5254
  %5256 = vmin.xlane.f32.xlu0 %v5197
  %v5257 = vpop.xlane.xlu0 %5256
  %5258 = vmin.xlane.f32.xlu0 %v5198
  %v5259 = vpop.xlane.xlu0 %5258
  %5260 = vmin.xlane.f32.xlu0 %v5199
  %v5261 = vpop.xlane.xlu0 %5260
  %5262 = vmin.xlane.f32.xlu0 %v5200
  %v5263 = vpop.xlane.xlu0 %5262
  %5264 = vmin.xlane.f32.xlu0 %v5201
  %v5265 = vpop.xlane.xlu0 %5264
  %vm5266 = vcmp.le.f32.partialorder %v5170, %v5203
  %vm5267 = vcmp.le.f32.partialorder %v5171, %v5205
  %vm5268 = vcmp.le.f32.partialorder %v5172, %v5207
  %vm5269 = vcmp.le.f32.partialorder %v5173, %v5209
  %vm5270 = vcmp.le.f32.partialorder %v5174, %v5211
  %vm5271 = vcmp.le.f32.partialorder %v5175, %v5213
  %vm5272 = vcmp.le.f32.partialorder %v5176, %v5215
  %vm5273 = vcmp.le.f32.partialorder %v5177, %v5217
  %vm5274 = vcmp.le.f32.partialorder %v5178, %v5219
  %vm5275 = vcmp.le.f32.partialorder %v5179, %v5221
  %vm5276 = vcmp.le.f32.partialorder %v5180, %v5223
  %vm5277 = vcmp.le.f32.partialorder %v5181, %v5225
  %vm5278 = vcmp.le.f32.partialorder %v5182, %v5227
  %vm5279 = vcmp.le.f32.partialorder %v5183, %v5229
  %vm5280 = vcmp.le.f32.partialorder %v5184, %v5231
  %vm5281 = vcmp.le.f32.partialorder %v5185, %v5233
  %vm5282 = vcmp.le.f32.partialorder %v5186, %v5235
  %vm5283 = vcmp.le.f32.partialorder %v5187, %v5237
  %vm5284 = vcmp.le.f32.partialorder %v5188, %v5239
  %vm5285 = vcmp.le.f32.partialorder %v5189, %v5241
  %vm5286 = vcmp.le.f32.partialorder %v5190, %v5243
  %vm5287 = vcmp.le.f32.partialorder %v5191, %v5245
  %vm5288 = vcmp.le.f32.partialorder %v5192, %v5247
  %vm5289 = vcmp.le.f32.partialorder %v5193, %v5249
  %vm5290 = vcmp.le.f32.partialorder %v5194, %v5251
  %vm5291 = vcmp.le.f32.partialorder %v5195, %v5253
  %vm5292 = vcmp.le.f32.partialorder %v5196, %v5255
  %vm5293 = vcmp.le.f32.partialorder %v5197, %v5257
  %vm5294 = vcmp.le.f32.partialorder %v5198, %v5259
  %vm5295 = vcmp.le.f32.partialorder %v5199, %v5261
  %vm5296 = vcmp.le.f32.partialorder %v5200, %v5263
  %vm5297 = vcmp.le.f32.partialorder %v5201, %v5265
  %v5298 = vsel %vm5266, %v689, 128
  %v5299 = vsel %vm5267, %v689, 128
  %v5300 = vsel %vm5268, %v689, 128
  %v5301 = vsel %vm5269, %v689, 128
  %v5302 = vsel %vm5270, %v689, 128
  %v5303 = vsel %vm5271, %v689, 128
  %v5304 = vsel %vm5272, %v689, 128
  %v5305 = vsel %vm5273, %v689, 128
  %v5306 = vsel %vm5274, %v689, 128
  %v5307 = vsel %vm5275, %v689, 128
  %v5308 = vsel %vm5276, %v689, 128
  %v5309 = vsel %vm5277, %v689, 128
  %v5310 = vsel %vm5278, %v689, 128
  %v5311 = vsel %vm5279, %v689, 128
  %v5312 = vsel %vm5280, %v689, 128
  %v5313 = vsel %vm5281, %v689, 128
  %v5314 = vsel %vm5282, %v689, 128
  %v5315 = vsel %vm5283, %v689, 128
  %v5316 = vsel %vm5284, %v689, 128
  %v5317 = vsel %vm5285, %v689, 128
  %v5318 = vsel %vm5286, %v689, 128
  %v5319 = vsel %vm5287, %v689, 128
  %v5320 = vsel %vm5288, %v689, 128
  %v5321 = vsel %vm5289, %v689, 128
  %v5322 = vsel %vm5290, %v689, 128
  %v5323 = vsel %vm5291, %v689, 128
  %v5324 = vsel %vm5292, %v689, 128
  %v5325 = vsel %vm5293, %v689, 128
  %v5326 = vsel %vm5294, %v689, 128
  %v5327 = vsel %vm5295, %v689, 128
  %v5328 = vsel %vm5296, %v689, 128
  %v5329 = vsel %vm5297, %v689, 128
  %v5330 = vand.u32 %v5298, 65535
  %v5331 = vshra.s32 %v5298, 16
  %v5332 = vcvt.s32.f32 %v5330
  %v5333 = vcvt.s32.f32 %v5331
  %5334 = vmin.xlane.f32.xlu0 %v5333
  %v5335 = vpop.xlane.xlu0 %5334
  %vm5336 = vcmp.eq.f32.partialorder %v5333, %v5335
  %v5337 = vsel %vm5336, %v5332, inf
  %5338 = vmin.xlane.f32.xlu0 %v5337
  %v5339 = vpop.xlane.xlu0 %5338
  %v5340 = vcvt.f32.s32 %v5339
  %v5341 = vcvt.f32.s32 %v5335
  %v5342 = vshll.u32 %v5341, 16
  %v5343 = vadd.s32 %v5342, %v5340
  %v5344 = vand.u32 %v5299, 65535
  %v5345 = vshra.s32 %v5299, 16
  %v5346 = vcvt.s32.f32 %v5344
  %v5347 = vcvt.s32.f32 %v5345
  %5348 = vmin.xlane.f32.xlu0 %v5347
  %v5349 = vpop.xlane.xlu0 %5348
  %vm5350 = vcmp.eq.f32.partialorder %v5347, %v5349
  %v5351 = vsel %vm5350, %v5346, inf
  %5352 = vmin.xlane.f32.xlu0 %v5351
  %v5353 = vpop.xlane.xlu0 %5352
  %v5354 = vcvt.f32.s32 %v5353
  %v5355 = vcvt.f32.s32 %v5349
  %v5356 = vshll.u32 %v5355, 16
  %v5357 = vadd.s32 %v5356, %v5354
  %v5358 = vand.u32 %v5300, 65535
  %v5359 = vshra.s32 %v5300, 16
  %v5360 = vcvt.s32.f32 %v5358
  %v5361 = vcvt.s32.f32 %v5359
  %5362 = vmin.xlane.f32.xlu0 %v5361
  %v5363 = vpop.xlane.xlu0 %5362
  %vm5364 = vcmp.eq.f32.partialorder %v5361, %v5363
  %v5365 = vsel %vm5364, %v5360, inf
  %5366 = vmin.xlane.f32.xlu0 %v5365
  %v5367 = vpop.xlane.xlu0 %5366
  %v5368 = vcvt.f32.s32 %v5367
  %v5369 = vcvt.f32.s32 %v5363
  %v5370 = vshll.u32 %v5369, 16
  %v5371 = vadd.s32 %v5370, %v5368
  %v5372 = vand.u32 %v5301, 65535
  %v5373 = vshra.s32 %v5301, 16
  %v5374 = vcvt.s32.f32 %v5372
  %v5375 = vcvt.s32.f32 %v5373
  %5376 = vmin.xlane.f32.xlu0 %v5375
  %v5377 = vpop.xlane.xlu0 %5376
  %vm5378 = vcmp.eq.f32.partialorder %v5375, %v5377
  %v5379 = vsel %vm5378, %v5374, inf
  %5380 = vmin.xlane.f32.xlu0 %v5379
  %v5381 = vpop.xlane.xlu0 %5380
  %v5382 = vcvt.f32.s32 %v5381
  %v5383 = vcvt.f32.s32 %v5377
  %v5384 = vshll.u32 %v5383, 16
  %v5385 = vadd.s32 %v5384, %v5382
  %v5386 = vand.u32 %v5302, 65535
  %v5387 = vshra.s32 %v5302, 16
  %v5388 = vcvt.s32.f32 %v5386
  %v5389 = vcvt.s32.f32 %v5387
  %5390 = vmin.xlane.f32.xlu0 %v5389
  %v5391 = vpop.xlane.xlu0 %5390
  %vm5392 = vcmp.eq.f32.partialorder %v5389, %v5391
  %v5393 = vsel %vm5392, %v5388, inf
  %5394 = vmin.xlane.f32.xlu0 %v5393
  %v5395 = vpop.xlane.xlu0 %5394
  %v5396 = vcvt.f32.s32 %v5395
  %v5397 = vcvt.f32.s32 %v5391
  %v5398 = vshll.u32 %v5397, 16
  %v5399 = vadd.s32 %v5398, %v5396
  %v5400 = vand.u32 %v5303, 65535
  %v5401 = vshra.s32 %v5303, 16
  %v5402 = vcvt.s32.f32 %v5400
  %v5403 = vcvt.s32.f32 %v5401
  %5404 = vmin.xlane.f32.xlu0 %v5403
  %v5405 = vpop.xlane.xlu0 %5404
  %vm5406 = vcmp.eq.f32.partialorder %v5403, %v5405
  %v5407 = vsel %vm5406, %v5402, inf
  %5408 = vmin.xlane.f32.xlu0 %v5407
  %v5409 = vpop.xlane.xlu0 %5408
  %v5410 = vcvt.f32.s32 %v5409
  %v5411 = vcvt.f32.s32 %v5405
  %v5412 = vshll.u32 %v5411, 16
  %v5413 = vadd.s32 %v5412, %v5410
  %v5414 = vand.u32 %v5304, 65535
  %v5415 = vshra.s32 %v5304, 16
  %v5416 = vcvt.s32.f32 %v5414
  %v5417 = vcvt.s32.f32 %v5415
  %5418 = vmin.xlane.f32.xlu0 %v5417
  %v5419 = vpop.xlane.xlu0 %5418
  %vm5420 = vcmp.eq.f32.partialorder %v5417, %v5419
  %v5421 = vsel %vm5420, %v5416, inf
  %5422 = vmin.xlane.f32.xlu0 %v5421
  %v5423 = vpop.xlane.xlu0 %5422
  %v5424 = vcvt.f32.s32 %v5423
  %v5425 = vcvt.f32.s32 %v5419
  %v5426 = vshll.u32 %v5425, 16
  %v5427 = vadd.s32 %v5426, %v5424
  %v5428 = vand.u32 %v5305, 65535
  %v5429 = vshra.s32 %v5305, 16
  %v5430 = vcvt.s32.f32 %v5428
  %v5431 = vcvt.s32.f32 %v5429
  %5432 = vmin.xlane.f32.xlu0 %v5431
  %v5433 = vpop.xlane.xlu0 %5432
  %vm5434 = vcmp.eq.f32.partialorder %v5431, %v5433
  %v5435 = vsel %vm5434, %v5430, inf
  %5436 = vmin.xlane.f32.xlu0 %v5435
  %v5437 = vpop.xlane.xlu0 %5436
  %v5438 = vcvt.f32.s32 %v5437
  %v5439 = vcvt.f32.s32 %v5433
  %v5440 = vshll.u32 %v5439, 16
  %v5441 = vadd.s32 %v5440, %v5438
  %v5442 = vand.u32 %v5306, 65535
  %v5443 = vshra.s32 %v5306, 16
  %v5444 = vcvt.s32.f32 %v5442
  %v5445 = vcvt.s32.f32 %v5443
  %5446 = vmin.xlane.f32.xlu0 %v5445
  %v5447 = vpop.xlane.xlu0 %5446
  %vm5448 = vcmp.eq.f32.partialorder %v5445, %v5447
  %v5449 = vsel %vm5448, %v5444, inf
  %5450 = vmin.xlane.f32.xlu0 %v5449
  %v5451 = vpop.xlane.xlu0 %5450
  %v5452 = vcvt.f32.s32 %v5451
  %v5453 = vcvt.f32.s32 %v5447
  %v5454 = vshll.u32 %v5453, 16
  %v5455 = vadd.s32 %v5454, %v5452
  %v5456 = vand.u32 %v5307, 65535
  %v5457 = vshra.s32 %v5307, 16
  %v5458 = vcvt.s32.f32 %v5456
  %v5459 = vcvt.s32.f32 %v5457
  %5460 = vmin.xlane.f32.xlu0 %v5459
  %v5461 = vpop.xlane.xlu0 %5460
  %vm5462 = vcmp.eq.f32.partialorder %v5459, %v5461
  %v5463 = vsel %vm5462, %v5458, inf
  %5464 = vmin.xlane.f32.xlu0 %v5463
  %v5465 = vpop.xlane.xlu0 %5464
  %v5466 = vcvt.f32.s32 %v5465
  %v5467 = vcvt.f32.s32 %v5461
  %v5468 = vshll.u32 %v5467, 16
  %v5469 = vadd.s32 %v5468, %v5466
  %v5470 = vand.u32 %v5308, 65535
  %v5471 = vshra.s32 %v5308, 16
  %v5472 = vcvt.s32.f32 %v5470
  %v5473 = vcvt.s32.f32 %v5471
  %5474 = vmin.xlane.f32.xlu0 %v5473
  %v5475 = vpop.xlane.xlu0 %5474
  %vm5476 = vcmp.eq.f32.partialorder %v5473, %v5475
  %v5477 = vsel %vm5476, %v5472, inf
  %5478 = vmin.xlane.f32.xlu0 %v5477
  %v5479 = vpop.xlane.xlu0 %5478
  %v5480 = vcvt.f32.s32 %v5479
  %v5481 = vcvt.f32.s32 %v5475
  %v5482 = vshll.u32 %v5481, 16
  %v5483 = vadd.s32 %v5482, %v5480
  %v5484 = vand.u32 %v5309, 65535
  %v5485 = vshra.s32 %v5309, 16
  %v5486 = vcvt.s32.f32 %v5484
  %v5487 = vcvt.s32.f32 %v5485
  %5488 = vmin.xlane.f32.xlu0 %v5487
  %v5489 = vpop.xlane.xlu0 %5488
  %vm5490 = vcmp.eq.f32.partialorder %v5487, %v5489
  %v5491 = vsel %vm5490, %v5486, inf
  %5492 = vmin.xlane.f32.xlu0 %v5491
  %v5493 = vpop.xlane.xlu0 %5492
  %v5494 = vcvt.f32.s32 %v5493
  %v5495 = vcvt.f32.s32 %v5489
  %v5496 = vshll.u32 %v5495, 16
  %v5497 = vadd.s32 %v5496, %v5494
  %v5498 = vand.u32 %v5310, 65535
  %v5499 = vshra.s32 %v5310, 16
  %v5500 = vcvt.s32.f32 %v5498
  %v5501 = vcvt.s32.f32 %v5499
  %5502 = vmin.xlane.f32.xlu0 %v5501
  %v5503 = vpop.xlane.xlu0 %5502
  %vm5504 = vcmp.eq.f32.partialorder %v5501, %v5503
  %v5505 = vsel %vm5504, %v5500, inf
  %5506 = vmin.xlane.f32.xlu0 %v5505
  %v5507 = vpop.xlane.xlu0 %5506
  %v5508 = vcvt.f32.s32 %v5507
  %v5509 = vcvt.f32.s32 %v5503
  %v5510 = vshll.u32 %v5509, 16
  %v5511 = vadd.s32 %v5510, %v5508
  %v5512 = vand.u32 %v5311, 65535
  %v5513 = vshra.s32 %v5311, 16
  %v5514 = vcvt.s32.f32 %v5512
  %v5515 = vcvt.s32.f32 %v5513
  %5516 = vmin.xlane.f32.xlu0 %v5515
  %v5517 = vpop.xlane.xlu0 %5516
  %vm5518 = vcmp.eq.f32.partialorder %v5515, %v5517
  %v5519 = vsel %vm5518, %v5514, inf
  %5520 = vmin.xlane.f32.xlu0 %v5519
  %v5521 = vpop.xlane.xlu0 %5520
  %v5522 = vcvt.f32.s32 %v5521
  %v5523 = vcvt.f32.s32 %v5517
  %v5524 = vshll.u32 %v5523, 16
  %v5525 = vadd.s32 %v5524, %v5522
  %v5526 = vand.u32 %v5312, 65535
  %v5527 = vshra.s32 %v5312, 16
  %v5528 = vcvt.s32.f32 %v5526
  %v5529 = vcvt.s32.f32 %v5527
  %5530 = vmin.xlane.f32.xlu0 %v5529
  %v5531 = vpop.xlane.xlu0 %5530
  %vm5532 = vcmp.eq.f32.partialorder %v5529, %v5531
  %v5533 = vsel %vm5532, %v5528, inf
  %5534 = vmin.xlane.f32.xlu0 %v5533
  %v5535 = vpop.xlane.xlu0 %5534
  %v5536 = vcvt.f32.s32 %v5535
  %v5537 = vcvt.f32.s32 %v5531
  %v5538 = vshll.u32 %v5537, 16
  %v5539 = vadd.s32 %v5538, %v5536
  %v5540 = vand.u32 %v5313, 65535
  %v5541 = vshra.s32 %v5313, 16
  %v5542 = vcvt.s32.f32 %v5540
  %v5543 = vcvt.s32.f32 %v5541
  %5544 = vmin.xlane.f32.xlu0 %v5543
  %v5545 = vpop.xlane.xlu0 %5544
  %vm5546 = vcmp.eq.f32.partialorder %v5543, %v5545
  %v5547 = vsel %vm5546, %v5542, inf
  %5548 = vmin.xlane.f32.xlu0 %v5547
  %v5549 = vpop.xlane.xlu0 %5548
  %v5550 = vcvt.f32.s32 %v5549
  %v5551 = vcvt.f32.s32 %v5545
  %v5552 = vshll.u32 %v5551, 16
  %v5553 = vadd.s32 %v5552, %v5550
  %v5554 = vand.u32 %v5314, 65535
  %v5555 = vshra.s32 %v5314, 16
  %v5556 = vcvt.s32.f32 %v5554
  %v5557 = vcvt.s32.f32 %v5555
  %5558 = vmin.xlane.f32.xlu0 %v5557
  %v5559 = vpop.xlane.xlu0 %5558
  %vm5560 = vcmp.eq.f32.partialorder %v5557, %v5559
  %v5561 = vsel %vm5560, %v5556, inf
  %5562 = vmin.xlane.f32.xlu0 %v5561
  %v5563 = vpop.xlane.xlu0 %5562
  %v5564 = vcvt.f32.s32 %v5563
  %v5565 = vcvt.f32.s32 %v5559
  %v5566 = vshll.u32 %v5565, 16
  %v5567 = vadd.s32 %v5566, %v5564
  %v5568 = vand.u32 %v5315, 65535
  %v5569 = vshra.s32 %v5315, 16
  %v5570 = vcvt.s32.f32 %v5568
  %v5571 = vcvt.s32.f32 %v5569
  %5572 = vmin.xlane.f32.xlu0 %v5571
  %v5573 = vpop.xlane.xlu0 %5572
  %vm5574 = vcmp.eq.f32.partialorder %v5571, %v5573
  %v5575 = vsel %vm5574, %v5570, inf
  %5576 = vmin.xlane.f32.xlu0 %v5575
  %v5577 = vpop.xlane.xlu0 %5576
  %v5578 = vcvt.f32.s32 %v5577
  %v5579 = vcvt.f32.s32 %v5573
  %v5580 = vshll.u32 %v5579, 16
  %v5581 = vadd.s32 %v5580, %v5578
  %v5582 = vand.u32 %v5316, 65535
  %v5583 = vshra.s32 %v5316, 16
  %v5584 = vcvt.s32.f32 %v5582
  %v5585 = vcvt.s32.f32 %v5583
  %5586 = vmin.xlane.f32.xlu0 %v5585
  %v5587 = vpop.xlane.xlu0 %5586
  %vm5588 = vcmp.eq.f32.partialorder %v5585, %v5587
  %v5589 = vsel %vm5588, %v5584, inf
  %5590 = vmin.xlane.f32.xlu0 %v5589
  %v5591 = vpop.xlane.xlu0 %5590
  %v5592 = vcvt.f32.s32 %v5591
  %v5593 = vcvt.f32.s32 %v5587
  %v5594 = vshll.u32 %v5593, 16
  %v5595 = vadd.s32 %v5594, %v5592
  %v5596 = vand.u32 %v5317, 65535
  %v5597 = vshra.s32 %v5317, 16
  %v5598 = vcvt.s32.f32 %v5596
  %v5599 = vcvt.s32.f32 %v5597
  %5600 = vmin.xlane.f32.xlu0 %v5599
  %v5601 = vpop.xlane.xlu0 %5600
  %vm5602 = vcmp.eq.f32.partialorder %v5599, %v5601
  %v5603 = vsel %vm5602, %v5598, inf
  %5604 = vmin.xlane.f32.xlu0 %v5603
  %v5605 = vpop.xlane.xlu0 %5604
  %v5606 = vcvt.f32.s32 %v5605
  %v5607 = vcvt.f32.s32 %v5601
  %v5608 = vshll.u32 %v5607, 16
  %v5609 = vadd.s32 %v5608, %v5606
  %v5610 = vand.u32 %v5318, 65535
  %v5611 = vshra.s32 %v5318, 16
  %v5612 = vcvt.s32.f32 %v5610
  %v5613 = vcvt.s32.f32 %v5611
  %5614 = vmin.xlane.f32.xlu0 %v5613
  %v5615 = vpop.xlane.xlu0 %5614
  %vm5616 = vcmp.eq.f32.partialorder %v5613, %v5615
  %v5617 = vsel %vm5616, %v5612, inf
  %5618 = vmin.xlane.f32.xlu0 %v5617
  %v5619 = vpop.xlane.xlu0 %5618
  %v5620 = vcvt.f32.s32 %v5619
  %v5621 = vcvt.f32.s32 %v5615
  %v5622 = vshll.u32 %v5621, 16
  %v5623 = vadd.s32 %v5622, %v5620
  %v5624 = vand.u32 %v5319, 65535
  %v5625 = vshra.s32 %v5319, 16
  %v5626 = vcvt.s32.f32 %v5624
  %v5627 = vcvt.s32.f32 %v5625
  %5628 = vmin.xlane.f32.xlu0 %v5627
  %v5629 = vpop.xlane.xlu0 %5628
  %vm5630 = vcmp.eq.f32.partialorder %v5627, %v5629
  %v5631 = vsel %vm5630, %v5626, inf
  %5632 = vmin.xlane.f32.xlu0 %v5631
  %v5633 = vpop.xlane.xlu0 %5632
  %v5634 = vcvt.f32.s32 %v5633
  %v5635 = vcvt.f32.s32 %v5629
  %v5636 = vshll.u32 %v5635, 16
  %v5637 = vadd.s32 %v5636, %v5634
  %v5638 = vand.u32 %v5320, 65535
  %v5639 = vshra.s32 %v5320, 16
  %v5640 = vcvt.s32.f32 %v5638
  %v5641 = vcvt.s32.f32 %v5639
  %5642 = vmin.xlane.f32.xlu0 %v5641
  %v5643 = vpop.xlane.xlu0 %5642
  %vm5644 = vcmp.eq.f32.partialorder %v5641, %v5643
  %v5645 = vsel %vm5644, %v5640, inf
  %5646 = vmin.xlane.f32.xlu0 %v5645
  %v5647 = vpop.xlane.xlu0 %5646
  %v5648 = vcvt.f32.s32 %v5647
  %v5649 = vcvt.f32.s32 %v5643
  %v5650 = vshll.u32 %v5649, 16
  %v5651 = vadd.s32 %v5650, %v5648
  %v5652 = vand.u32 %v5321, 65535
  %v5653 = vshra.s32 %v5321, 16
  %v5654 = vcvt.s32.f32 %v5652
  %v5655 = vcvt.s32.f32 %v5653
  %5656 = vmin.xlane.f32.xlu0 %v5655
  %v5657 = vpop.xlane.xlu0 %5656
  %vm5658 = vcmp.eq.f32.partialorder %v5655, %v5657
  %v5659 = vsel %vm5658, %v5654, inf
  %5660 = vmin.xlane.f32.xlu0 %v5659
  %v5661 = vpop.xlane.xlu0 %5660
  %v5662 = vcvt.f32.s32 %v5661
  %v5663 = vcvt.f32.s32 %v5657
  %v5664 = vshll.u32 %v5663, 16
  %v5665 = vadd.s32 %v5664, %v5662
  %v5666 = vand.u32 %v5322, 65535
  %v5667 = vshra.s32 %v5322, 16
  %v5668 = vcvt.s32.f32 %v5666
  %v5669 = vcvt.s32.f32 %v5667
  %5670 = vmin.xlane.f32.xlu0 %v5669
  %v5671 = vpop.xlane.xlu0 %5670
  %vm5672 = vcmp.eq.f32.partialorder %v5669, %v5671
  %v5673 = vsel %vm5672, %v5668, inf
  %5674 = vmin.xlane.f32.xlu0 %v5673
  %v5675 = vpop.xlane.xlu0 %5674
  %v5676 = vcvt.f32.s32 %v5675
  %v5677 = vcvt.f32.s32 %v5671
  %v5678 = vshll.u32 %v5677, 16
  %v5679 = vadd.s32 %v5678, %v5676
  %v5680 = vand.u32 %v5323, 65535
  %v5681 = vshra.s32 %v5323, 16
  %v5682 = vcvt.s32.f32 %v5680
  %v5683 = vcvt.s32.f32 %v5681
  %5684 = vmin.xlane.f32.xlu0 %v5683
  %v5685 = vpop.xlane.xlu0 %5684
  %vm5686 = vcmp.eq.f32.partialorder %v5683, %v5685
  %v5687 = vsel %vm5686, %v5682, inf
  %5688 = vmin.xlane.f32.xlu0 %v5687
  %v5689 = vpop.xlane.xlu0 %5688
  %v5690 = vcvt.f32.s32 %v5689
  %v5691 = vcvt.f32.s32 %v5685
  %v5692 = vshll.u32 %v5691, 16
  %v5693 = vadd.s32 %v5692, %v5690
  %v5694 = vand.u32 %v5324, 65535
  %v5695 = vshra.s32 %v5324, 16
  %v5696 = vcvt.s32.f32 %v5694
  %v5697 = vcvt.s32.f32 %v5695
  %5698 = vmin.xlane.f32.xlu0 %v5697
  %v5699 = vpop.xlane.xlu0 %5698
  %vm5700 = vcmp.eq.f32.partialorder %v5697, %v5699
  %v5701 = vsel %vm5700, %v5696, inf
  %5702 = vmin.xlane.f32.xlu0 %v5701
  %v5703 = vpop.xlane.xlu0 %5702
  %v5704 = vcvt.f32.s32 %v5703
  %v5705 = vcvt.f32.s32 %v5699
  %v5706 = vshll.u32 %v5705, 16
  %v5707 = vadd.s32 %v5706, %v5704
  %v5708 = vand.u32 %v5325, 65535
  %v5709 = vshra.s32 %v5325, 16
  %v5710 = vcvt.s32.f32 %v5708
  %v5711 = vcvt.s32.f32 %v5709
  %5712 = vmin.xlane.f32.xlu0 %v5711
  %v5713 = vpop.xlane.xlu0 %5712
  %vm5714 = vcmp.eq.f32.partialorder %v5711, %v5713
  %v5715 = vsel %vm5714, %v5710, inf
  %5716 = vmin.xlane.f32.xlu0 %v5715
  %v5717 = vpop.xlane.xlu0 %5716
  %v5718 = vcvt.f32.s32 %v5717
  %v5719 = vcvt.f32.s32 %v5713
  %v5720 = vshll.u32 %v5719, 16
  %v5721 = vadd.s32 %v5720, %v5718
  %v5722 = vand.u32 %v5326, 65535
  %v5723 = vshra.s32 %v5326, 16
  %v5724 = vcvt.s32.f32 %v5722
  %v5725 = vcvt.s32.f32 %v5723
  %5726 = vmin.xlane.f32.xlu0 %v5725
  %v5727 = vpop.xlane.xlu0 %5726
  %vm5728 = vcmp.eq.f32.partialorder %v5725, %v5727
  %v5729 = vsel %vm5728, %v5724, inf
  %5730 = vmin.xlane.f32.xlu0 %v5729
  %v5731 = vpop.xlane.xlu0 %5730
  %v5732 = vcvt.f32.s32 %v5731
  %v5733 = vcvt.f32.s32 %v5727
  %v5734 = vshll.u32 %v5733, 16
  %v5735 = vadd.s32 %v5734, %v5732
  %v5736 = vand.u32 %v5327, 65535
  %v5737 = vshra.s32 %v5327, 16
  %v5738 = vcvt.s32.f32 %v5736
  %v5739 = vcvt.s32.f32 %v5737
  %5740 = vmin.xlane.f32.xlu0 %v5739
  %v5741 = vpop.xlane.xlu0 %5740
  %vm5742 = vcmp.eq.f32.partialorder %v5739, %v5741
  %v5743 = vsel %vm5742, %v5738, inf
  %5744 = vmin.xlane.f32.xlu0 %v5743
  %v5745 = vpop.xlane.xlu0 %5744
  %v5746 = vcvt.f32.s32 %v5745
  %v5747 = vcvt.f32.s32 %v5741
  %v5748 = vshll.u32 %v5747, 16
  %v5749 = vadd.s32 %v5748, %v5746
  %v5750 = vand.u32 %v5328, 65535
  %v5751 = vshra.s32 %v5328, 16
  %v5752 = vcvt.s32.f32 %v5750
  %v5753 = vcvt.s32.f32 %v5751
  %5754 = vmin.xlane.f32.xlu0 %v5753
  %v5755 = vpop.xlane.xlu0 %5754
  %vm5756 = vcmp.eq.f32.partialorder %v5753, %v5755
  %v5757 = vsel %vm5756, %v5752, inf
  %5758 = vmin.xlane.f32.xlu0 %v5757
  %v5759 = vpop.xlane.xlu0 %5758
  %v5760 = vcvt.f32.s32 %v5759
  %v5761 = vcvt.f32.s32 %v5755
  %v5762 = vshll.u32 %v5761, 16
  %v5763 = vadd.s32 %v5762, %v5760
  %v5764 = vand.u32 %v5329, 65535
  %v5765 = vshra.s32 %v5329, 16
  %v5766 = vcvt.s32.f32 %v5764
  %v5767 = vcvt.s32.f32 %v5765
  %5768 = vmin.xlane.f32.xlu0 %v5767
  %v5769 = vpop.xlane.xlu0 %5768
  %vm5770 = vcmp.eq.f32.partialorder %v5767, %v5769
  %v5771 = vsel %vm5770, %v5766, inf
  %5772 = vmin.xlane.f32.xlu0 %v5771
  %v5773 = vpop.xlane.xlu0 %5772
  %v5774 = vcvt.f32.s32 %v5773
  %v5775 = vcvt.f32.s32 %v5769
  %v5776 = vshll.u32 %v5775, 16
  %v5777 = vadd.s32 %v5776, %v5774
  %vm5778 = vcmp.eq.s32.totalorder %v689, 3
  %v5779 = vsel %vm5778, %v5343, %v4776
  %v5780 = vsel %vm5778, %v5357, %v4777
  %v5781 = vsel %vm5778, %v5371, %v4778
  %v5782 = vsel %vm5778, %v5385, %v4779
  %v5783 = vsel %vm5778, %v5399, %v4780
  %v5784 = vsel %vm5778, %v5413, %v4781
  %v5785 = vsel %vm5778, %v5427, %v4782
  %v5786 = vsel %vm5778, %v5441, %v4783
  %v5787 = vsel %vm5778, %v5455, %v4784
  %v5788 = vsel %vm5778, %v5469, %v4785
  %v5789 = vsel %vm5778, %v5483, %v4786
  %v5790 = vsel %vm5778, %v5497, %v4787
  %v5791 = vsel %vm5778, %v5511, %v4788
  %v5792 = vsel %vm5778, %v5525, %v4789
  %v5793 = vsel %vm5778, %v5539, %v4790
  %v5794 = vsel %vm5778, %v5553, %v4791
  %v5795 = vsel %vm5778, %v5567, %v4792
  %v5796 = vsel %vm5778, %v5581, %v4793
  %v5797 = vsel %vm5778, %v5595, %v4794
  %v5798 = vsel %vm5778, %v5609, %v4795
  %v5799 = vsel %vm5778, %v5623, %v4796
  %v5800 = vsel %vm5778, %v5637, %v4797
  %v5801 = vsel %vm5778, %v5651, %v4798
  %v5802 = vsel %vm5778, %v5665, %v4799
  %v5803 = vsel %vm5778, %v5679, %v4800
  %v5804 = vsel %vm5778, %v5693, %v4801
  %v5805 = vsel %vm5778, %v5707, %v4802
  %v5806 = vsel %vm5778, %v5721, %v4803
  %v5807 = vsel %vm5778, %v5735, %v4804
  %v5808 = vsel %vm5778, %v5749, %v4805
  %v5809 = vsel %vm5778, %v5763, %v4806
  %v5810 = vsel %vm5778, %v5777, %v4807
  %5811 = vxpose.xlu0.b32.start [1/16] %v5779, 128
  %5812 = vxpose.xlu0.b32.cont [2/16] %v5780, 128
  %5813 = vxpose.xlu0.b32.cont [3/16] %v5781, 128
  %5814 = vxpose.xlu0.b32.cont [4/16] %v5782, 128
  %5815 = vxpose.xlu0.b32.cont [5/16] %v5783, 128
  %5816 = vxpose.xlu0.b32.cont [6/16] %v5784, 128
  %5817 = vxpose.xlu0.b32.cont [7/16] %v5785, 128
  %5818 = vxpose.xlu0.b32.cont [8/16] %v5786, 128
  %5819 = vxpose.xlu0.b32.cont [9/16] %v5787, 128
  %5820 = vxpose.xlu0.b32.cont [10/16] %v5788, 128
  %5821 = vxpose.xlu0.b32.cont [11/16] %v5789, 128
  %5822 = vxpose.xlu0.b32.cont [12/16] %v5790, 128
  %5823 = vxpose.xlu0.b32.cont [13/16] %v5791, 128
  %5824 = vxpose.xlu0.b32.cont [14/16] %v5792, 128
  %5825 = vxpose.xlu0.b32.cont [15/16] %v5793, 128
  %5826 = vxpose.xlu0.b32.end [16/16] %v5794, 128
  %v5827 = vpop.trf.xlu0
  %v5828 = vpop.trf.xlu0
  %v5829 = vpop.trf.xlu0
  %v5830 = vpop.trf.xlu0
  %v5831 = vpop.trf.xlu0
  %v5832 = vpop.trf.xlu0
  %v5833 = vpop.trf.xlu0
  %v5834 = vpop.trf.xlu0
  %v5835 = vpop.trf.xlu0
  %v5836 = vpop.trf.xlu0
  %v5837 = vpop.trf.xlu0
  %v5838 = vpop.trf.xlu0
  %v5839 = vpop.trf.xlu0
  %v5840 = vpop.trf.xlu0
  %v5841 = vpop.trf.xlu0
  %v5842 = vpop.trf.xlu0
  %5843 = vxpose.xlu0.b32.start [1/16] %v5795, 128
  %5844 = vxpose.xlu0.b32.cont [2/16] %v5796, 128
  %5845 = vxpose.xlu0.b32.cont [3/16] %v5797, 128
  %5846 = vxpose.xlu0.b32.cont [4/16] %v5798, 128
  %5847 = vxpose.xlu0.b32.cont [5/16] %v5799, 128
  %5848 = vxpose.xlu0.b32.cont [6/16] %v5800, 128
  %5849 = vxpose.xlu0.b32.cont [7/16] %v5801, 128
  %5850 = vxpose.xlu0.b32.cont [8/16] %v5802, 128
  %5851 = vxpose.xlu0.b32.cont [9/16] %v5803, 128
  %5852 = vxpose.xlu0.b32.cont [10/16] %v5804, 128
  %5853 = vxpose.xlu0.b32.cont [11/16] %v5805, 128
  %5854 = vxpose.xlu0.b32.cont [12/16] %v5806, 128
  %5855 = vxpose.xlu0.b32.cont [13/16] %v5807, 128
  %5856 = vxpose.xlu0.b32.cont [14/16] %v5808, 128
  %5857 = vxpose.xlu0.b32.cont [15/16] %v5809, 128
  %5858 = vxpose.xlu0.b32.end [16/16] %v5810, 128
  %v5859 = vpop.trf.xlu0
  %v5860 = vpop.trf.xlu0
  %v5861 = vpop.trf.xlu0
  %v5862 = vpop.trf.xlu0
  %v5863 = vpop.trf.xlu0
  %v5864 = vpop.trf.xlu0
  %v5865 = vpop.trf.xlu0
  %v5866 = vpop.trf.xlu0
  %v5867 = vpop.trf.xlu0
  %v5868 = vpop.trf.xlu0
  %v5869 = vpop.trf.xlu0
  %v5870 = vpop.trf.xlu0
  %v5871 = vpop.trf.xlu0
  %v5872 = vpop.trf.xlu0
  %v5873 = vpop.trf.xlu0
  %v5874 = vpop.trf.xlu0
  %v5875 = vcombine.low %v5827, %v5859
  %5876 = vst [vmem:[%s8] sm:$0xff] %v5875
  // Predicated region
  $region34: #{vampnet_encode.1} parent=0 // pred_check
    _
  $region35: #{vampnet_encode.1} parent=0 // pred_check_branch
    %5878 = sbr.rel (0) target = $region37
  $region36: #{vampnet_encode.1} parent=0 // pred_region
    _
  $region37: #{vampnet_encode.1} parent=0 // pred_fallthru
    _
  // Predicated region
  $region38: #{vampnet_encode.1} parent=0 // pred_check
    _
  $region39: #{vampnet_encode.1} parent=0 // pred_check_branch
    %5880 = sbr.rel (0) target = $region41
  $region40: #{vampnet_encode.1} parent=0 // pred_region
    _
  $region41: #{vampnet_encode.1} parent=0 // pred_fallthru
    _

</llo_original>
